<compile_context>
chip_gen: v6e
topology: v6e:2x2x1
jax: 0.10.0
libtpu: 0.0.40
codegen_flags: <defaults>
</compile_context>

<pallas_src>
import math
from functools import partial

import jax
import jax.numpy as jnp
from jax.experimental import pallas as pl
from jax.experimental.pallas import tpu as pltpu


_VMEM_LIMIT_BYTES = 48 * 1024 * 1024   # > worst-case working set, < v7x physical


# ---------------------------------------------------------------------------
# Pallas kernels
# ---------------------------------------------------------------------------

def _linear_kernel(x_ref, w_ref, b_ref, o_ref, *, relu=False):
    """o = x @ w + b (optional ReLU). f32 accumulation, f32 epilogue."""
    y = jnp.dot(x_ref[...], w_ref[...], preferred_element_type=jnp.float32)
    y = y + b_ref[...]
    if relu:
        y = jnp.maximum(y, 0.0)
    o_ref[...] = y.astype(o_ref.dtype)


def _pw_skip_relu_kernel(x_ref, skip_ref, w_ref, b_ref, o_ref):
    """Fused Fourier-layer tail: o = relu(x @ w + b + spectral_branch)."""
    y = jnp.dot(x_ref[...], w_ref[...], preferred_element_type=jnp.float32)
    y = y + b_ref[...] + skip_ref[...].astype(jnp.float32)
    o_ref[...] = jnp.maximum(y, 0.0).astype(o_ref.dtype)


def _head_kernel(x_ref, w1_ref, b1_ref, w2_ref, b2_ref, o_ref):
    """Fused projection head: o = relu(x @ w1 + b1) @ w2 + b2.

    The (tile, 64) fc1 activation never leaves VMEM/vregs.
    """
    h = jnp.dot(x_ref[...], w1_ref[...], preferred_element_type=jnp.float32)
    h = jnp.maximum(h + b1_ref[...], 0.0)
    y = jnp.dot(h, w2_ref[...], preferred_element_type=jnp.float32) + b2_ref[...]
    o_ref[...] = y.astype(o_ref.dtype)


def _spectral_mix_kernel(a_ref, w_ref, o_ref):
    """Group-blocked complex channel mixing (stacked-real, block-diagonal).

    a: (gblk, B, G*2Cin)        rows = per-group packed [re|im] coefficients
    w: (gblk, G*2Cin, G*2Cout)  block-diagonal per-group weight
    o: (gblk, B, G*2Cout)
    """
    o_ref[...] = jnp.einsum(
        "gbi,gio->gbo", a_ref[...], w_ref[...],
        preferred_element_type=jnp.float32).astype(o_ref.dtype)


# ---------------------------------------------------------------------------
# Tiling helpers + Pallas wrappers
# ---------------------------------------------------------------------------

def _cdiv(a, b):
    return (a + b - 1) // b


def _round_up(x, m):
    return ((x + m - 1) // m) * m


def _choose_tile(n_rows, max_tile=8192):
    """Row-tile size.

    - n_rows <= max_tile: single full block (block dims == array dims, so no
      (8,128) padding concern, no partial block at all).
    - otherwise: split into an EVEN number of steps (balanced across v7x's two
      TensorCores), tile a multiple of 8 (sublane).  Partial last block is
      handled by Pallas; rows are independent so that is safe.
    """
    if n_rows <= max_tile:
        return n_rows
    steps = _cdiv(n_rows, max_tile)
    if steps % 2:
        steps += 1
    return max(8, _round_up(_cdiv(n_rows, steps), 8))


def _run_rows(kernel, row_args, const_args, out_cols, out_dtype=jnp.float32,
              max_tile=8192):
    """Run `kernel` over row-tiles of flattened (N, C) activations.

    row_args:   list of (N, C_i) arrays (pre-cast to their streaming dtype),
                tiled along rows.
    const_args: list of 2-D arrays (weights / (1,C) biases), loaded whole.

    No host-side pad / slice: grid = cdiv(N, tile) and Pallas only writes back
    the in-bounds rows of the (possibly partial) last block.
    """
    n = row_args[0].shape[0]
    tile = _choose_tile(n, max_tile)
    grid = _cdiv(n, tile)

    row_specs = [pl.BlockSpec((tile, int(r.shape[1])), lambda i: (i, 0))
                 for r in row_args]
    const_specs = [pl.BlockSpec(c.shape, lambda i: (0, 0)) for c in const_args]
    out_spec = pl.BlockSpec((tile, out_cols), lambda i: (i, 0))

    return pl.pallas_call(
        kernel,
        out_shape=jax.ShapeDtypeStruct((n, out_cols), out_dtype),
        grid_spec=pltpu.PrefetchScalarGridSpec(
            num_scalar_prefetch=0,
            grid=(grid,),
            in_specs=row_specs + const_specs,
            out_specs=out_spec,
        ),
        compiler_params=pltpu.CompilerParams(
            dimension_semantics=("parallel",),
            vmem_limit_bytes=_VMEM_LIMIT_BYTES),
    )(*row_args, *const_args)


def spectral_mix(a_s, w_s):
    """a_s: (NG, B, G*2Cin) f32, w_s: (NG, G*2Cin, G*2Cout) f32.

    One Pallas call per layer; ~2 'parallel' grid steps over the group axis so
    both v7x TensorCores get work and the weight DMA pipelines, while each MXU
    contraction is near full width.
    """
    ng, b, gk = a_s.shape
    gn = w_s.shape[-1]
    gblk = max(1, _cdiv(ng, 2))
    grid = _cdiv(ng, gblk)

    return pl.pallas_call(
        _spectral_mix_kernel,
        out_shape=jax.ShapeDtypeStruct((ng, b, gn), jnp.float32),
        grid_spec=pltpu.PrefetchScalarGridSpec(
            num_scalar_prefetch=0,
            grid=(grid,),
            in_specs=[pl.BlockSpec((gblk, b, gk), lambda i: (i, 0, 0)),
                      pl.BlockSpec((gblk, gk, gn), lambda i: (i, 0, 0))],
            out_specs=pl.BlockSpec((gblk, b, gn), lambda i: (i, 0, 0)),
        ),
        compiler_params=pltpu.CompilerParams(
            dimension_semantics=("parallel",),
            vmem_limit_bytes=_VMEM_LIMIT_BYTES),
    )(a_s, w_s)


# ---------------------------------------------------------------------------
# SpectralConv2d (FFT in JAX glue, group-blocked channel mixing in Pallas)
# ---------------------------------------------------------------------------

def spectral_conv2d(x_bhwc, w_s, modes1, modes2):
    """x: (B, S1, S2, C) channels-last.  w_s: (NG, G*2C, G*2Cout) block-diag."""
    B, S1, S2, C = x_bhwc.shape
    ng, gk, gn = w_s.shape
    g = gk // (2 * C)
    Cout = gn // (2 * g)
    M = modes1 * modes2

    # torch.rfft(x, 2, normalized=True, onesided=True) == rfft2(norm='ortho')
    # over the spatial axes (1, 2) of the channels-last layout.
    x_ft = jnp.fft.rfft2(x_bhwc.astype(jnp.float32), axes=(1, 2), norm="ortho")

    a_top = x_ft[:, :modes1, :modes2, :].reshape(B, M, C)
    a_bot = x_ft[:, -modes1:, :modes2, :].reshape(B, M, C)
    a = jnp.concatenate([a_top, a_bot], axis=1)              # (B, 2M, C) complex
    a_s = jnp.concatenate([a.real, a.imag], axis=-1)         # (B, 2M, 2C) f32
    a_s = a_s.reshape(B, ng, g, 2 * C)
    a_s = jnp.transpose(a_s, (1, 0, 2, 3)).reshape(ng, B, g * 2 * C)

    o_s = spectral_mix(a_s, w_s)                              # (NG, B, G*2Cout)
    o_s = o_s.reshape(ng, B, g, 2 * Cout)
    o_s = jnp.transpose(o_s, (1, 0, 2, 3)).reshape(B, 2 * M, 2 * Cout)
    o = o_s[..., :Cout] + 1j * o_s[..., Cout:]                # (B, 2M, Cout)

    out_ft = jnp.zeros((B, S1, S2 // 2 + 1, Cout), dtype=x_ft.dtype)
    out_ft = out_ft.at[:, :modes1, :modes2, :].set(
        o[:, :M].reshape(B, modes1, modes2, Cout))
    out_ft = out_ft.at[:, -modes1:, :modes2, :].set(
        o[:, M:].reshape(B, modes1, modes2, Cout))
    # torch.irfft(..., normalized=True, onesided=True, signal_sizes=(S1,S2))
    return jnp.fft.irfft2(out_ft, axes=(1, 2), s=(S1, S2), norm="ortho")


# ---------------------------------------------------------------------------
# Full FNO2d forward (channels-last, flat bf16 activations between layers)
# ---------------------------------------------------------------------------

def fno2d_forward(x, params, modes1, modes2, width):
    B, Sx, Sy, _ = x.shape
    n = B * Sx * Sy

    # fc0: lift 3 -> width (input stays f32: only 3 channels; output bf16)
    h = _run_rows(partial(_linear_kernel, relu=False),
                  [x.reshape(n, 3)],
                  [params["fc0_w"], params["fc0_b"]],
                  width, out_dtype=jnp.bfloat16)

    for l in range(4):
        x1 = spectral_conv2d(h.reshape(B, Sx, Sy, width),
                             params[f"conv{l}_ws"], modes1, modes2)
        # fused: relu( W_l(h) + bias + spectral_branch ), bf16 in / bf16 out,
        # f32 accumulation + epilogue.
        h = _run_rows(_pw_skip_relu_kernel,
                      [h, x1.astype(jnp.bfloat16).reshape(n, width)],
                      [params[f"w{l}_w"], params[f"w{l}_b"]],
                      width, out_dtype=jnp.bfloat16)

    # fused head: fc2(relu(fc1(h)))
    out = _run_rows(_head_kernel,
                    [h],
                    [params["fc1_w"], params["fc1_b"],
                     params["fc2_w"], params["fc2_b"]],
                    1, out_dtype=jnp.float32)
    # torch's FNO2d.forward ends with x.squeeze(): drop all size-1 dims
    # (including batch when B == 1), which jnp.squeeze mirrors exactly.
    return jnp.squeeze(out.reshape(B, Sx, Sy, 1))


# ---------------------------------------------------------------------------
# Parameters: raw init (mirrors PyTorch shapes) + one-time preparation
# ---------------------------------------------------------------------------

def init_params(key, modes1, modes2, width):
    keys = iter(jax.random.split(key, 32))

    def lin(din, dout):
        bound = 1.0 / math.sqrt(din)
        w = jax.random.uniform(next(keys), (din, dout), jnp.float32, -bound, bound)
        b = jax.random.uniform(next(keys), (dout,), jnp.float32, -bound, bound)
        return w, b

    p = {}
    p["fc0_w"], p["fc0_b"] = lin(3, width)
    scale = 1.0 / (width * width)
    for l in range(4):
        p[f"conv{l}_w1"] = scale * jax.random.uniform(
            next(keys), (width, width, modes1, modes2, 2), jnp.float32)
        p[f"conv{l}_w2"] = scale * jax.random.uniform(
            next(keys), (width, width, modes1, modes2, 2), jnp.float32)
        p[f"w{l}_w"], p[f"w{l}_b"] = lin(width, width)   # 1x1 conv as matmul
    p["fc1_w"], p["fc1_b"] = lin(width, 64)
    p["fc2_w"], p["fc2_b"] = lin(64, 1)
    return p


def _stack_spectral_weight(w):
    """(Cin, Cout, m1, m2, 2) -> (M, 2Cin, 2Cout) real block form
    [[wr, wi], [-wi, wr]] so that [ar ai] @ W == [re | im] of the complex
    product (one real matmul per mode instead of four)."""
    cin, cout, m1, m2, _ = w.shape
    wr = jnp.transpose(w[..., 0], (2, 3, 0, 1)).reshape(m1 * m2, cin, cout)
    wi = jnp.transpose(w[..., 1], (2, 3, 0, 1)).reshape(m1 * m2, cin, cout)
    top = jnp.concatenate([wr, wi], axis=-1)       # (M, Cin, 2Cout)
    bot = jnp.concatenate([-wi, wr], axis=-1)      # (M, Cin, 2Cout)
    return jnp.concatenate([top, bot], axis=1)     # (M, 2Cin, 2Cout)


def _block_diagonalize(w_m, g):
    """(2M, K, N) per-mode blocks -> (2M/g, g*K, g*N) block-diagonal groups
    so one MXU contraction handles g modes at near-full width."""
    m2, K, N = w_m.shape
    ng = m2 // g
    wg = w_m.reshape(ng, g, K, N)
    eye = jnp.eye(g, dtype=w_m.dtype)
    bd = jnp.einsum("ngkl,gh->ngkhl", wg, eye)     # zero off-diagonal blocks
    return bd.reshape(ng, g * K, g * N)


def _mode_group_size(two_m, two_cin, mxu_dim=256):
    """Largest divisor g of 2M with g*2Cin <= mxu_dim (v6e/v7x MXU is 256
    wide; v5e simply splits the 240-wide contraction internally)."""
    g_max = max(1, mxu_dim // max(1, two_cin))
    for g in range(min(g_max, two_m), 0, -1):
        if two_m % g == 0:
            return g
    return 1


def prepare_params(raw):
    """One-time reshuffle of the static weights (done once, outside the
    per-step forward): spectral weights of both blocks of each layer are
    stacked along the mode axis and packed into block-diagonal mode groups;
    the row-streamed matmul weights are cast to bf16 (f32 accumulation in the
    kernels); biases reshaped to (1, C) f32."""
    width = raw["fc0_w"].shape[1]
    modes_total = raw["conv0_w1"].shape[2] * raw["conv0_w1"].shape[3]
    g = _mode_group_size(2 * modes_total, 2 * width)

    p = {
        "fc0_w": raw["fc0_w"],
        "fc0_b": raw["fc0_b"].reshape(1, -1),
        "fc1_w": raw["fc1_w"].astype(jnp.bfloat16),
        "fc1_b": raw["fc1_b"].reshape(1, -1),
        "fc2_w": raw["fc2_w"],
        "fc2_b": raw["fc2_b"].reshape(1, -1),
    }
    for l in range(4):
        p[f"w{l}_w"] = raw[f"w{l}_w"].astype(jnp.bfloat16)
        p[f"w{l}_b"] = raw[f"w{l}_b"].reshape(1, -1)
        w_m = jnp.concatenate(
            [_stack_spectral_weight(raw[f"conv{l}_w1"]),
             _stack_spectral_weight(raw[f"conv{l}_w2"])], axis=0)
        p[f"conv{l}_ws"] = _block_diagonalize(w_m, g)
    return p


# ---------------------------------------------------------------------------
# Pure-JAX reference (mirrors the PyTorch code) for a correctness check
# ---------------------------------------------------------------------------

def reference_forward(x, params, modes1, modes2, width):
    hi = jax.lax.Precision.HIGHEST
    B, Sx, Sy, _ = x.shape
    h = jnp.einsum("nxyc,cw->nxyw", x, params["fc0_w"], precision=hi) + params["fc0_b"]
    h = jnp.transpose(h, (0, 3, 1, 2))

    def spec(xc, w1, w2):
        x_ft = jnp.fft.rfft2(xc, norm="ortho")

        def cm(a, w):
            wc = w[..., 0] + 1j * w[..., 1]
            return jnp.einsum("bixy,ioxy->boxy", a, wc, precision=hi)

        out_ft = jnp.zeros((B, width, Sx, Sy // 2 + 1), dtype=x_ft.dtype)
        out_ft = out_ft.at[:, :, :modes1, :modes2].set(
            cm(x_ft[:, :, :modes1, :modes2], w1))
        out_ft = out_ft.at[:, :, -modes1:, :modes2].set(
            cm(x_ft[:, :, -modes1:, :modes2], w2))
        return jnp.fft.irfft2(out_ft, s=(Sx, Sy), norm="ortho")

    for l in range(4):
        x1 = spec(h, params[f"conv{l}_w1"], params[f"conv{l}_w2"])
        x2 = (jnp.einsum("bcxy,co->boxy", h, params[f"w{l}_w"], precision=hi)
              + params[f"w{l}_b"][None, :, None, None])
        h = jax.nn.relu(x1 + x2)

    h = jnp.transpose(h, (0, 2, 3, 1))
    h = jax.nn.relu(
        jnp.einsum("nxyc,cw->nxyw", h, params["fc1_w"], precision=hi) + params["fc1_b"])
    h = jnp.einsum("nxyc,cw->nxyw", h, params["fc2_w"], precision=hi) + params["fc2_b"]
    return jnp.squeeze(h)


if __name__ == "__main__":
    B, S = 2, 16
    modes1 = modes2 = 6
    width = 20

    key = jax.random.PRNGKey(0)
    x = jax.random.normal(key, (B, S, S, 3), jnp.float32)
    raw_params = init_params(jax.random.PRNGKey(42), modes1, modes2, width)
    params = prepare_params(raw_params)

    fwd = jax.jit(partial(fno2d_forward, modes1=modes1, modes2=modes2, width=width))
    out = jax.block_until_ready(fwd(x, params))
    assert out.shape == (B, S, S), out.shape

    ref = jax.block_until_ready(reference_forward(x, raw_params, modes1, modes2, width))
    err = float(jnp.max(jnp.abs(out - ref)))
    # bf16 activation streaming (f32 accumulation) -> relaxed tolerance.
    if not err < 5e-2:
        raise AssertionError(f"mismatch vs reference: max abs err = {err}")

    print("KERNEL_OK")
</pallas_src>

<mosaic_0001>
module attributes {stable_mosaic.version = 11 : i64} {
  func.func @_linear_kernel(%arg0: i32, %arg1: memref<512x3xf32, #tpu.memory_space<vmem>>, %arg2: memref<3x20xf32, #tpu.memory_space<vmem>>, %arg3: memref<1x20xf32, #tpu.memory_space<vmem>>, %arg4: memref<512x20xbf16, #tpu.memory_space<vmem>>) attributes {dimension_semantics = [#tpu.dimension_semantics<parallel>], iteration_bounds = array<i64: 1>, scalar_prefetch = 0 : i64, scratch_operands = 0 : i64, tpu.core_type = #tpu.core_type<tc>, window_params = [{transform_indices = @transform_0, window_bounds = array<i64: 512, 3>}, {pipeline_mode = #tpu.pipeline_mode<synchronous>, transform_indices = @transform_1, window_bounds = array<i64: 3, 20>}, {pipeline_mode = #tpu.pipeline_mode<synchronous>, transform_indices = @transform_2, window_bounds = array<i64: 1, 20>}, {transform_indices = @transform_3, window_bounds = array<i64: 512, 20>}]} {
    %c0 = arith.constant 0 : index
    %c0_0 = arith.constant 0 : index
    %0 = vector.load %arg1[%c0, %c0_0] : memref<512x3xf32, #tpu.memory_space<vmem>>, vector<512x3xf32>
    %c0_1 = arith.constant 0 : index
    %c0_2 = arith.constant 0 : index
    %1 = vector.load %arg2[%c0_1, %c0_2] : memref<3x20xf32, #tpu.memory_space<vmem>>, vector<3x20xf32>
    %cst = arith.constant dense<0.000000e+00> : vector<512x20xf32>
    %2 = tpu.matmul %0, %1, %cst {dimension_numbers = #tpu.dot_dimension_numbers<[1], [0], [0], [1], [0, 0, 1, 1], [], []>} : vector<512x3xf32>, vector<3x20xf32>, vector<512x20xf32> -> vector<512x20xf32>
    %c0_3 = arith.constant 0 : index
    %c0_4 = arith.constant 0 : index
    %3 = vector.load %arg3[%c0_3, %c0_4] : memref<1x20xf32, #tpu.memory_space<vmem>>, vector<1x20xf32>
    %4 = vector.broadcast %3 : vector<1x20xf32> to vector<512x20xf32>
    %5 = arith.addf %2, %4 : vector<512x20xf32>
    %6 = arith.truncf %5 : vector<512x20xf32> to vector<512x20xbf16>
    %c0_5 = arith.constant 0 : index
    %c0_6 = arith.constant 0 : index
    %7 = vector.load %arg4[%c0_5, %c0_6] : memref<512x20xbf16, #tpu.memory_space<vmem>>, vector<512x20xbf16>
    tpu.vector_store %arg4[%c0_5, %c0_6], %6 {strides = array<i32>} : memref<512x20xbf16, #tpu.memory_space<vmem>>, vector<512x20xbf16>,
    return
  }
  func.func @transform_0(%arg0: i32) -> (i32, i32) {
    %c0_i32 = arith.constant 0 : i32
    %c0_i32_0 = arith.constant 0 : i32
    return %arg0, %c0_i32 : i32, i32
  }
  func.func @transform_1(%arg0: i32) -> (i32, i32) {
    %c0_i32 = arith.constant 0 : i32
    %c0_i32_0 = arith.constant 0 : i32
    %c0_i32_1 = arith.constant 0 : i32
    return %c0_i32, %c0_i32_0 : i32, i32
  }
  func.func @transform_2(%arg0: i32) -> (i32, i32) {
    %c0_i32 = arith.constant 0 : i32
    %c0_i32_0 = arith.constant 0 : i32
    %c0_i32_1 = arith.constant 0 : i32
    return %c0_i32, %c0_i32_0 : i32, i32
  }
  func.func @transform_3(%arg0: i32) -> (i32, i32) {
    %c0_i32 = arith.constant 0 : i32
    %c0_i32_0 = arith.constant 0 : i32
    return %arg0, %c0_i32 : i32, i32
  }
}

module attributes {stable_mosaic.version = 11 : i64} {
  func.func @_spectral_mix_kernel(%arg0: i32, %arg1: memref<6x2x240xf32, #tpu.memory_space<vmem>>, %arg2: memref<6x240x240xf32, #tpu.memory_space<vmem>>, %arg3: memref<6x2x240xf32, #tpu.memory_space<vmem>>) attributes {dimension_semantics = [#tpu.dimension_semantics<parallel>], iteration_bounds = array<i64: 2>, scalar_prefetch = 0 : i64, scratch_operands = 0 : i64, tpu.core_type = #tpu.core_type<tc>, window_params = [{transform_indices = @transform_0, window_bounds = array<i64: 6, 2, 240>}, {transform_indices = @transform_1, window_bounds = array<i64: 6, 240, 240>}, {transform_indices = @transform_2, window_bounds = array<i64: 6, 2, 240>}]} {
    %c0 = arith.constant 0 : index
    %c0_0 = arith.constant 0 : index
    %c0_1 = arith.constant 0 : index
    %0 = vector.load %arg1[%c0, %c0_0, %c0_1] : memref<6x2x240xf32, #tpu.memory_space<vmem>>, vector<6x2x240xf32>
    %c0_2 = arith.constant 0 : index
    %c0_3 = arith.constant 0 : index
    %c0_4 = arith.constant 0 : index
    %1 = vector.load %arg2[%c0_2, %c0_3, %c0_4] : memref<6x240x240xf32, #tpu.memory_space<vmem>>, vector<6x240x240xf32>
    "tpu.trace_start"() <{level = 10 : i32, message = "gbi,gio->gbo"}> : () -> ()
    %cst = arith.constant dense<0.000000e+00> : vector<6x2x240xf32>
    %2 = tpu.matmul %0, %1, %cst {dimension_numbers = #tpu.dot_dimension_numbers<[2], [1], [1], [2], [0, 0, 0, 1, 1, 2], [0], [0]>} : vector<6x2x240xf32>, vector<6x240x240xf32>, vector<6x2x240xf32> -> vector<6x2x240xf32>
    "tpu.trace_stop"() : () -> ()
    %c0_5 = arith.constant 0 : index
    %c0_6 = arith.constant 0 : index
    %c0_7 = arith.constant 0 : index
    %3 = vector.load %arg3[%c0_5, %c0_6, %c0_7] : memref<6x2x240xf32, #tpu.memory_space<vmem>>, vector<6x2x240xf32>
    tpu.vector_store %arg3[%c0_5, %c0_6, %c0_7], %2 {strides = array<i32>} : memref<6x2x240xf32, #tpu.memory_space<vmem>>, vector<6x2x240xf32>,
    return
  }
  func.func @transform_0(%arg0: i32) -> (i32, i32, i32) {
    %c0_i32 = arith.constant 0 : i32
    %c0_i32_0 = arith.constant 0 : i32
    %c0_i32_1 = arith.constant 0 : i32
    return %arg0, %c0_i32, %c0_i32_0 : i32, i32, i32
  }
  func.func @transform_1(%arg0: i32) -> (i32, i32, i32) {
    %c0_i32 = arith.constant 0 : i32
    %c0_i32_0 = arith.constant 0 : i32
    %c0_i32_1 = arith.constant 0 : i32
    return %arg0, %c0_i32, %c0_i32_0 : i32, i32, i32
  }
  func.func @transform_2(%arg0: i32) -> (i32, i32, i32) {
    %c0_i32 = arith.constant 0 : i32
    %c0_i32_0 = arith.constant 0 : i32
    %c0_i32_1 = arith.constant 0 : i32
    return %arg0, %c0_i32, %c0_i32_0 : i32, i32, i32
  }
}

module attributes {stable_mosaic.version = 11 : i64} {
  func.func @_pw_skip_relu_kernel(%arg0: i32, %arg1: memref<512x20xbf16, #tpu.memory_space<vmem>>, %arg2: memref<512x20xbf16, #tpu.memory_space<vmem>>, %arg3: memref<20x20xbf16, #tpu.memory_space<vmem>>, %arg4: memref<1x20xf32, #tpu.memory_space<vmem>>, %arg5: memref<512x20xbf16, #tpu.memory_space<vmem>>) attributes {dimension_semantics = [#tpu.dimension_semantics<parallel>], iteration_bounds = array<i64: 1>, scalar_prefetch = 0 : i64, scratch_operands = 0 : i64, tpu.core_type = #tpu.core_type<tc>, window_params = [{transform_indices = @transform_0, window_bounds = array<i64: 512, 20>}, {transform_indices = @transform_1, window_bounds = array<i64: 512, 20>}, {pipeline_mode = #tpu.pipeline_mode<synchronous>, transform_indices = @transform_2, window_bounds = array<i64: 20, 20>}, {pipeline_mode = #tpu.pipeline_mode<synchronous>, transform_indices = @transform_3, window_bounds = array<i64: 1, 20>}, {transform_indices = @transform_4, window_bounds = array<i64: 512, 20>}]} {
    %c0 = arith.constant 0 : index
    %c0_0 = arith.constant 0 : index
    %0 = vector.load %arg1[%c0, %c0_0] : memref<512x20xbf16, #tpu.memory_space<vmem>>, vector<512x20xbf16>
    %c0_1 = arith.constant 0 : index
    %c0_2 = arith.constant 0 : index
    %1 = vector.load %arg3[%c0_1, %c0_2] : memref<20x20xbf16, #tpu.memory_space<vmem>>, vector<20x20xbf16>
    %cst = arith.constant dense<0.000000e+00> : vector<512x20xf32>
    %2 = tpu.matmul %0, %1, %cst {dimension_numbers = #tpu.dot_dimension_numbers<[1], [0], [0], [1], [0, 0, 1, 1], [], []>} : vector<512x20xbf16>, vector<20x20xbf16>, vector<512x20xf32> -> vector<512x20xf32>
    %c0_3 = arith.constant 0 : index
    %c0_4 = arith.constant 0 : index
    %3 = vector.load %arg4[%c0_3, %c0_4] : memref<1x20xf32, #tpu.memory_space<vmem>>, vector<1x20xf32>
    %4 = vector.broadcast %3 : vector<1x20xf32> to vector<512x20xf32>
    %5 = arith.addf %2, %4 : vector<512x20xf32>
    %c0_5 = arith.constant 0 : index
    %c0_6 = arith.constant 0 : index
    %6 = vector.load %arg2[%c0_5, %c0_6] : memref<512x20xbf16, #tpu.memory_space<vmem>>, vector<512x20xbf16>
    %7 = arith.extf %6 : vector<512x20xbf16> to vector<512x20xf32>
    %8 = arith.addf %5, %7 : vector<512x20xf32>
    %cst_7 = arith.constant 0.000000e+00 : f32
    %9 = vector.broadcast %cst_7 : f32 to vector<512x20xf32>
    %10 = arith.maximumf %8, %9 : vector<512x20xf32>
    %11 = arith.truncf %10 : vector<512x20xf32> to vector<512x20xbf16>
    %c0_8 = arith.constant 0 : index
    %c0_9 = arith.constant 0 : index
    %12 = vector.load %arg5[%c0_8, %c0_9] : memref<512x20xbf16, #tpu.memory_space<vmem>>, vector<512x20xbf16>
    tpu.vector_store %arg5[%c0_8, %c0_9], %11 {strides = array<i32>} : memref<512x20xbf16, #tpu.memory_space<vmem>>, vector<512x20xbf16>,
    return
  }
  func.func @transform_0(%arg0: i32) -> (i32, i32) {
    %c0_i32 = arith.constant 0 : i32
    %c0_i32_0 = arith.constant 0 : i32
    return %arg0, %c0_i32 : i32, i32
  }
  func.func @transform_1(%arg0: i32) -> (i32, i32) {
    %c0_i32 = arith.constant 0 : i32
    %c0_i32_0 = arith.constant 0 : i32
    return %arg0, %c0_i32 : i32, i32
  }
  func.func @transform_2(%arg0: i32) -> (i32, i32) {
    %c0_i32 = arith.constant 0 : i32
    %c0_i32_0 = arith.constant 0 : i32
    %c0_i32_1 = arith.constant 0 : i32
    return %c0_i32, %c0_i32_0 : i32, i32
  }
  func.func @transform_3(%arg0: i32) -> (i32, i32) {
    %c0_i32 = arith.constant 0 : i32
    %c0_i32_0 = arith.constant 0 : i32
    %c0_i32_1 = arith.constant 0 : i32
    return %c0_i32, %c0_i32_0 : i32, i32
  }
  func.func @transform_4(%arg0: i32) -> (i32, i32) {
    %c0_i32 = arith.constant 0 : i32
    %c0_i32_0 = arith.constant 0 : i32
    return %arg0, %c0_i32 : i32, i32
  }
}

module attributes {stable_mosaic.version = 11 : i64} {
  func.func @_head_kernel(%arg0: i32, %arg1: memref<512x20xbf16, #tpu.memory_space<vmem>>, %arg2: memref<20x64xbf16, #tpu.memory_space<vmem>>, %arg3: memref<1x64xf32, #tpu.memory_space<vmem>>, %arg4: memref<64x1xf32, #tpu.memory_space<vmem>>, %arg5: memref<1x1xf32, #tpu.memory_space<vmem>>, %arg6: memref<512x1xf32, #tpu.memory_space<vmem>>) attributes {dimension_semantics = [#tpu.dimension_semantics<parallel>], iteration_bounds = array<i64: 1>, scalar_prefetch = 0 : i64, scratch_operands = 0 : i64, tpu.core_type = #tpu.core_type<tc>, window_params = [{transform_indices = @transform_0, window_bounds = array<i64: 512, 20>}, {pipeline_mode = #tpu.pipeline_mode<synchronous>, transform_indices = @transform_1, window_bounds = array<i64: 20, 64>}, {pipeline_mode = #tpu.pipeline_mode<synchronous>, transform_indices = @transform_2, window_bounds = array<i64: 1, 64>}, {pipeline_mode = #tpu.pipeline_mode<synchronous>, transform_indices = @transform_3, window_bounds = array<i64: 64, 1>}, {pipeline_mode = #tpu.pipeline_mode<synchronous>, transform_indices = @transform_4, window_bounds = array<i64: 1, 1>}, {transform_indices = @transform_5, window_bounds = array<i64: 512, 1>}]} {
    %c0 = arith.constant 0 : index
    %c0_0 = arith.constant 0 : index
    %0 = vector.load %arg1[%c0, %c0_0] : memref<512x20xbf16, #tpu.memory_space<vmem>>, vector<512x20xbf16>
    %c0_1 = arith.constant 0 : index
    %c0_2 = arith.constant 0 : index
    %1 = vector.load %arg2[%c0_1, %c0_2] : memref<20x64xbf16, #tpu.memory_space<vmem>>, vector<20x64xbf16>
    %cst = arith.constant dense<0.000000e+00> : vector<512x64xf32>
    %2 = tpu.matmul %0, %1, %cst {dimension_numbers = #tpu.dot_dimension_numbers<[1], [0], [0], [1], [0, 0, 1, 1], [], []>} : vector<512x20xbf16>, vector<20x64xbf16>, vector<512x64xf32> -> vector<512x64xf32>
    %c0_3 = arith.constant 0 : index
    %c0_4 = arith.constant 0 : index
    %3 = vector.load %arg3[%c0_3, %c0_4] : memref<1x64xf32, #tpu.memory_space<vmem>>, vector<1x64xf32>
    %4 = vector.broadcast %3 : vector<1x64xf32> to vector<512x64xf32>
    %5 = arith.addf %2, %4 : vector<512x64xf32>
    %cst_5 = arith.constant 0.000000e+00 : f32
    %6 = vector.broadcast %cst_5 : f32 to vector<512x64xf32>
    %7 = arith.maximumf %5, %6 : vector<512x64xf32>
    %c0_6 = arith.constant 0 : index
    %c0_7 = arith.constant 0 : index
    %8 = vector.load %arg4[%c0_6, %c0_7] : memref<64x1xf32, #tpu.memory_space<vmem>>, vector<64x1xf32>
    %cst_8 = arith.constant dense<0.000000e+00> : vector<512x1xf32>
    %9 = tpu.matmul %7, %8, %cst_8 {dimension_numbers = #tpu.dot_dimension_numbers<[1], [0], [0], [1], [0, 0, 1, 1], [], []>} : vector<512x64xf32>, vector<64x1xf32>, vector<512x1xf32> -> vector<512x1xf32>
    %c0_9 = arith.constant 0 : index
    %c0_10 = arith.constant 0 : index
    %10 = vector.load %arg5[%c0_9, %c0_10] : memref<1x1xf32, #tpu.memory_space<vmem>>, vector<1x1xf32>
    %11 = vector.broadcast %10 : vector<1x1xf32> to vector<512x1xf32>
    %12 = arith.addf %9, %11 : vector<512x1xf32>
    %c0_11 = arith.constant 0 : index
    %c0_12 = arith.constant 0 : index
    %13 = vector.load %arg6[%c0_11, %c0_12] : memref<512x1xf32, #tpu.memory_space<vmem>>, vector<512x1xf32>
    tpu.vector_store %arg6[%c0_11, %c0_12], %12 {strides = array<i32>} : memref<512x1xf32, #tpu.memory_space<vmem>>, vector<512x1xf32>,
    return
  }
  func.func @transform_0(%arg0: i32) -> (i32, i32) {
    %c0_i32 = arith.constant 0 : i32
    %c0_i32_0 = arith.constant 0 : i32
    return %arg0, %c0_i32 : i32, i32
  }
  func.func @transform_1(%arg0: i32) -> (i32, i32) {
    %c0_i32 = arith.constant 0 : i32
    %c0_i32_0 = arith.constant 0 : i32
    %c0_i32_1 = arith.constant 0 : i32
    return %c0_i32, %c0_i32_0 : i32, i32
  }
  func.func @transform_2(%arg0: i32) -> (i32, i32) {
    %c0_i32 = arith.constant 0 : i32
    %c0_i32_0 = arith.constant 0 : i32
    %c0_i32_1 = arith.constant 0 : i32
    return %c0_i32, %c0_i32_0 : i32, i32
  }
  func.func @transform_3(%arg0: i32) -> (i32, i32) {
    %c0_i32 = arith.constant 0 : i32
    %c0_i32_0 = arith.constant 0 : i32
    %c0_i32_1 = arith.constant 0 : i32
    return %c0_i32, %c0_i32_0 : i32, i32
  }
  func.func @transform_4(%arg0: i32) -> (i32, i32) {
    %c0_i32 = arith.constant 0 : i32
    %c0_i32_0 = arith.constant 0 : i32
    %c0_i32_1 = arith.constant 0 : i32
    return %c0_i32, %c0_i32_0 : i32, i32
  }
  func.func @transform_5(%arg0: i32) -> (i32, i32) {
    %c0_i32 = arith.constant 0 : i32
    %c0_i32_0 = arith.constant 0 : i32
    return %arg0, %c0_i32 : i32, i32
  }
}

</mosaic_0001>

<llo_original>
// kernel: fno2d_forward.10
$region0: #{fno2d_forward.10}
  #allocation0 [shape = 'u32[]', space=smem, size = 0x4, offset = 0x4, fixed_abs, tag = 'smem constant byte address 0x4 - core index']
  #allocation1 [shape = 'u32[144,128]{1,0:T(1,128)}', space=vmem, size = 0x12000, scoped, tag = 'internal scratch']
  %s0 = inlined_call_operand.vmem [shape: f32[512,3], index: 0, kind: input, shape index: {}]
  %s1 = inlined_call_operand.hbm [shape: f32[3,20], index: 1, kind: input, shape index: {}]
  %s2 = inlined_call_operand.hbm [shape: f32[1,20], index: 2, kind: input, shape index: {}]
  %s3 = inlined_call_operand.vmem [shape: bf16[512,20], index: 3, kind: output, shape index: {}]
  %s4 = sld [smem:[#allocation0]]
  $region30: #{fno2d_forward.10} parent=0
    _
  %s6 = ssub.s32 1, %s4
  %s7 = scalar_select 0, %s6, %s4
  $region1: #{fno2d_forward.10} parent=0
    #allocation2 [shape = 'u8[2048]{0}', space=vmem, size = 0x800, scoped, tag = 'input window, operand 1, single buffered']
    #allocation3 [shape = 's32[1]{0}', space=sflag, size = 0x4, scoped, tag = 'scoped memory for fno2d_forward.10']
    #allocation4 [shape = 'u8[512]{0}', space=vmem, size = 0x400, scoped, tag = 'input window, operand 2, single buffered']
    #allocation5 [shape = 's32[1]{0}', space=sflag, size = 0x4, scoped, tag = 'scoped memory for fno2d_forward.10']
    %8 = vsyncpa [#allocation3], 0
    %9 = vsyncpa [#allocation5], 0
    // Predicated region
    $region2: #{fno2d_forward.10} parent=1 // pred_check
      _
    $region3: #{fno2d_forward.10} parent=1 // pred_check_branch
      %11 = sbr.rel (0) target = $region5
    $region4: #{fno2d_forward.10} parent=1 // pred_region
      _
    $region5: #{fno2d_forward.10} parent=1 // pred_fallthru
      _
    // Predicated region
    $region6: #{fno2d_forward.10} parent=1 // pred_check
      _
    $region7: #{fno2d_forward.10} parent=1 // pred_check_branch
      %13 = sbr.rel (0) target = $region9
    $region8: #{fno2d_forward.10} parent=1 // pred_region
      %s15 = ssub.s32 64, 64
      %16 = vsyncadd [#allocation3], %s15
      %s18 = sshll.u32 [#allocation2], 4
      %s19 = int_to_ptr.vmem [resolvable:$true] %s18
      %21 = dma.hbm_to_vmem [thread:$0]  %s1, 64, %s19, [#allocation3]
    $region9: #{fno2d_forward.10} parent=1 // pred_fallthru
      _
    // Predicated region
    $region10: #{fno2d_forward.10} parent=1 // pred_check
      _
    $region11: #{fno2d_forward.10} parent=1 // pred_check_branch
      %23 = sbr.rel (0) target = $region13
    $region12: #{fno2d_forward.10} parent=1 // pred_region
      %s25 = ssub.s32 16, 16
      %26 = vsyncadd [#allocation5], %s25
      %s28 = sshll.u32 [#allocation4], 4
      %s29 = int_to_ptr.vmem [resolvable:$true] %s28
      %31 = dma.hbm_to_vmem [thread:$0]  %s2, 16, %s29, [#allocation5]
    $region13: #{fno2d_forward.10} parent=1 // pred_fallthru
      _
    // Predicated region
    $region14: #{fno2d_forward.10} parent=1 // pred_check
      _
    $region15: #{fno2d_forward.10} parent=1 // pred_check_branch
      %33 = sbr.rel (0) target = $region17
    $region16: #{fno2d_forward.10} parent=1 // pred_region
      %34 = dma.done [#allocation3], 64
    $region17: #{fno2d_forward.10} parent=1 // pred_fallthru
      _
    // Predicated region
    $region18: #{fno2d_forward.10} parent=1 // pred_check
      _
    $region19: #{fno2d_forward.10} parent=1 // pred_check_branch
      %36 = sbr.rel (0) target = $region21
    $region20: #{fno2d_forward.10} parent=1 // pred_region
      %37 = dma.done [#allocation5], 16
    $region21: #{fno2d_forward.10} parent=1 // pred_fallthru
      _
    %v38 = vld [vmem:[%s0] sm:$0xff]
    %v39 = vld [vmem:[%s0 + $0x8] sm:$0xff]
    %v40 = vld [vmem:[%s0 + $0x10] sm:$0xff]
    %v41 = vld [vmem:[%s0 + $0x18] sm:$0xff]
    %v42 = vld [vmem:[%s0 + $0x20] sm:$0xff]
    %v43 = vld [vmem:[%s0 + $0x28] sm:$0xff]
    %v44 = vld [vmem:[%s0 + $0x30] sm:$0xff]
    %v45 = vld [vmem:[%s0 + $0x38] sm:$0xff]
    %v46 = vld [vmem:[%s0 + $0x40] sm:$0xff]
    %v47 = vld [vmem:[%s0 + $0x48] sm:$0xff]
    %v48 = vld [vmem:[%s0 + $0x50] sm:$0xff]
    %v49 = vld [vmem:[%s0 + $0x58] sm:$0xff]
    %v50 = vld [vmem:[%s0 + $0x60] sm:$0xff]
    %v51 = vld [vmem:[%s0 + $0x68] sm:$0xff]
    %v52 = vld [vmem:[%s0 + $0x70] sm:$0xff]
    %v53 = vld [vmem:[%s0 + $0x78] sm:$0xff]
    %v54 = vld [vmem:[%s0 + $0x80] sm:$0xff]
    %v55 = vld [vmem:[%s0 + $0x88] sm:$0xff]
    %v56 = vld [vmem:[%s0 + $0x90] sm:$0xff]
    %v57 = vld [vmem:[%s0 + $0x98] sm:$0xff]
    %v58 = vld [vmem:[%s0 + $0xa0] sm:$0xff]
    %v59 = vld [vmem:[%s0 + $0xa8] sm:$0xff]
    %v60 = vld [vmem:[%s0 + $0xb0] sm:$0xff]
    %v61 = vld [vmem:[%s0 + $0xb8] sm:$0xff]
    %v62 = vld [vmem:[%s0 + $0xc0] sm:$0xff]
    %v63 = vld [vmem:[%s0 + $0xc8] sm:$0xff]
    %v64 = vld [vmem:[%s0 + $0xd0] sm:$0xff]
    %v65 = vld [vmem:[%s0 + $0xd8] sm:$0xff]
    %v66 = vld [vmem:[%s0 + $0xe0] sm:$0xff]
    %v67 = vld [vmem:[%s0 + $0xe8] sm:$0xff]
    %v68 = vld [vmem:[%s0 + $0xf0] sm:$0xff]
    %v69 = vld [vmem:[%s0 + $0xf8] sm:$0xff]
    %v70 = vld [vmem:[%s0 + $0x100] sm:$0xff]
    %v71 = vld [vmem:[%s0 + $0x108] sm:$0xff]
    %v72 = vld [vmem:[%s0 + $0x110] sm:$0xff]
    %v73 = vld [vmem:[%s0 + $0x118] sm:$0xff]
    %v74 = vld [vmem:[%s0 + $0x120] sm:$0xff]
    %v75 = vld [vmem:[%s0 + $0x128] sm:$0xff]
    %v76 = vld [vmem:[%s0 + $0x130] sm:$0xff]
    %v77 = vld [vmem:[%s0 + $0x138] sm:$0xff]
    %v78 = vld [vmem:[%s0 + $0x140] sm:$0xff]
    %v79 = vld [vmem:[%s0 + $0x148] sm:$0xff]
    %v80 = vld [vmem:[%s0 + $0x150] sm:$0xff]
    %v81 = vld [vmem:[%s0 + $0x158] sm:$0xff]
    %v82 = vld [vmem:[%s0 + $0x160] sm:$0xff]
    %v83 = vld [vmem:[%s0 + $0x168] sm:$0xff]
    %v84 = vld [vmem:[%s0 + $0x170] sm:$0xff]
    %v85 = vld [vmem:[%s0 + $0x178] sm:$0xff]
    %v86 = vld [vmem:[%s0 + $0x180] sm:$0xff]
    %v87 = vld [vmem:[%s0 + $0x188] sm:$0xff]
    %v88 = vld [vmem:[%s0 + $0x190] sm:$0xff]
    %v89 = vld [vmem:[%s0 + $0x198] sm:$0xff]
    %v90 = vld [vmem:[%s0 + $0x1a0] sm:$0xff]
    %v91 = vld [vmem:[%s0 + $0x1a8] sm:$0xff]
    %v92 = vld [vmem:[%s0 + $0x1b0] sm:$0xff]
    %v93 = vld [vmem:[%s0 + $0x1b8] sm:$0xff]
    %v94 = vld [vmem:[%s0 + $0x1c0] sm:$0xff]
    %v95 = vld [vmem:[%s0 + $0x1c8] sm:$0xff]
    %v96 = vld [vmem:[%s0 + $0x1d0] sm:$0xff]
    %v97 = vld [vmem:[%s0 + $0x1d8] sm:$0xff]
    %v98 = vld [vmem:[%s0 + $0x1e0] sm:$0xff]
    %v99 = vld [vmem:[%s0 + $0x1e8] sm:$0xff]
    %v100 = vld [vmem:[%s0 + $0x1f0] sm:$0xff]
    %v101 = vld [vmem:[%s0 + $0x1f8] sm:$0xff]
    %v102 = vld [vmem:[#allocation2] sm:$0x7]
    %v103 = vld [vmem:[#allocation4] sm:$0x1]
    %v105 = vlaneseq
    %v106 = vshrl.u32 %v105, 7
    %v107 = vsub.s32 0, %v106
    %v108 = vrot.slane %v103, %v107
    %vm110 = vcmask 23552
    %v112 = vsel %vm110, %v38, 0
    %v115 = vsel %vm110, %v39, 0
    %v118 = vsel %vm110, %v40, 0
    %v121 = vsel %vm110, %v41, 0
    %v124 = vsel %vm110, %v42, 0
    %v127 = vsel %vm110, %v43, 0
    %v130 = vsel %vm110, %v44, 0
    %v133 = vsel %vm110, %v45, 0
    %v136 = vsel %vm110, %v46, 0
    %v139 = vsel %vm110, %v47, 0
    %v142 = vsel %vm110, %v48, 0
    %v145 = vsel %vm110, %v49, 0
    %v148 = vsel %vm110, %v50, 0
    %v151 = vsel %vm110, %v51, 0
    %v154 = vsel %vm110, %v52, 0
    %v157 = vsel %vm110, %v53, 0
    %v160 = vsel %vm110, %v54, 0
    %v163 = vsel %vm110, %v55, 0
    %v166 = vsel %vm110, %v56, 0
    %v169 = vsel %vm110, %v57, 0
    %v172 = vsel %vm110, %v58, 0
    %v175 = vsel %vm110, %v59, 0
    %v178 = vsel %vm110, %v60, 0
    %v181 = vsel %vm110, %v61, 0
    %v184 = vsel %vm110, %v62, 0
    %v187 = vsel %vm110, %v63, 0
    %v190 = vsel %vm110, %v64, 0
    %v193 = vsel %vm110, %v65, 0
    %v196 = vsel %vm110, %v66, 0
    %v199 = vsel %vm110, %v67, 0
    %v202 = vsel %vm110, %v68, 0
    %v205 = vsel %vm110, %v69, 0
    %v208 = vsel %vm110, %v70, 0
    %v211 = vsel %vm110, %v71, 0
    %v214 = vsel %vm110, %v72, 0
    %v217 = vsel %vm110, %v73, 0
    %v220 = vsel %vm110, %v74, 0
    %v223 = vsel %vm110, %v75, 0
    %v226 = vsel %vm110, %v76, 0
    %v229 = vsel %vm110, %v77, 0
    %v232 = vsel %vm110, %v78, 0
    %v235 = vsel %vm110, %v79, 0
    %v238 = vsel %vm110, %v80, 0
    %v241 = vsel %vm110, %v81, 0
    %v244 = vsel %vm110, %v82, 0
    %v247 = vsel %vm110, %v83, 0
    %v250 = vsel %vm110, %v84, 0
    %v253 = vsel %vm110, %v85, 0
    %v256 = vsel %vm110, %v86, 0
    %v259 = vsel %vm110, %v87, 0
    %v262 = vsel %vm110, %v88, 0
    %v265 = vsel %vm110, %v89, 0
    %v268 = vsel %vm110, %v90, 0
    %v271 = vsel %vm110, %v91, 0
    %v274 = vsel %vm110, %v92, 0
    %v277 = vsel %vm110, %v93, 0
    %v280 = vsel %vm110, %v94, 0
    %v283 = vsel %vm110, %v95, 0
    %v286 = vsel %vm110, %v96, 0
    %v289 = vsel %vm110, %v97, 0
    %v292 = vsel %vm110, %v98, 0
    %v295 = vsel %vm110, %v99, 0
    %v298 = vsel %vm110, %v100, 0
    %v301 = vsel %vm110, %v101, 0
    %vm303 = vcmask 1042432
    %v305 = vsel %vm303, %v102, 0
    %307 = vmatprep.subr.mxu0 0.0
    %308 = vmatpush1.msra.mxu0 0.0
    %309 = vmatprep.subr.mxu0 0.0
    %310 = vmatpush1.msra.mxu0 0.0
    %311 = vmatprep.subr.mxu0 0.0
    %312 = vmatpush1.msra.mxu0 0.0
    %313 = vmatprep.subr.mxu0 0.0
    %314 = vmatpush1.msra.mxu0 0.0
    %315 = vmatprep.subr.mxu0 0.0
    %316 = vmatpush1.msra.mxu0 0.0
    %317 = vmatprep.subr.mxu0 0.0
    %318 = vmatpush1.msra.mxu0 0.0
    %319 = vmatprep.subr.mxu0 0.0
    %320 = vmatpush1.msra.mxu0 0.0
    %321 = vmatprep.subr.mxu0 0.0
    %322 = vmatpush1.msra.mxu0 0.0
    %323 = vmatprep.subr.mxu0 0.0
    %324 = vmatpush1.msra.mxu0 0.0
    %325 = vmatprep.subr.mxu0 0.0
    %326 = vmatpush1.msra.mxu0 0.0
    %327 = vmatprep.subr.mxu0 0.0
    %328 = vmatpush1.msra.mxu0 0.0
    %329 = vmatprep.subr.mxu0 0.0
    %330 = vmatpush1.msra.mxu0 0.0
    %331 = vmatprep.subr.mxu0 0.0
    %332 = vmatpush1.msra.mxu0 0.0
    %333 = vmatprep.subr.mxu0 0.0
    %334 = vmatpush1.msra.mxu0 0.0
    %335 = vmatprep.subr.mxu0 0.0
    %336 = vmatpush1.msra.mxu0 0.0
    %337 = vmatprep.subr.mxu0 0.0
    %338 = vmatpush1.msra.mxu0 %v305
    %339 = vmatprep.subr.mxu0 0.0
    %340 = vmatpush2.msra.mxu0 0.0
    %341 = vmatprep.subr.mxu0 0.0
    %342 = vmatpush2.msra.mxu0 0.0
    %343 = vmatprep.subr.mxu0 0.0
    %344 = vmatpush2.msra.mxu0 0.0
    %345 = vmatprep.subr.mxu0 0.0
    %346 = vmatpush2.msra.mxu0 0.0
    %347 = vmatprep.subr.mxu0 0.0
    %348 = vmatpush2.msra.mxu0 0.0
    %349 = vmatprep.subr.mxu0 0.0
    %350 = vmatpush2.msra.mxu0 0.0
    %351 = vmatprep.subr.mxu0 0.0
    %352 = vmatpush2.msra.mxu0 0.0
    %353 = vmatprep.subr.mxu0 0.0
    %354 = vmatpush2.msra.mxu0 0.0
    %355 = vmatprep.subr.mxu0 0.0
    %356 = vmatpush2.msra.mxu0 0.0
    %357 = vmatprep.subr.mxu0 0.0
    %358 = vmatpush2.msra.mxu0 0.0
    %359 = vmatprep.subr.mxu0 0.0
    %360 = vmatpush2.msra.mxu0 0.0
    %361 = vmatprep.subr.mxu0 0.0
    %362 = vmatpush2.msra.mxu0 0.0
    %363 = vmatprep.subr.mxu0 0.0
    %364 = vmatpush2.msra.mxu0 0.0
    %365 = vmatprep.subr.mxu0 0.0
    %366 = vmatpush2.msra.mxu0 0.0
    %367 = vmatprep.subr.mxu0 0.0
    %368 = vmatpush2.msra.mxu0 0.0
    %369 = vmatprep.subr.mxu0 0.0
    %370 = vmatpush2.msra.mxu0 0.0
    %371 = vmatprep.mubr.f32.mxu0 0.0
    %372 = vmatmul.mubr.f32.gmra.mxu0 %v112
    %v373 = vpop.f32.mrf.mxu0
    %v374 = vadd.f32 %v108, %v373
    %v375 = vpop.f32.mrf.mxu0
    %376 = vmatprep.mubr.f32.mxu0 0.0
    %377 = vmatmul.mubr.f32.gmra.mxu0 %v115
    %v378 = vpop.f32.mrf.mxu0
    %v379 = vadd.f32 %v108, %v378
    %v380 = vpop.f32.mrf.mxu0
    %381 = vmatprep.mubr.f32.mxu0 0.0
    %382 = vmatmul.mubr.f32.gmra.mxu0 %v118
    %v383 = vpop.f32.mrf.mxu0
    %v384 = vadd.f32 %v108, %v383
    %v385 = vpop.f32.mrf.mxu0
    %386 = vmatprep.mubr.f32.mxu0 0.0
    %387 = vmatmul.mubr.f32.gmra.mxu0 %v121
    %v388 = vpop.f32.mrf.mxu0
    %v389 = vadd.f32 %v108, %v388
    %v390 = vpop.f32.mrf.mxu0
    %391 = vmatprep.mubr.f32.mxu0 0.0
    %392 = vmatmul.mubr.f32.gmra.mxu0 %v124
    %v393 = vpop.f32.mrf.mxu0
    %v394 = vadd.f32 %v108, %v393
    %v395 = vpop.f32.mrf.mxu0
    %396 = vmatprep.mubr.f32.mxu0 0.0
    %397 = vmatmul.mubr.f32.gmra.mxu0 %v127
    %v398 = vpop.f32.mrf.mxu0
    %v399 = vadd.f32 %v108, %v398
    %v400 = vpop.f32.mrf.mxu0
    %401 = vmatprep.mubr.f32.mxu0 0.0
    %402 = vmatmul.mubr.f32.gmra.mxu0 %v130
    %v403 = vpop.f32.mrf.mxu0
    %v404 = vadd.f32 %v108, %v403
    %v405 = vpop.f32.mrf.mxu0
    %406 = vmatprep.mubr.f32.mxu0 0.0
    %407 = vmatmul.mubr.f32.gmra.mxu0 %v133
    %v408 = vpop.f32.mrf.mxu0
    %v409 = vadd.f32 %v108, %v408
    %v410 = vpop.f32.mrf.mxu0
    %411 = vmatprep.mubr.f32.mxu0 0.0
    %412 = vmatmul.mubr.f32.gmra.mxu0 %v136
    %v413 = vpop.f32.mrf.mxu0
    %v414 = vadd.f32 %v108, %v413
    %v415 = vpop.f32.mrf.mxu0
    %416 = vmatprep.mubr.f32.mxu0 0.0
    %417 = vmatmul.mubr.f32.gmra.mxu0 %v139
    %v418 = vpop.f32.mrf.mxu0
    %v419 = vadd.f32 %v108, %v418
    %v420 = vpop.f32.mrf.mxu0
    %421 = vmatprep.mubr.f32.mxu0 0.0
    %422 = vmatmul.mubr.f32.gmra.mxu0 %v142
    %v423 = vpop.f32.mrf.mxu0
    %v424 = vadd.f32 %v108, %v423
    %v425 = vpop.f32.mrf.mxu0
    %426 = vmatprep.mubr.f32.mxu0 0.0
    %427 = vmatmul.mubr.f32.gmra.mxu0 %v145
    %v428 = vpop.f32.mrf.mxu0
    %v429 = vadd.f32 %v108, %v428
    %v430 = vpop.f32.mrf.mxu0
    %431 = vmatprep.mubr.f32.mxu0 0.0
    %432 = vmatmul.mubr.f32.gmra.mxu0 %v148
    %v433 = vpop.f32.mrf.mxu0
    %v434 = vadd.f32 %v108, %v433
    %v435 = vpop.f32.mrf.mxu0
    %436 = vmatprep.mubr.f32.mxu0 0.0
    %437 = vmatmul.mubr.f32.gmra.mxu0 %v151
    %v438 = vpop.f32.mrf.mxu0
    %v439 = vadd.f32 %v108, %v438
    %v440 = vpop.f32.mrf.mxu0
    %441 = vmatprep.mubr.f32.mxu0 0.0
    %442 = vmatmul.mubr.f32.gmra.mxu0 %v154
    %v443 = vpop.f32.mrf.mxu0
    %v444 = vadd.f32 %v108, %v443
    %v445 = vpop.f32.mrf.mxu0
    %446 = vmatprep.mubr.f32.mxu0 0.0
    %447 = vmatmul.mubr.f32.gmra.mxu0 %v157
    %v448 = vpop.f32.mrf.mxu0
    %v449 = vadd.f32 %v108, %v448
    %v450 = vpop.f32.mrf.mxu0
    %451 = vmatprep.mubr.f32.mxu0 0.0
    %452 = vmatmul.mubr.f32.gmra.mxu0 %v160
    %v453 = vpop.f32.mrf.mxu0
    %v454 = vadd.f32 %v108, %v453
    %v455 = vpop.f32.mrf.mxu0
    %456 = vmatprep.mubr.f32.mxu0 0.0
    %457 = vmatmul.mubr.f32.gmra.mxu0 %v163
    %v458 = vpop.f32.mrf.mxu0
    %v459 = vadd.f32 %v108, %v458
    %v460 = vpop.f32.mrf.mxu0
    %461 = vmatprep.mubr.f32.mxu0 0.0
    %462 = vmatmul.mubr.f32.gmra.mxu0 %v166
    %v463 = vpop.f32.mrf.mxu0
    %v464 = vadd.f32 %v108, %v463
    %v465 = vpop.f32.mrf.mxu0
    %466 = vmatprep.mubr.f32.mxu0 0.0
    %467 = vmatmul.mubr.f32.gmra.mxu0 %v169
    %v468 = vpop.f32.mrf.mxu0
    %v469 = vadd.f32 %v108, %v468
    %v470 = vpop.f32.mrf.mxu0
    %471 = vmatprep.mubr.f32.mxu0 0.0
    %472 = vmatmul.mubr.f32.gmra.mxu0 %v172
    %v473 = vpop.f32.mrf.mxu0
    %v474 = vadd.f32 %v108, %v473
    %v475 = vpop.f32.mrf.mxu0
    %476 = vmatprep.mubr.f32.mxu0 0.0
    %477 = vmatmul.mubr.f32.gmra.mxu0 %v175
    %v478 = vpop.f32.mrf.mxu0
    %v479 = vadd.f32 %v108, %v478
    %v480 = vpop.f32.mrf.mxu0
    %481 = vmatprep.mubr.f32.mxu0 0.0
    %482 = vmatmul.mubr.f32.gmra.mxu0 %v178
    %v483 = vpop.f32.mrf.mxu0
    %v484 = vadd.f32 %v108, %v483
    %v485 = vpop.f32.mrf.mxu0
    %486 = vmatprep.mubr.f32.mxu0 0.0
    %487 = vmatmul.mubr.f32.gmra.mxu0 %v181
    %v488 = vpop.f32.mrf.mxu0
    %v489 = vadd.f32 %v108, %v488
    %v490 = vpop.f32.mrf.mxu0
    %491 = vmatprep.mubr.f32.mxu0 0.0
    %492 = vmatmul.mubr.f32.gmra.mxu0 %v184
    %v493 = vpop.f32.mrf.mxu0
    %v494 = vadd.f32 %v108, %v493
    %v495 = vpop.f32.mrf.mxu0
    %496 = vmatprep.mubr.f32.mxu0 0.0
    %497 = vmatmul.mubr.f32.gmra.mxu0 %v187
    %v498 = vpop.f32.mrf.mxu0
    %v499 = vadd.f32 %v108, %v498
    %v500 = vpop.f32.mrf.mxu0
    %501 = vmatprep.mubr.f32.mxu0 0.0
    %502 = vmatmul.mubr.f32.gmra.mxu0 %v190
    %v503 = vpop.f32.mrf.mxu0
    %v504 = vadd.f32 %v108, %v503
    %v505 = vpop.f32.mrf.mxu0
    %506 = vmatprep.mubr.f32.mxu0 0.0
    %507 = vmatmul.mubr.f32.gmra.mxu0 %v193
    %v508 = vpop.f32.mrf.mxu0
    %v509 = vadd.f32 %v108, %v508
    %v510 = vpop.f32.mrf.mxu0
    %511 = vmatprep.mubr.f32.mxu0 0.0
    %512 = vmatmul.mubr.f32.gmra.mxu0 %v196
    %v513 = vpop.f32.mrf.mxu0
    %v514 = vadd.f32 %v108, %v513
    %v515 = vpop.f32.mrf.mxu0
    %516 = vmatprep.mubr.f32.mxu0 0.0
    %517 = vmatmul.mubr.f32.gmra.mxu0 %v199
    %v518 = vpop.f32.mrf.mxu0
    %v519 = vadd.f32 %v108, %v518
    %v520 = vpop.f32.mrf.mxu0
    %521 = vmatprep.mubr.f32.mxu0 0.0
    %522 = vmatmul.mubr.f32.gmra.mxu0 %v202
    %v523 = vpop.f32.mrf.mxu0
    %v524 = vadd.f32 %v108, %v523
    %v525 = vpop.f32.mrf.mxu0
    %526 = vmatprep.mubr.f32.mxu0 0.0
    %527 = vmatmul.mubr.f32.gmra.mxu0 %v205
    %v528 = vpop.f32.mrf.mxu0
    %v529 = vadd.f32 %v108, %v528
    %v530 = vpop.f32.mrf.mxu0
    %531 = vmatprep.mubr.f32.mxu0 0.0
    %532 = vmatmul.mubr.f32.gmra.mxu0 %v208
    %v533 = vpop.f32.mrf.mxu0
    %v534 = vadd.f32 %v108, %v533
    %v535 = vpop.f32.mrf.mxu0
    %536 = vmatprep.mubr.f32.mxu0 0.0
    %537 = vmatmul.mubr.f32.gmra.mxu0 %v211
    %v538 = vpop.f32.mrf.mxu0
    %v539 = vadd.f32 %v108, %v538
    %v540 = vpop.f32.mrf.mxu0
    %541 = vmatprep.mubr.f32.mxu0 0.0
    %542 = vmatmul.mubr.f32.gmra.mxu0 %v214
    %v543 = vpop.f32.mrf.mxu0
    %v544 = vadd.f32 %v108, %v543
    %v545 = vpop.f32.mrf.mxu0
    %546 = vmatprep.mubr.f32.mxu0 0.0
    %547 = vmatmul.mubr.f32.gmra.mxu0 %v217
    %v548 = vpop.f32.mrf.mxu0
    %v549 = vadd.f32 %v108, %v548
    %v550 = vpop.f32.mrf.mxu0
    %551 = vmatprep.mubr.f32.mxu0 0.0
    %552 = vmatmul.mubr.f32.gmra.mxu0 %v220
    %v553 = vpop.f32.mrf.mxu0
    %v554 = vadd.f32 %v108, %v553
    %v555 = vpop.f32.mrf.mxu0
    %556 = vmatprep.mubr.f32.mxu0 0.0
    %557 = vmatmul.mubr.f32.gmra.mxu0 %v223
    %v558 = vpop.f32.mrf.mxu0
    %v559 = vadd.f32 %v108, %v558
    %v560 = vpop.f32.mrf.mxu0
    %561 = vmatprep.mubr.f32.mxu0 0.0
    %562 = vmatmul.mubr.f32.gmra.mxu0 %v226
    %v563 = vpop.f32.mrf.mxu0
    %v564 = vadd.f32 %v108, %v563
    %v565 = vpop.f32.mrf.mxu0
    %566 = vmatprep.mubr.f32.mxu0 0.0
    %567 = vmatmul.mubr.f32.gmra.mxu0 %v229
    %v568 = vpop.f32.mrf.mxu0
    %v569 = vadd.f32 %v108, %v568
    %v570 = vpop.f32.mrf.mxu0
    %571 = vmatprep.mubr.f32.mxu0 0.0
    %572 = vmatmul.mubr.f32.gmra.mxu0 %v232
    %v573 = vpop.f32.mrf.mxu0
    %v574 = vadd.f32 %v108, %v573
    %v575 = vpop.f32.mrf.mxu0
    %576 = vmatprep.mubr.f32.mxu0 0.0
    %577 = vmatmul.mubr.f32.gmra.mxu0 %v235
    %v578 = vpop.f32.mrf.mxu0
    %v579 = vadd.f32 %v108, %v578
    %v580 = vpop.f32.mrf.mxu0
    %581 = vmatprep.mubr.f32.mxu0 0.0
    %582 = vmatmul.mubr.f32.gmra.mxu0 %v238
    %v583 = vpop.f32.mrf.mxu0
    %v584 = vadd.f32 %v108, %v583
    %v585 = vpop.f32.mrf.mxu0
    %586 = vmatprep.mubr.f32.mxu0 0.0
    %587 = vmatmul.mubr.f32.gmra.mxu0 %v241
    %v588 = vpop.f32.mrf.mxu0
    %v589 = vadd.f32 %v108, %v588
    %v590 = vpop.f32.mrf.mxu0
    %591 = vmatprep.mubr.f32.mxu0 0.0
    %592 = vmatmul.mubr.f32.gmra.mxu0 %v244
    %v593 = vpop.f32.mrf.mxu0
    %v594 = vadd.f32 %v108, %v593
    %v595 = vpop.f32.mrf.mxu0
    %596 = vmatprep.mubr.f32.mxu0 0.0
    %597 = vmatmul.mubr.f32.gmra.mxu0 %v247
    %v598 = vpop.f32.mrf.mxu0
    %v599 = vadd.f32 %v108, %v598
    %v600 = vpop.f32.mrf.mxu0
    %601 = vmatprep.mubr.f32.mxu0 0.0
    %602 = vmatmul.mubr.f32.gmra.mxu0 %v250
    %v603 = vpop.f32.mrf.mxu0
    %v604 = vadd.f32 %v108, %v603
    %v605 = vpop.f32.mrf.mxu0
    %606 = vmatprep.mubr.f32.mxu0 0.0
    %607 = vmatmul.mubr.f32.gmra.mxu0 %v253
    %v608 = vpop.f32.mrf.mxu0
    %v609 = vadd.f32 %v108, %v608
    %v610 = vpop.f32.mrf.mxu0
    %611 = vmatprep.mubr.f32.mxu0 0.0
    %612 = vmatmul.mubr.f32.gmra.mxu0 %v256
    %v613 = vpop.f32.mrf.mxu0
    %v614 = vadd.f32 %v108, %v613
    %v615 = vpop.f32.mrf.mxu0
    %616 = vmatprep.mubr.f32.mxu0 0.0
    %617 = vmatmul.mubr.f32.gmra.mxu0 %v259
    %v618 = vpop.f32.mrf.mxu0
    %v619 = vadd.f32 %v108, %v618
    %v620 = vpop.f32.mrf.mxu0
    %621 = vmatprep.mubr.f32.mxu0 0.0
    %622 = vmatmul.mubr.f32.gmra.mxu0 %v262
    %v623 = vpop.f32.mrf.mxu0
    %v624 = vadd.f32 %v108, %v623
    %v625 = vpop.f32.mrf.mxu0
    %626 = vmatprep.mubr.f32.mxu0 0.0
    %627 = vmatmul.mubr.f32.gmra.mxu0 %v265
    %v628 = vpop.f32.mrf.mxu0
    %v629 = vadd.f32 %v108, %v628
    %v630 = vpop.f32.mrf.mxu0
    %631 = vmatprep.mubr.f32.mxu0 0.0
    %632 = vmatmul.mubr.f32.gmra.mxu0 %v268
    %v633 = vpop.f32.mrf.mxu0
    %v634 = vadd.f32 %v108, %v633
    %v635 = vpop.f32.mrf.mxu0
    %636 = vmatprep.mubr.f32.mxu0 0.0
    %637 = vmatmul.mubr.f32.gmra.mxu0 %v271
    %v638 = vpop.f32.mrf.mxu0
    %v639 = vadd.f32 %v108, %v638
    %v640 = vpop.f32.mrf.mxu0
    %641 = vmatprep.mubr.f32.mxu0 0.0
    %642 = vmatmul.mubr.f32.gmra.mxu0 %v274
    %v643 = vpop.f32.mrf.mxu0
    %v644 = vadd.f32 %v108, %v643
    %v645 = vpop.f32.mrf.mxu0
    %646 = vmatprep.mubr.f32.mxu0 0.0
    %647 = vmatmul.mubr.f32.gmra.mxu0 %v277
    %v648 = vpop.f32.mrf.mxu0
    %v649 = vadd.f32 %v108, %v648
    %v650 = vpop.f32.mrf.mxu0
    %651 = vmatprep.mubr.f32.mxu0 0.0
    %652 = vmatmul.mubr.f32.gmra.mxu0 %v280
    %v653 = vpop.f32.mrf.mxu0
    %v654 = vadd.f32 %v108, %v653
    %v655 = vpop.f32.mrf.mxu0
    %656 = vmatprep.mubr.f32.mxu0 0.0
    %657 = vmatmul.mubr.f32.gmra.mxu0 %v283
    %v658 = vpop.f32.mrf.mxu0
    %v659 = vadd.f32 %v108, %v658
    %v660 = vpop.f32.mrf.mxu0
    %661 = vmatprep.mubr.f32.mxu0 0.0
    %662 = vmatmul.mubr.f32.gmra.mxu0 %v286
    %v663 = vpop.f32.mrf.mxu0
    %v664 = vadd.f32 %v108, %v663
    %v665 = vpop.f32.mrf.mxu0
    %666 = vmatprep.mubr.f32.mxu0 0.0
    %667 = vmatmul.mubr.f32.gmra.mxu0 %v289
    %v668 = vpop.f32.mrf.mxu0
    %v669 = vadd.f32 %v108, %v668
    %v670 = vpop.f32.mrf.mxu0
    %671 = vmatprep.mubr.f32.mxu0 0.0
    %672 = vmatmul.mubr.f32.gmra.mxu0 %v292
    %v673 = vpop.f32.mrf.mxu0
    %v674 = vadd.f32 %v108, %v673
    %v675 = vpop.f32.mrf.mxu0
    %676 = vmatprep.mubr.f32.mxu0 0.0
    %677 = vmatmul.mubr.f32.gmra.mxu0 %v295
    %v678 = vpop.f32.mrf.mxu0
    %v679 = vadd.f32 %v108, %v678
    %v680 = vpop.f32.mrf.mxu0
    %681 = vmatprep.mubr.f32.mxu0 0.0
    %682 = vmatmul.mubr.f32.gmra.mxu0 %v298
    %v683 = vpop.f32.mrf.mxu0
    %v684 = vadd.f32 %v108, %v683
    %v685 = vpop.f32.mrf.mxu0
    %686 = vmatprep.mubr.f32.mxu0 0.0
    %687 = vmatmul.mubr.f32.gmra.mxu0 %v301
    %v688 = vpop.f32.mrf.mxu0
    %v689 = vadd.f32 %v108, %v688
    %v690 = vpop.f32.mrf.mxu0
    %691 = vdwg.mxu0
    %v692 = vpack.c.bf16 %v379, %v374
    %v693 = vpack.c.bf16 %v389, %v384
    %v694 = vpack.c.bf16 %v399, %v394
    %v695 = vpack.c.bf16 %v409, %v404
    %v696 = vpack.c.bf16 %v419, %v414
    %v697 = vpack.c.bf16 %v429, %v424
    %v698 = vpack.c.bf16 %v439, %v434
    %v699 = vpack.c.bf16 %v449, %v444
    %v700 = vpack.c.bf16 %v459, %v454
    %v701 = vpack.c.bf16 %v469, %v464
    %v702 = vpack.c.bf16 %v479, %v474
    %v703 = vpack.c.bf16 %v489, %v484
    %v704 = vpack.c.bf16 %v499, %v494
    %v705 = vpack.c.bf16 %v509, %v504
    %v706 = vpack.c.bf16 %v519, %v514
    %v707 = vpack.c.bf16 %v529, %v524
    %v708 = vpack.c.bf16 %v539, %v534
    %v709 = vpack.c.bf16 %v549, %v544
    %v710 = vpack.c.bf16 %v559, %v554
    %v711 = vpack.c.bf16 %v569, %v564
    %v712 = vpack.c.bf16 %v579, %v574
    %v713 = vpack.c.bf16 %v589, %v584
    %v714 = vpack.c.bf16 %v599, %v594
    %v715 = vpack.c.bf16 %v609, %v604
    %v716 = vpack.c.bf16 %v619, %v614
    %v717 = vpack.c.bf16 %v629, %v624
    %v718 = vpack.c.bf16 %v639, %v634
    %v719 = vpack.c.bf16 %v649, %v644
    %v720 = vpack.c.bf16 %v659, %v654
    %v721 = vpack.c.bf16 %v669, %v664
    %v722 = vpack.c.bf16 %v679, %v674
    %v723 = vpack.c.bf16 %v689, %v684
    %v756 = vunpack.c.l.b16 %v692
    %v757 = vunpack.c.h.b16 %v692
    %v758 = vunpack.c.l.b16 %v693
    %v759 = vunpack.c.h.b16 %v693
    %v760 = vunpack.c.l.b16 %v694
    %v761 = vunpack.c.h.b16 %v694
    %v762 = vunpack.c.l.b16 %v695
    %v763 = vunpack.c.h.b16 %v695
    %v764 = vunpack.c.l.b16 %v696
    %v765 = vunpack.c.h.b16 %v696
    %v766 = vunpack.c.l.b16 %v697
    %v767 = vunpack.c.h.b16 %v697
    %v768 = vunpack.c.l.b16 %v698
    %v769 = vunpack.c.h.b16 %v698
    %v770 = vunpack.c.l.b16 %v699
    %v771 = vunpack.c.h.b16 %v699
    %v772 = vunpack.c.l.b16 %v700
    %v773 = vunpack.c.h.b16 %v700
    %v774 = vunpack.c.l.b16 %v701
    %v775 = vunpack.c.h.b16 %v701
    %v776 = vunpack.c.l.b16 %v702
    %v777 = vunpack.c.h.b16 %v702
    %v778 = vunpack.c.l.b16 %v703
    %v779 = vunpack.c.h.b16 %v703
    %v780 = vunpack.c.l.b16 %v704
    %v781 = vunpack.c.h.b16 %v704
    %v782 = vunpack.c.l.b16 %v705
    %v783 = vunpack.c.h.b16 %v705
    %v784 = vunpack.c.l.b16 %v706
    %v785 = vunpack.c.h.b16 %v706
    %v786 = vunpack.c.l.b16 %v707
    %v787 = vunpack.c.h.b16 %v707
    %v788 = vunpack.c.l.b16 %v708
    %v789 = vunpack.c.h.b16 %v708
    %v790 = vunpack.c.l.b16 %v709
    %v791 = vunpack.c.h.b16 %v709
    %v792 = vunpack.c.l.b16 %v710
    %v793 = vunpack.c.h.b16 %v710
    %v794 = vunpack.c.l.b16 %v711
    %v795 = vunpack.c.h.b16 %v711
    %v796 = vunpack.c.l.b16 %v712
    %v797 = vunpack.c.h.b16 %v712
    %v798 = vunpack.c.l.b16 %v713
    %v799 = vunpack.c.h.b16 %v713
    %v800 = vunpack.c.l.b16 %v714
    %v801 = vunpack.c.h.b16 %v714
    %v802 = vunpack.c.l.b16 %v715
    %v803 = vunpack.c.h.b16 %v715
    %v804 = vunpack.c.l.b16 %v716
    %v805 = vunpack.c.h.b16 %v716
    %v806 = vunpack.c.l.b16 %v717
    %v807 = vunpack.c.h.b16 %v717
    %v808 = vunpack.c.l.b16 %v718
    %v809 = vunpack.c.h.b16 %v718
    %v810 = vunpack.c.l.b16 %v719
    %v811 = vunpack.c.h.b16 %v719
    %v812 = vunpack.c.l.b16 %v720
    %v813 = vunpack.c.h.b16 %v720
    %v814 = vunpack.c.l.b16 %v721
    %v815 = vunpack.c.h.b16 %v721
    %v816 = vunpack.c.l.b16 %v722
    %v817 = vunpack.c.h.b16 %v722
    %v818 = vunpack.c.l.b16 %v723
    %v819 = vunpack.c.h.b16 %v723
    %v820 = vpack.c.b16 %v756, %v756
    %v821 = vpack.c.b16 %v757, %v757
    %v822 = vpack.c.b16 %v758, %v758
    %v823 = vpack.c.b16 %v759, %v759
    %v824 = vpack.c.b16 %v760, %v760
    %v825 = vpack.c.b16 %v761, %v761
    %v826 = vpack.c.b16 %v762, %v762
    %v827 = vpack.c.b16 %v763, %v763
    %v828 = vpack.c.b16 %v764, %v764
    %v829 = vpack.c.b16 %v765, %v765
    %v830 = vpack.c.b16 %v766, %v766
    %v831 = vpack.c.b16 %v767, %v767
    %v832 = vpack.c.b16 %v768, %v768
    %v833 = vpack.c.b16 %v769, %v769
    %v834 = vpack.c.b16 %v770, %v770
    %v835 = vpack.c.b16 %v771, %v771
    %v836 = vpack.c.b16 %v772, %v772
    %v837 = vpack.c.b16 %v773, %v773
    %v838 = vpack.c.b16 %v774, %v774
    %v839 = vpack.c.b16 %v775, %v775
    %v840 = vpack.c.b16 %v776, %v776
    %v841 = vpack.c.b16 %v777, %v777
    %v842 = vpack.c.b16 %v778, %v778
    %v843 = vpack.c.b16 %v779, %v779
    %v844 = vpack.c.b16 %v780, %v780
    %v845 = vpack.c.b16 %v781, %v781
    %v846 = vpack.c.b16 %v782, %v782
    %v847 = vpack.c.b16 %v783, %v783
    %v848 = vpack.c.b16 %v784, %v784
    %v849 = vpack.c.b16 %v785, %v785
    %v850 = vpack.c.b16 %v786, %v786
    %v851 = vpack.c.b16 %v787, %v787
    %v852 = vpack.c.b16 %v788, %v788
    %v853 = vpack.c.b16 %v789, %v789
    %v854 = vpack.c.b16 %v790, %v790
    %v855 = vpack.c.b16 %v791, %v791
    %v856 = vpack.c.b16 %v792, %v792
    %v857 = vpack.c.b16 %v793, %v793
    %v858 = vpack.c.b16 %v794, %v794
    %v859 = vpack.c.b16 %v795, %v795
    %v860 = vpack.c.b16 %v796, %v796
    %v861 = vpack.c.b16 %v797, %v797
    %v862 = vpack.c.b16 %v798, %v798
    %v863 = vpack.c.b16 %v799, %v799
    %v864 = vpack.c.b16 %v800, %v800
    %v865 = vpack.c.b16 %v801, %v801
    %v866 = vpack.c.b16 %v802, %v802
    %v867 = vpack.c.b16 %v803, %v803
    %v868 = vpack.c.b16 %v804, %v804
    %v869 = vpack.c.b16 %v805, %v805
    %v870 = vpack.c.b16 %v806, %v806
    %v871 = vpack.c.b16 %v807, %v807
    %v872 = vpack.c.b16 %v808, %v808
    %v873 = vpack.c.b16 %v809, %v809
    %v874 = vpack.c.b16 %v810, %v810
    %v875 = vpack.c.b16 %v811, %v811
    %v876 = vpack.c.b16 %v812, %v812
    %v877 = vpack.c.b16 %v813, %v813
    %v878 = vpack.c.b16 %v814, %v814
    %v879 = vpack.c.b16 %v815, %v815
    %v880 = vpack.c.b16 %v816, %v816
    %v881 = vpack.c.b16 %v817, %v817
    %v882 = vpack.c.b16 %v818, %v818
    %v883 = vpack.c.b16 %v819, %v819
    %vm948 = vcmask 158720
    %949 = vst.msk [vmem:[%s3] sm:$0xf] %vm948, %v820
    %950 = vst.msk [vmem:[%s3 + $0x4] sm:$0xf] %vm948, %v821
    %951 = vst.msk [vmem:[%s3 + $0x8] sm:$0xf] %vm948, %v822
    %952 = vst.msk [vmem:[%s3 + $0xc] sm:$0xf] %vm948, %v823
    %953 = vst.msk [vmem:[%s3 + $0x10] sm:$0xf] %vm948, %v824
    %954 = vst.msk [vmem:[%s3 + $0x14] sm:$0xf] %vm948, %v825
    %955 = vst.msk [vmem:[%s3 + $0x18] sm:$0xf] %vm948, %v826
    %956 = vst.msk [vmem:[%s3 + $0x1c] sm:$0xf] %vm948, %v827
    %957 = vst.msk [vmem:[%s3 + $0x20] sm:$0xf] %vm948, %v828
    %958 = vst.msk [vmem:[%s3 + $0x24] sm:$0xf] %vm948, %v829
    %959 = vst.msk [vmem:[%s3 + $0x28] sm:$0xf] %vm948, %v830
    %960 = vst.msk [vmem:[%s3 + $0x2c] sm:$0xf] %vm948, %v831
    %961 = vst.msk [vmem:[%s3 + $0x30] sm:$0xf] %vm948, %v832
    %962 = vst.msk [vmem:[%s3 + $0x34] sm:$0xf] %vm948, %v833
    %963 = vst.msk [vmem:[%s3 + $0x38] sm:$0xf] %vm948, %v834
    %964 = vst.msk [vmem:[%s3 + $0x3c] sm:$0xf] %vm948, %v835
    %965 = vst.msk [vmem:[%s3 + $0x40] sm:$0xf] %vm948, %v836
    %966 = vst.msk [vmem:[%s3 + $0x44] sm:$0xf] %vm948, %v837
    %967 = vst.msk [vmem:[%s3 + $0x48] sm:$0xf] %vm948, %v838
    %968 = vst.msk [vmem:[%s3 + $0x4c] sm:$0xf] %vm948, %v839
    %969 = vst.msk [vmem:[%s3 + $0x50] sm:$0xf] %vm948, %v840
    %970 = vst.msk [vmem:[%s3 + $0x54] sm:$0xf] %vm948, %v841
    %971 = vst.msk [vmem:[%s3 + $0x58] sm:$0xf] %vm948, %v842
    %972 = vst.msk [vmem:[%s3 + $0x5c] sm:$0xf] %vm948, %v843
    %973 = vst.msk [vmem:[%s3 + $0x60] sm:$0xf] %vm948, %v844
    %974 = vst.msk [vmem:[%s3 + $0x64] sm:$0xf] %vm948, %v845
    %975 = vst.msk [vmem:[%s3 + $0x68] sm:$0xf] %vm948, %v846
    %976 = vst.msk [vmem:[%s3 + $0x6c] sm:$0xf] %vm948, %v847
    %977 = vst.msk [vmem:[%s3 + $0x70] sm:$0xf] %vm948, %v848
    %978 = vst.msk [vmem:[%s3 + $0x74] sm:$0xf] %vm948, %v849
    %979 = vst.msk [vmem:[%s3 + $0x78] sm:$0xf] %vm948, %v850
    %980 = vst.msk [vmem:[%s3 + $0x7c] sm:$0xf] %vm948, %v851
    %981 = vst.msk [vmem:[%s3 + $0x80] sm:$0xf] %vm948, %v852
    %982 = vst.msk [vmem:[%s3 + $0x84] sm:$0xf] %vm948, %v853
    %983 = vst.msk [vmem:[%s3 + $0x88] sm:$0xf] %vm948, %v854
    %984 = vst.msk [vmem:[%s3 + $0x8c] sm:$0xf] %vm948, %v855
    %985 = vst.msk [vmem:[%s3 + $0x90] sm:$0xf] %vm948, %v856
    %986 = vst.msk [vmem:[%s3 + $0x94] sm:$0xf] %vm948, %v857
    %987 = vst.msk [vmem:[%s3 + $0x98] sm:$0xf] %vm948, %v858
    %988 = vst.msk [vmem:[%s3 + $0x9c] sm:$0xf] %vm948, %v859
    %989 = vst.msk [vmem:[%s3 + $0xa0] sm:$0xf] %vm948, %v860
    %990 = vst.msk [vmem:[%s3 + $0xa4] sm:$0xf] %vm948, %v861
    %991 = vst.msk [vmem:[%s3 + $0xa8] sm:$0xf] %vm948, %v862
    %992 = vst.msk [vmem:[%s3 + $0xac] sm:$0xf] %vm948, %v863
    %993 = vst.msk [vmem:[%s3 + $0xb0] sm:$0xf] %vm948, %v864
    %994 = vst.msk [vmem:[%s3 + $0xb4] sm:$0xf] %vm948, %v865
    %995 = vst.msk [vmem:[%s3 + $0xb8] sm:$0xf] %vm948, %v866
    %996 = vst.msk [vmem:[%s3 + $0xbc] sm:$0xf] %vm948, %v867
    %997 = vst.msk [vmem:[%s3 + $0xc0] sm:$0xf] %vm948, %v868
    %998 = vst.msk [vmem:[%s3 + $0xc4] sm:$0xf] %vm948, %v869
    %999 = vst.msk [vmem:[%s3 + $0xc8] sm:$0xf] %vm948, %v870
    %1000 = vst.msk [vmem:[%s3 + $0xcc] sm:$0xf] %vm948, %v871
    %1001 = vst.msk [vmem:[%s3 + $0xd0] sm:$0xf] %vm948, %v872
    %1002 = vst.msk [vmem:[%s3 + $0xd4] sm:$0xf] %vm948, %v873
    %1003 = vst.msk [vmem:[%s3 + $0xd8] sm:$0xf] %vm948, %v874
    %1004 = vst.msk [vmem:[%s3 + $0xdc] sm:$0xf] %vm948, %v875
    %1005 = vst.msk [vmem:[%s3 + $0xe0] sm:$0xf] %vm948, %v876
    %1006 = vst.msk [vmem:[%s3 + $0xe4] sm:$0xf] %vm948, %v877
    %1007 = vst.msk [vmem:[%s3 + $0xe8] sm:$0xf] %vm948, %v878
    %1008 = vst.msk [vmem:[%s3 + $0xec] sm:$0xf] %vm948, %v879
    %1009 = vst.msk [vmem:[%s3 + $0xf0] sm:$0xf] %vm948, %v880
    %1010 = vst.msk [vmem:[%s3 + $0xf4] sm:$0xf] %vm948, %v881
    %1011 = vst.msk [vmem:[%s3 + $0xf8] sm:$0xf] %vm948, %v882
    %1012 = vst.msk [vmem:[%s3 + $0xfc] sm:$0xf] %vm948, %v883
    // Predicated region
    $region22: #{fno2d_forward.10} parent=1 // pred_check
      _
    $region23: #{fno2d_forward.10} parent=1 // pred_check_branch
      %1014 = sbr.rel (0) target = $region25
    $region24: #{fno2d_forward.10} parent=1 // pred_region
      _
    $region25: #{fno2d_forward.10} parent=1 // pred_fallthru
      _
    // Predicated region
    $region26: #{fno2d_forward.10} parent=1 // pred_check
      _
    $region27: #{fno2d_forward.10} parent=1 // pred_check_branch
      %1016 = sbr.rel (0) target = $region29
    $region28: #{fno2d_forward.10} parent=1 // pred_region
      _
    $region29: #{fno2d_forward.10} parent=1 // pred_fallthru
      _
    %1017 = vsyncpa [#allocation3], 1
    %1018 = vsyncpa [#allocation5], 1

// kernel: fno2d_forward.11
$region0: #{fno2d_forward.11}
  #allocation0 [shape = 'u32[]', space=smem, size = 0x4, offset = 0x4, fixed_abs, tag = 'smem constant byte address 0x4 - core index']
  #allocation1 [shape = 'u32[144,128]{1,0:T(1,128)}', space=vmem, size = 0x12000, scoped, tag = 'internal scratch']
  %s0 = inlined_call_operand.vmem [shape: f32[12,2,240], index: 0, kind: input, shape index: {}]
  %s1 = inlined_call_operand.vmem [shape: f32[12,240,240], index: 1, kind: input, shape index: {}]
  %s2 = inlined_call_operand.vmem [shape: f32[12,2,240], index: 2, kind: output, shape index: {}]
  %s3 = sld [smem:[#allocation0]]
  $region41: #{fno2d_forward.11} parent=0
    _
  %s5 = ssub.s32 1, %s3
  %s6 = scalar_select 0, %s5, %s3
  loop: start=0, step=1, limit=4
  $region2: #{fno2d_forward.11} parent=0 // loop_pre_header
    _
  $region3: #{fno2d_forward.11} parent=0 // loop_header
    %s8 = sphi 0, %s12
    %p9 = scmp.ge.s32.totalorder %s8, 4
    %s18 = sphi 0, %s20
    %s21 = sphi 0, %s18
    %s22 = sphi 0, %s21
    %s38 = sphi 0, %s22
    %s44 = sphi 0, %s46
    %s47 = sphi 0, %s44
    %s48 = sphi 0, %s47
    %s64 = sphi 0, %s48
    %s70 = sphi 0, %s72
    %s73 = sphi 0, %s70
    %s74 = sphi 0, %s73
    %s90 = sphi 0, %s74
  $region4: #{fno2d_forward.11} parent=0 // loop_header_branch
    %11 = sbr.rel (%p9) target = $region8
  $region5: #{fno2d_forward.11} parent=0 // loop_body
    %s13 = ssub.s32 %s8, 1
    %s14 = ssub.s32 %s8, 2
    %s15 = sadd.s32 %s8, 1
    %s16 = ssub.s32 %s8, %s15
    %p17 = scmp.eq.s32.totalorder %s16, 0
    %s19 = sadd.s32 %s18, 1
    %s20 = scalar_select %p17, %s18, %s19
    %p23 = pneg %p17
    %p24 = scmp.eq.s32.totalorder %s8, 1
    %p25 = por %p23, %p24
    %p26 = scmp.ne.s32.totalorder %s18, %s21
    %p27 = scmp.eq.s32.totalorder %s8, 0
    %p28 = por %p26, %p27
    %p29 = scmp.ne.s32.totalorder %s18, %s21
    %p30 = scmp.eq.s32.totalorder %s13, 1
    %p31 = por %p29, %p30
    %p32 = scmp.ne.s32.totalorder %s21, %s22
    %p33 = scmp.eq.s32.totalorder %s13, 0
    %p34 = por %p32, %p33
    %p35 = scmp.ne.s32.totalorder %s21, %s22
    %p36 = scmp.eq.s32.totalorder %s14, 1
    %p37 = por %p35, %p36
    %p39 = scmp.ne.s32.totalorder %s22, %s38
    %p40 = scmp.eq.s32.totalorder %s14, 0
    %p41 = por %p39, %p40
    %s42 = ssub.s32 %s8, %s15
    %p43 = scmp.eq.s32.totalorder %s42, 0
    %s45 = sadd.s32 %s44, 1
    %s46 = scalar_select %p43, %s44, %s45
    %p49 = pneg %p43
    %p50 = scmp.eq.s32.totalorder %s8, 1
    %p51 = por %p49, %p50
    %p52 = scmp.ne.s32.totalorder %s44, %s47
    %p53 = scmp.eq.s32.totalorder %s8, 0
    %p54 = por %p52, %p53
    %p55 = scmp.ne.s32.totalorder %s44, %s47
    %p56 = scmp.eq.s32.totalorder %s13, 1
    %p57 = por %p55, %p56
    %p58 = scmp.ne.s32.totalorder %s47, %s48
    %p59 = scmp.eq.s32.totalorder %s13, 0
    %p60 = por %p58, %p59
    %p61 = scmp.ne.s32.totalorder %s47, %s48
    %p62 = scmp.eq.s32.totalorder %s14, 1
    %p63 = por %p61, %p62
    %p65 = scmp.ne.s32.totalorder %s48, %s64
    %p66 = scmp.eq.s32.totalorder %s14, 0
    %p67 = por %p65, %p66
    %s68 = ssub.s32 %s8, %s15
    %p69 = scmp.eq.s32.totalorder %s68, 0
    %s71 = sadd.s32 %s70, 1
    %s72 = scalar_select %p69, %s70, %s71
    %p75 = pneg %p69
    %p76 = scmp.eq.s32.totalorder %s8, 1
    %p77 = por %p75, %p76
    %p78 = scmp.ne.s32.totalorder %s70, %s73
    %p79 = scmp.eq.s32.totalorder %s8, 0
    %p80 = por %p78, %p79
    %p81 = scmp.ne.s32.totalorder %s70, %s73
    %p82 = scmp.eq.s32.totalorder %s13, 1
    %p83 = por %p81, %p82
    %p84 = scmp.ne.s32.totalorder %s73, %s74
    %p85 = scmp.eq.s32.totalorder %s13, 0
    %p86 = por %p84, %p85
    %p87 = scmp.ne.s32.totalorder %s73, %s74
    %p88 = scmp.eq.s32.totalorder %s14, 1
    %p89 = por %p87, %p88
    %p91 = scmp.ne.s32.totalorder %s74, %s90
    %p92 = scmp.eq.s32.totalorder %s14, 0
    %p93 = por %p91, %p92
    %p94 = scmp.le.s32.totalorder 1, %s8
    %p95 = scmp.lt.s32.totalorder %s8, 3
    %p96 = pnand %p94, %p95
    %p97 = pneg %p96
    // Predicated region
    $region9: #{fno2d_forward.11} parent=5 // pred_check
      _
    $region10: #{fno2d_forward.11} parent=5 // pred_check_branch
      %99 = sbr.rel (%p96) target = $region12
    $region11: #{fno2d_forward.11} parent=5 // pred_region
      %s100 = ssub.s32 %s8, 1
    $region12: #{fno2d_forward.11} parent=5 // pred_fallthru
      _
    %p101 = scmp.lt.s32.totalorder %s8, 2
    // Predicated region
    $region13: #{fno2d_forward.11} parent=5 // pred_check
      %p102 = pneg %p101
    $region14: #{fno2d_forward.11} parent=5 // pred_check_branch
      %104 = sbr.rel (%p102) target = $region16
    $region15: #{fno2d_forward.11} parent=5 // pred_region
      // Predicated region
      $region17: #{fno2d_forward.11} parent=15 // pred_check
        %p105 = pneg %p28
      $region18: #{fno2d_forward.11} parent=15 // pred_check_branch
        %107 = sbr.rel (%p105) target = $region20
      $region19: #{fno2d_forward.11} parent=15 // pred_region
        %s108 = smul.u32 6, %s8
        %p109 = scmp.lt.s32.totalorder %s108, 11
        %s110 = scalar_select %p109, %s108, 11
        %s111 = smul.addr %s110, 2
        %s112 = smul.addr %s111, 2
        %s113 = scalar_lea.vmem %s0, %s112
        %s114 = smul.u32 6, %s8
      $region20: #{fno2d_forward.11} parent=15 // pred_fallthru
        _
      // Predicated region
      $region21: #{fno2d_forward.11} parent=15 // pred_check
        %p115 = pneg %p54
      $region22: #{fno2d_forward.11} parent=15 // pred_check_branch
        %117 = sbr.rel (%p115) target = $region24
      $region23: #{fno2d_forward.11} parent=15 // pred_region
        %s118 = smul.u32 6, %s8
        %p119 = scmp.lt.s32.totalorder %s118, 11
        %s120 = scalar_select %p119, %s118, 11
        %s121 = smul.addr %s120, 60
        %s122 = smul.addr %s121, 8
        %s123 = scalar_lea.vmem %s1, %s122
        %s124 = smul.u32 6, %s8
      $region24: #{fno2d_forward.11} parent=15 // pred_fallthru
        _
    $region16: #{fno2d_forward.11} parent=5 // pred_fallthru
      _
    %p125 = scmp.le.s32.totalorder 1, %s8
    %p126 = scmp.lt.s32.totalorder %s8, 3
    %p127 = pnand %p125, %p126
    %p128 = pneg %p127
    // Predicated region
    $region25: #{fno2d_forward.11} parent=5 // pred_check
      _
    $region26: #{fno2d_forward.11} parent=5 // pred_check_branch
      %130 = sbr.rel (%p127) target = $region28
    $region27: #{fno2d_forward.11} parent=5 // pred_region
      %s131 = ssub.s32 %s8, 1
      %s132 = smul.u32 6, %s13
      %p133 = scmp.lt.s32.totalorder %s132, 11
      %s134 = scalar_select %p133, %s132, 11
      %s135 = smul.addr %s134, 2
      %s136 = smul.addr %s135, 2
      %s137 = scalar_lea.vmem %s0, %s136
      %p138 = pneg %p34
      %p139 = pneg %p31
      %s140 = smul.u32 6, %s13
      %p141 = scmp.lt.s32.totalorder %s140, 11
      %s142 = scalar_select %p141, %s140, 11
      %s143 = smul.addr %s142, 60
      %s144 = smul.addr %s143, 8
      %s145 = scalar_lea.vmem %s1, %s144
      %p146 = pneg %p60
      %p147 = pneg %p57
      %p148 = pneg %p86
      %p149 = pneg %p83
      %s150 = smul.u32 6, %s13
      %p151 = scmp.lt.s32.totalorder %s150, 11
      %s152 = scalar_select %p151, %s150, 11
      %s153 = smul.addr %s152, 2
      %s154 = smul.addr %s153, 2
      %s155 = scalar_lea.vmem %s2, %s154
      %s156 = smul.u32 6, %s13
      %p157 = scmp.lt.s32.totalorder %s156, 11
      %s158 = scalar_select %p157, %s156, 11
      %s159 = smul.addr %s158, 2
      %s160 = smul.addr %s159, 2
      %s161 = scalar_lea.vmem %s0, %s160
      %s162 = smul.u32 6, %s13
      %s163 = smul.u32 6, %s13
      %p164 = scmp.lt.s32.totalorder %s163, 11
      %s165 = scalar_select %p164, %s163, 11
      %s166 = smul.addr %s165, 60
      %s167 = smul.addr %s166, 8
      %s168 = scalar_lea.vmem %s1, %s167
      %s169 = smul.u32 6, %s13
      %s170 = smul.u32 6, %s13
      %p171 = scmp.lt.s32.totalorder %s170, 11
      %s172 = scalar_select %p171, %s170, 11
      %s173 = smul.addr %s172, 2
      %s174 = smul.addr %s173, 2
      %s175 = scalar_lea.vmem %s2, %s174
      %s176 = smul.u32 6, %s13
      %v177 = vld [vmem:[%s161] sm:$0xf]
      %v178 = vld [vmem:[%s161 + $0x4] sm:$0xf]
      %v179 = vld [vmem:[%s161 + $0x8] sm:$0xf]
      %v180 = vld [vmem:[%s161 + $0xc] sm:$0xf]
      %v181 = vld [vmem:[%s161 + $0x10] sm:$0xf]
      %v182 = vld [vmem:[%s161 + $0x14] sm:$0xf]
      %v183 = vld [vmem:[%s168] sm:$0xff]
      %v184 = vld [vmem:[%s168 + $0x8] sm:$0xff]
      %v185 = vld [vmem:[%s168 + $0x10] sm:$0xff]
      %v186 = vld [vmem:[%s168 + $0x18] sm:$0xff]
      %v187 = vld [vmem:[%s168 + $0x20] sm:$0xff]
      %v188 = vld [vmem:[%s168 + $0x28] sm:$0xff]
      %v189 = vld [vmem:[%s168 + $0x30] sm:$0xff]
      %v190 = vld [vmem:[%s168 + $0x38] sm:$0xff]
      %v191 = vld [vmem:[%s168 + $0x40] sm:$0xff]
      %v192 = vld [vmem:[%s168 + $0x48] sm:$0xff]
      %v193 = vld [vmem:[%s168 + $0x50] sm:$0xff]
      %v194 = vld [vmem:[%s168 + $0x58] sm:$0xff]
      %v195 = vld [vmem:[%s168 + $0x60] sm:$0xff]
      %v196 = vld [vmem:[%s168 + $0x68] sm:$0xff]
      %v197 = vld [vmem:[%s168 + $0x70] sm:$0xff]
      %v198 = vld [vmem:[%s168 + $0x78] sm:$0xff]
      %v199 = vld [vmem:[%s168 + $0x80] sm:$0xff]
      %v200 = vld [vmem:[%s168 + $0x88] sm:$0xff]
      %v201 = vld [vmem:[%s168 + $0x90] sm:$0xff]
      %v202 = vld [vmem:[%s168 + $0x98] sm:$0xff]
      %v203 = vld [vmem:[%s168 + $0xa0] sm:$0xff]
      %v204 = vld [vmem:[%s168 + $0xa8] sm:$0xff]
      %v205 = vld [vmem:[%s168 + $0xb0] sm:$0xff]
      %v206 = vld [vmem:[%s168 + $0xb8] sm:$0xff]
      %v207 = vld [vmem:[%s168 + $0xc0] sm:$0xff]
      %v208 = vld [vmem:[%s168 + $0xc8] sm:$0xff]
      %v209 = vld [vmem:[%s168 + $0xd0] sm:$0xff]
      %v210 = vld [vmem:[%s168 + $0xd8] sm:$0xff]
      %v211 = vld [vmem:[%s168 + $0xe0] sm:$0xff]
      %v212 = vld [vmem:[%s168 + $0xe8] sm:$0xff]
      %v213 = vld [vmem:[%s168 + $0xf0] sm:$0xff]
      %v214 = vld [vmem:[%s168 + $0xf8] sm:$0xff]
      %v215 = vld [vmem:[%s168 + $0x100] sm:$0xff]
      %v216 = vld [vmem:[%s168 + $0x108] sm:$0xff]
      %v217 = vld [vmem:[%s168 + $0x110] sm:$0xff]
      %v218 = vld [vmem:[%s168 + $0x118] sm:$0xff]
      %v219 = vld [vmem:[%s168 + $0x120] sm:$0xff]
      %v220 = vld [vmem:[%s168 + $0x128] sm:$0xff]
      %v221 = vld [vmem:[%s168 + $0x130] sm:$0xff]
      %v222 = vld [vmem:[%s168 + $0x138] sm:$0xff]
      %v223 = vld [vmem:[%s168 + $0x140] sm:$0xff]
      %v224 = vld [vmem:[%s168 + $0x148] sm:$0xff]
      %v225 = vld [vmem:[%s168 + $0x150] sm:$0xff]
      %v226 = vld [vmem:[%s168 + $0x158] sm:$0xff]
      %v227 = vld [vmem:[%s168 + $0x160] sm:$0xff]
      %v228 = vld [vmem:[%s168 + $0x168] sm:$0xff]
      %v229 = vld [vmem:[%s168 + $0x170] sm:$0xff]
      %v230 = vld [vmem:[%s168 + $0x178] sm:$0xff]
      %v231 = vld [vmem:[%s168 + $0x180] sm:$0xff]
      %v232 = vld [vmem:[%s168 + $0x188] sm:$0xff]
      %v233 = vld [vmem:[%s168 + $0x190] sm:$0xff]
      %v234 = vld [vmem:[%s168 + $0x198] sm:$0xff]
      %v235 = vld [vmem:[%s168 + $0x1a0] sm:$0xff]
      %v236 = vld [vmem:[%s168 + $0x1a8] sm:$0xff]
      %v237 = vld [vmem:[%s168 + $0x1b0] sm:$0xff]
      %v238 = vld [vmem:[%s168 + $0x1b8] sm:$0xff]
      %v239 = vld [vmem:[%s168 + $0x1c0] sm:$0xff]
      %v240 = vld [vmem:[%s168 + $0x1c8] sm:$0xff]
      %v241 = vld [vmem:[%s168 + $0x1d0] sm:$0xff]
      %v242 = vld [vmem:[%s168 + $0x1d8] sm:$0xff]
      %v243 = vld [vmem:[%s168 + $0x1e0] sm:$0xff]
      %v244 = vld [vmem:[%s168 + $0x1e8] sm:$0xff]
      %v245 = vld [vmem:[%s168 + $0x1f0] sm:$0xff]
      %v246 = vld [vmem:[%s168 + $0x1f8] sm:$0xff]
      %v247 = vld [vmem:[%s168 + $0x200] sm:$0xff]
      %v248 = vld [vmem:[%s168 + $0x208] sm:$0xff]
      %v249 = vld [vmem:[%s168 + $0x210] sm:$0xff]
      %v250 = vld [vmem:[%s168 + $0x218] sm:$0xff]
      %v251 = vld [vmem:[%s168 + $0x220] sm:$0xff]
      %v252 = vld [vmem:[%s168 + $0x228] sm:$0xff]
      %v253 = vld [vmem:[%s168 + $0x230] sm:$0xff]
      %v254 = vld [vmem:[%s168 + $0x238] sm:$0xff]
      %v255 = vld [vmem:[%s168 + $0x240] sm:$0xff]
      %v256 = vld [vmem:[%s168 + $0x248] sm:$0xff]
      %v257 = vld [vmem:[%s168 + $0x250] sm:$0xff]
      %v258 = vld [vmem:[%s168 + $0x258] sm:$0xff]
      %v259 = vld [vmem:[%s168 + $0x260] sm:$0xff]
      %v260 = vld [vmem:[%s168 + $0x268] sm:$0xff]
      %v261 = vld [vmem:[%s168 + $0x270] sm:$0xff]
      %v262 = vld [vmem:[%s168 + $0x278] sm:$0xff]
      %v263 = vld [vmem:[%s168 + $0x280] sm:$0xff]
      %v264 = vld [vmem:[%s168 + $0x288] sm:$0xff]
      %v265 = vld [vmem:[%s168 + $0x290] sm:$0xff]
      %v266 = vld [vmem:[%s168 + $0x298] sm:$0xff]
      %v267 = vld [vmem:[%s168 + $0x2a0] sm:$0xff]
      %v268 = vld [vmem:[%s168 + $0x2a8] sm:$0xff]
      %v269 = vld [vmem:[%s168 + $0x2b0] sm:$0xff]
      %v270 = vld [vmem:[%s168 + $0x2b8] sm:$0xff]
      %v271 = vld [vmem:[%s168 + $0x2c0] sm:$0xff]
      %v272 = vld [vmem:[%s168 + $0x2c8] sm:$0xff]
      %v273 = vld [vmem:[%s168 + $0x2d0] sm:$0xff]
      %v274 = vld [vmem:[%s168 + $0x2d8] sm:$0xff]
      %v275 = vld [vmem:[%s168 + $0x2e0] sm:$0xff]
      %v276 = vld [vmem:[%s168 + $0x2e8] sm:$0xff]
      %v277 = vld [vmem:[%s168 + $0x2f0] sm:$0xff]
      %v278 = vld [vmem:[%s168 + $0x2f8] sm:$0xff]
      %v279 = vld [vmem:[%s168 + $0x300] sm:$0xff]
      %v280 = vld [vmem:[%s168 + $0x308] sm:$0xff]
      %v281 = vld [vmem:[%s168 + $0x310] sm:$0xff]
      %v282 = vld [vmem:[%s168 + $0x318] sm:$0xff]
      %v283 = vld [vmem:[%s168 + $0x320] sm:$0xff]
      %v284 = vld [vmem:[%s168 + $0x328] sm:$0xff]
      %v285 = vld [vmem:[%s168 + $0x330] sm:$0xff]
      %v286 = vld [vmem:[%s168 + $0x338] sm:$0xff]
      %v287 = vld [vmem:[%s168 + $0x340] sm:$0xff]
      %v288 = vld [vmem:[%s168 + $0x348] sm:$0xff]
      %v289 = vld [vmem:[%s168 + $0x350] sm:$0xff]
      %v290 = vld [vmem:[%s168 + $0x358] sm:$0xff]
      %v291 = vld [vmem:[%s168 + $0x360] sm:$0xff]
      %v292 = vld [vmem:[%s168 + $0x368] sm:$0xff]
      %v293 = vld [vmem:[%s168 + $0x370] sm:$0xff]
      %v294 = vld [vmem:[%s168 + $0x378] sm:$0xff]
      %v295 = vld [vmem:[%s168 + $0x380] sm:$0xff]
      %v296 = vld [vmem:[%s168 + $0x388] sm:$0xff]
      %v297 = vld [vmem:[%s168 + $0x390] sm:$0xff]
      %v298 = vld [vmem:[%s168 + $0x398] sm:$0xff]
      %v299 = vld [vmem:[%s168 + $0x3a0] sm:$0xff]
      %v300 = vld [vmem:[%s168 + $0x3a8] sm:$0xff]
      %v301 = vld [vmem:[%s168 + $0x3b0] sm:$0xff]
      %v302 = vld [vmem:[%s168 + $0x3b8] sm:$0xff]
      %v303 = vld [vmem:[%s168 + $0x3c0] sm:$0xff]
      %v304 = vld [vmem:[%s168 + $0x3c8] sm:$0xff]
      %v305 = vld [vmem:[%s168 + $0x3d0] sm:$0xff]
      %v306 = vld [vmem:[%s168 + $0x3d8] sm:$0xff]
      %v307 = vld [vmem:[%s168 + $0x3e0] sm:$0xff]
      %v308 = vld [vmem:[%s168 + $0x3e8] sm:$0xff]
      %v309 = vld [vmem:[%s168 + $0x3f0] sm:$0xff]
      %v310 = vld [vmem:[%s168 + $0x3f8] sm:$0xff]
      %v311 = vld [vmem:[%s168 + $0x400] sm:$0xff]
      %v312 = vld [vmem:[%s168 + $0x408] sm:$0xff]
      %v313 = vld [vmem:[%s168 + $0x410] sm:$0xff]
      %v314 = vld [vmem:[%s168 + $0x418] sm:$0xff]
      %v315 = vld [vmem:[%s168 + $0x420] sm:$0xff]
      %v316 = vld [vmem:[%s168 + $0x428] sm:$0xff]
      %v317 = vld [vmem:[%s168 + $0x430] sm:$0xff]
      %v318 = vld [vmem:[%s168 + $0x438] sm:$0xff]
      %v319 = vld [vmem:[%s168 + $0x440] sm:$0xff]
      %v320 = vld [vmem:[%s168 + $0x448] sm:$0xff]
      %v321 = vld [vmem:[%s168 + $0x450] sm:$0xff]
      %v322 = vld [vmem:[%s168 + $0x458] sm:$0xff]
      %v323 = vld [vmem:[%s168 + $0x460] sm:$0xff]
      %v324 = vld [vmem:[%s168 + $0x468] sm:$0xff]
      %v325 = vld [vmem:[%s168 + $0x470] sm:$0xff]
      %v326 = vld [vmem:[%s168 + $0x478] sm:$0xff]
      %v327 = vld [vmem:[%s168 + $0x480] sm:$0xff]
      %v328 = vld [vmem:[%s168 + $0x488] sm:$0xff]
      %v329 = vld [vmem:[%s168 + $0x490] sm:$0xff]
      %v330 = vld [vmem:[%s168 + $0x498] sm:$0xff]
      %v331 = vld [vmem:[%s168 + $0x4a0] sm:$0xff]
      %v332 = vld [vmem:[%s168 + $0x4a8] sm:$0xff]
      %v333 = vld [vmem:[%s168 + $0x4b0] sm:$0xff]
      %v334 = vld [vmem:[%s168 + $0x4b8] sm:$0xff]
      %v335 = vld [vmem:[%s168 + $0x4c0] sm:$0xff]
      %v336 = vld [vmem:[%s168 + $0x4c8] sm:$0xff]
      %v337 = vld [vmem:[%s168 + $0x4d0] sm:$0xff]
      %v338 = vld [vmem:[%s168 + $0x4d8] sm:$0xff]
      %v339 = vld [vmem:[%s168 + $0x4e0] sm:$0xff]
      %v340 = vld [vmem:[%s168 + $0x4e8] sm:$0xff]
      %v341 = vld [vmem:[%s168 + $0x4f0] sm:$0xff]
      %v342 = vld [vmem:[%s168 + $0x4f8] sm:$0xff]
      %v343 = vld [vmem:[%s168 + $0x500] sm:$0xff]
      %v344 = vld [vmem:[%s168 + $0x508] sm:$0xff]
      %v345 = vld [vmem:[%s168 + $0x510] sm:$0xff]
      %v346 = vld [vmem:[%s168 + $0x518] sm:$0xff]
      %v347 = vld [vmem:[%s168 + $0x520] sm:$0xff]
      %v348 = vld [vmem:[%s168 + $0x528] sm:$0xff]
      %v349 = vld [vmem:[%s168 + $0x530] sm:$0xff]
      %v350 = vld [vmem:[%s168 + $0x538] sm:$0xff]
      %v351 = vld [vmem:[%s168 + $0x540] sm:$0xff]
      %v352 = vld [vmem:[%s168 + $0x548] sm:$0xff]
      %v353 = vld [vmem:[%s168 + $0x550] sm:$0xff]
      %v354 = vld [vmem:[%s168 + $0x558] sm:$0xff]
      %v355 = vld [vmem:[%s168 + $0x560] sm:$0xff]
      %v356 = vld [vmem:[%s168 + $0x568] sm:$0xff]
      %v357 = vld [vmem:[%s168 + $0x570] sm:$0xff]
      %v358 = vld [vmem:[%s168 + $0x578] sm:$0xff]
      %v359 = vld [vmem:[%s168 + $0x580] sm:$0xff]
      %v360 = vld [vmem:[%s168 + $0x588] sm:$0xff]
      %v361 = vld [vmem:[%s168 + $0x590] sm:$0xff]
      %v362 = vld [vmem:[%s168 + $0x598] sm:$0xff]
      %v363 = vld [vmem:[%s168 + $0x5a0] sm:$0xff]
      %v364 = vld [vmem:[%s168 + $0x5a8] sm:$0xff]
      %v365 = vld [vmem:[%s168 + $0x5b0] sm:$0xff]
      %v366 = vld [vmem:[%s168 + $0x5b8] sm:$0xff]
      %v367 = vld [vmem:[%s168 + $0x5c0] sm:$0xff]
      %v368 = vld [vmem:[%s168 + $0x5c8] sm:$0xff]
      %v369 = vld [vmem:[%s168 + $0x5d0] sm:$0xff]
      %v370 = vld [vmem:[%s168 + $0x5d8] sm:$0xff]
      %v371 = vld [vmem:[%s168 + $0x5e0] sm:$0xff]
      %v372 = vld [vmem:[%s168 + $0x5e8] sm:$0xff]
      %v373 = vld [vmem:[%s168 + $0x5f0] sm:$0xff]
      %v374 = vld [vmem:[%s168 + $0x5f8] sm:$0xff]
      %v375 = vld [vmem:[%s168 + $0x600] sm:$0xff]
      %v376 = vld [vmem:[%s168 + $0x608] sm:$0xff]
      %v377 = vld [vmem:[%s168 + $0x610] sm:$0xff]
      %v378 = vld [vmem:[%s168 + $0x618] sm:$0xff]
      %v379 = vld [vmem:[%s168 + $0x620] sm:$0xff]
      %v380 = vld [vmem:[%s168 + $0x628] sm:$0xff]
      %v381 = vld [vmem:[%s168 + $0x630] sm:$0xff]
      %v382 = vld [vmem:[%s168 + $0x638] sm:$0xff]
      %v383 = vld [vmem:[%s168 + $0x640] sm:$0xff]
      %v384 = vld [vmem:[%s168 + $0x648] sm:$0xff]
      %v385 = vld [vmem:[%s168 + $0x650] sm:$0xff]
      %v386 = vld [vmem:[%s168 + $0x658] sm:$0xff]
      %v387 = vld [vmem:[%s168 + $0x660] sm:$0xff]
      %v388 = vld [vmem:[%s168 + $0x668] sm:$0xff]
      %v389 = vld [vmem:[%s168 + $0x670] sm:$0xff]
      %v390 = vld [vmem:[%s168 + $0x678] sm:$0xff]
      %v391 = vld [vmem:[%s168 + $0x680] sm:$0xff]
      %v392 = vld [vmem:[%s168 + $0x688] sm:$0xff]
      %v393 = vld [vmem:[%s168 + $0x690] sm:$0xff]
      %v394 = vld [vmem:[%s168 + $0x698] sm:$0xff]
      %v395 = vld [vmem:[%s168 + $0x6a0] sm:$0xff]
      %v396 = vld [vmem:[%s168 + $0x6a8] sm:$0xff]
      %v397 = vld [vmem:[%s168 + $0x6b0] sm:$0xff]
      %v398 = vld [vmem:[%s168 + $0x6b8] sm:$0xff]
      %v399 = vld [vmem:[%s168 + $0x6c0] sm:$0xff]
      %v400 = vld [vmem:[%s168 + $0x6c8] sm:$0xff]
      %v401 = vld [vmem:[%s168 + $0x6d0] sm:$0xff]
      %v402 = vld [vmem:[%s168 + $0x6d8] sm:$0xff]
      %v403 = vld [vmem:[%s168 + $0x6e0] sm:$0xff]
      %v404 = vld [vmem:[%s168 + $0x6e8] sm:$0xff]
      %v405 = vld [vmem:[%s168 + $0x6f0] sm:$0xff]
      %v406 = vld [vmem:[%s168 + $0x6f8] sm:$0xff]
      %v407 = vld [vmem:[%s168 + $0x700] sm:$0xff]
      %v408 = vld [vmem:[%s168 + $0x708] sm:$0xff]
      %v409 = vld [vmem:[%s168 + $0x710] sm:$0xff]
      %v410 = vld [vmem:[%s168 + $0x718] sm:$0xff]
      %v411 = vld [vmem:[%s168 + $0x720] sm:$0xff]
      %v412 = vld [vmem:[%s168 + $0x728] sm:$0xff]
      %v413 = vld [vmem:[%s168 + $0x730] sm:$0xff]
      %v414 = vld [vmem:[%s168 + $0x738] sm:$0xff]
      %v415 = vld [vmem:[%s168 + $0x740] sm:$0xff]
      %v416 = vld [vmem:[%s168 + $0x748] sm:$0xff]
      %v417 = vld [vmem:[%s168 + $0x750] sm:$0xff]
      %v418 = vld [vmem:[%s168 + $0x758] sm:$0xff]
      %v419 = vld [vmem:[%s168 + $0x760] sm:$0xff]
      %v420 = vld [vmem:[%s168 + $0x768] sm:$0xff]
      %v421 = vld [vmem:[%s168 + $0x770] sm:$0xff]
      %v422 = vld [vmem:[%s168 + $0x778] sm:$0xff]
      %v423 = vld [vmem:[%s168 + $0x780] sm:$0xff]
      %v424 = vld [vmem:[%s168 + $0x788] sm:$0xff]
      %v425 = vld [vmem:[%s168 + $0x790] sm:$0xff]
      %v426 = vld [vmem:[%s168 + $0x798] sm:$0xff]
      %v427 = vld [vmem:[%s168 + $0x7a0] sm:$0xff]
      %v428 = vld [vmem:[%s168 + $0x7a8] sm:$0xff]
      %v429 = vld [vmem:[%s168 + $0x7b0] sm:$0xff]
      %v430 = vld [vmem:[%s168 + $0x7b8] sm:$0xff]
      %v431 = vld [vmem:[%s168 + $0x7c0] sm:$0xff]
      %v432 = vld [vmem:[%s168 + $0x7c8] sm:$0xff]
      %v433 = vld [vmem:[%s168 + $0x7d0] sm:$0xff]
      %v434 = vld [vmem:[%s168 + $0x7d8] sm:$0xff]
      %v435 = vld [vmem:[%s168 + $0x7e0] sm:$0xff]
      %v436 = vld [vmem:[%s168 + $0x7e8] sm:$0xff]
      %v437 = vld [vmem:[%s168 + $0x7f0] sm:$0xff]
      %v438 = vld [vmem:[%s168 + $0x7f8] sm:$0xff]
      %v439 = vld [vmem:[%s168 + $0x800] sm:$0xff]
      %v440 = vld [vmem:[%s168 + $0x808] sm:$0xff]
      %v441 = vld [vmem:[%s168 + $0x810] sm:$0xff]
      %v442 = vld [vmem:[%s168 + $0x818] sm:$0xff]
      %v443 = vld [vmem:[%s168 + $0x820] sm:$0xff]
      %v444 = vld [vmem:[%s168 + $0x828] sm:$0xff]
      %v445 = vld [vmem:[%s168 + $0x830] sm:$0xff]
      %v446 = vld [vmem:[%s168 + $0x838] sm:$0xff]
      %v447 = vld [vmem:[%s168 + $0x840] sm:$0xff]
      %v448 = vld [vmem:[%s168 + $0x848] sm:$0xff]
      %v449 = vld [vmem:[%s168 + $0x850] sm:$0xff]
      %v450 = vld [vmem:[%s168 + $0x858] sm:$0xff]
      %v451 = vld [vmem:[%s168 + $0x860] sm:$0xff]
      %v452 = vld [vmem:[%s168 + $0x868] sm:$0xff]
      %v453 = vld [vmem:[%s168 + $0x870] sm:$0xff]
      %v454 = vld [vmem:[%s168 + $0x878] sm:$0xff]
      %v455 = vld [vmem:[%s168 + $0x880] sm:$0xff]
      %v456 = vld [vmem:[%s168 + $0x888] sm:$0xff]
      %v457 = vld [vmem:[%s168 + $0x890] sm:$0xff]
      %v458 = vld [vmem:[%s168 + $0x898] sm:$0xff]
      %v459 = vld [vmem:[%s168 + $0x8a0] sm:$0xff]
      %v460 = vld [vmem:[%s168 + $0x8a8] sm:$0xff]
      %v461 = vld [vmem:[%s168 + $0x8b0] sm:$0xff]
      %v462 = vld [vmem:[%s168 + $0x8b8] sm:$0xff]
      %v463 = vld [vmem:[%s168 + $0x8c0] sm:$0xff]
      %v464 = vld [vmem:[%s168 + $0x8c8] sm:$0xff]
      %v465 = vld [vmem:[%s168 + $0x8d0] sm:$0xff]
      %v466 = vld [vmem:[%s168 + $0x8d8] sm:$0xff]
      %v467 = vld [vmem:[%s168 + $0x8e0] sm:$0xff]
      %v468 = vld [vmem:[%s168 + $0x8e8] sm:$0xff]
      %v469 = vld [vmem:[%s168 + $0x8f0] sm:$0xff]
      %v470 = vld [vmem:[%s168 + $0x8f8] sm:$0xff]
      %v471 = vld [vmem:[%s168 + $0x900] sm:$0xff]
      %v472 = vld [vmem:[%s168 + $0x908] sm:$0xff]
      %v473 = vld [vmem:[%s168 + $0x910] sm:$0xff]
      %v474 = vld [vmem:[%s168 + $0x918] sm:$0xff]
      %v475 = vld [vmem:[%s168 + $0x920] sm:$0xff]
      %v476 = vld [vmem:[%s168 + $0x928] sm:$0xff]
      %v477 = vld [vmem:[%s168 + $0x930] sm:$0xff]
      %v478 = vld [vmem:[%s168 + $0x938] sm:$0xff]
      %v479 = vld [vmem:[%s168 + $0x940] sm:$0xff]
      %v480 = vld [vmem:[%s168 + $0x948] sm:$0xff]
      %v481 = vld [vmem:[%s168 + $0x950] sm:$0xff]
      %v482 = vld [vmem:[%s168 + $0x958] sm:$0xff]
      %v483 = vld [vmem:[%s168 + $0x960] sm:$0xff]
      %v484 = vld [vmem:[%s168 + $0x968] sm:$0xff]
      %v485 = vld [vmem:[%s168 + $0x970] sm:$0xff]
      %v486 = vld [vmem:[%s168 + $0x978] sm:$0xff]
      %v487 = vld [vmem:[%s168 + $0x980] sm:$0xff]
      %v488 = vld [vmem:[%s168 + $0x988] sm:$0xff]
      %v489 = vld [vmem:[%s168 + $0x990] sm:$0xff]
      %v490 = vld [vmem:[%s168 + $0x998] sm:$0xff]
      %v491 = vld [vmem:[%s168 + $0x9a0] sm:$0xff]
      %v492 = vld [vmem:[%s168 + $0x9a8] sm:$0xff]
      %v493 = vld [vmem:[%s168 + $0x9b0] sm:$0xff]
      %v494 = vld [vmem:[%s168 + $0x9b8] sm:$0xff]
      %v495 = vld [vmem:[%s168 + $0x9c0] sm:$0xff]
      %v496 = vld [vmem:[%s168 + $0x9c8] sm:$0xff]
      %v497 = vld [vmem:[%s168 + $0x9d0] sm:$0xff]
      %v498 = vld [vmem:[%s168 + $0x9d8] sm:$0xff]
      %v499 = vld [vmem:[%s168 + $0x9e0] sm:$0xff]
      %v500 = vld [vmem:[%s168 + $0x9e8] sm:$0xff]
      %v501 = vld [vmem:[%s168 + $0x9f0] sm:$0xff]
      %v502 = vld [vmem:[%s168 + $0x9f8] sm:$0xff]
      %v503 = vld [vmem:[%s168 + $0xa00] sm:$0xff]
      %v504 = vld [vmem:[%s168 + $0xa08] sm:$0xff]
      %v505 = vld [vmem:[%s168 + $0xa10] sm:$0xff]
      %v506 = vld [vmem:[%s168 + $0xa18] sm:$0xff]
      %v507 = vld [vmem:[%s168 + $0xa20] sm:$0xff]
      %v508 = vld [vmem:[%s168 + $0xa28] sm:$0xff]
      %v509 = vld [vmem:[%s168 + $0xa30] sm:$0xff]
      %v510 = vld [vmem:[%s168 + $0xa38] sm:$0xff]
      %v511 = vld [vmem:[%s168 + $0xa40] sm:$0xff]
      %v512 = vld [vmem:[%s168 + $0xa48] sm:$0xff]
      %v513 = vld [vmem:[%s168 + $0xa50] sm:$0xff]
      %v514 = vld [vmem:[%s168 + $0xa58] sm:$0xff]
      %v515 = vld [vmem:[%s168 + $0xa60] sm:$0xff]
      %v516 = vld [vmem:[%s168 + $0xa68] sm:$0xff]
      %v517 = vld [vmem:[%s168 + $0xa70] sm:$0xff]
      %v518 = vld [vmem:[%s168 + $0xa78] sm:$0xff]
      %v519 = vld [vmem:[%s168 + $0xa80] sm:$0xff]
      %v520 = vld [vmem:[%s168 + $0xa88] sm:$0xff]
      %v521 = vld [vmem:[%s168 + $0xa90] sm:$0xff]
      %v522 = vld [vmem:[%s168 + $0xa98] sm:$0xff]
      %v523 = vld [vmem:[%s168 + $0xaa0] sm:$0xff]
      %v524 = vld [vmem:[%s168 + $0xaa8] sm:$0xff]
      %v525 = vld [vmem:[%s168 + $0xab0] sm:$0xff]
      %v526 = vld [vmem:[%s168 + $0xab8] sm:$0xff]
      %v527 = vld [vmem:[%s168 + $0xac0] sm:$0xff]
      %v528 = vld [vmem:[%s168 + $0xac8] sm:$0xff]
      %v529 = vld [vmem:[%s168 + $0xad0] sm:$0xff]
      %v530 = vld [vmem:[%s168 + $0xad8] sm:$0xff]
      %v531 = vld [vmem:[%s168 + $0xae0] sm:$0xff]
      %v532 = vld [vmem:[%s168 + $0xae8] sm:$0xff]
      %v533 = vld [vmem:[%s168 + $0xaf0] sm:$0xff]
      %v534 = vld [vmem:[%s168 + $0xaf8] sm:$0xff]
      %v535 = vld [vmem:[%s168 + $0xb00] sm:$0xff]
      %v536 = vld [vmem:[%s168 + $0xb08] sm:$0xff]
      %v537 = vld [vmem:[%s168 + $0xb10] sm:$0xff]
      %v538 = vld [vmem:[%s168 + $0xb18] sm:$0xff]
      %v539 = vld [vmem:[%s168 + $0xb20] sm:$0xff]
      %v540 = vld [vmem:[%s168 + $0xb28] sm:$0xff]
      %v541 = vld [vmem:[%s168 + $0xb30] sm:$0xff]
      %v542 = vld [vmem:[%s168 + $0xb38] sm:$0xff]
      %v545 = vunpack.c.l.s4 1983009808
      %v546 = vunpack.c.0.s8 %v545
      %v547 = vlaneseq
      %v548 = vshrl.u32 %v547, 7
      %v549 = vsub.s32 %v546, %v548
      %v550 = vrot.slane %v177, %v549
      %v551 = vcombine.high %v550, %v550
      %vm553 = vcmask 916480
      %v554 = vsel %vm553, %v551, 0
      %556 = vmatprep.subr.mxu0 %v214
      %557 = vmatpush1.msra.mxu0 %v213
      %558 = vmatprep.subr.mxu0 %v212
      %559 = vmatpush1.msra.mxu0 %v211
      %560 = vmatprep.subr.mxu0 %v210
      %561 = vmatpush1.msra.mxu0 %v209
      %562 = vmatprep.subr.mxu0 %v208
      %563 = vmatpush1.msra.mxu0 %v207
      %564 = vmatprep.subr.mxu0 %v206
      %565 = vmatpush1.msra.mxu0 %v205
      %566 = vmatprep.subr.mxu0 %v204
      %567 = vmatpush1.msra.mxu0 %v203
      %568 = vmatprep.subr.mxu0 %v202
      %569 = vmatpush1.msra.mxu0 %v201
      %570 = vmatprep.subr.mxu0 %v200
      %571 = vmatpush1.msra.mxu0 %v199
      %572 = vmatprep.subr.mxu0 %v198
      %573 = vmatpush1.msra.mxu0 %v197
      %574 = vmatprep.subr.mxu0 %v196
      %575 = vmatpush1.msra.mxu0 %v195
      %576 = vmatprep.subr.mxu0 %v194
      %577 = vmatpush1.msra.mxu0 %v193
      %578 = vmatprep.subr.mxu0 %v192
      %579 = vmatpush1.msra.mxu0 %v191
      %580 = vmatprep.subr.mxu0 %v190
      %581 = vmatpush1.msra.mxu0 %v189
      %582 = vmatprep.subr.mxu0 %v188
      %583 = vmatpush1.msra.mxu0 %v187
      %584 = vmatprep.subr.mxu0 %v186
      %585 = vmatpush1.msra.mxu0 %v185
      %586 = vmatprep.subr.mxu0 %v184
      %587 = vmatpush1.msra.mxu0 %v183
      %588 = vmatprep.subr.mxu0 0.0
      %589 = vmatpush2.msra.mxu0 0.0
      %590 = vmatprep.subr.mxu0 0.0
      %591 = vmatpush2.msra.mxu0 0.0
      %592 = vmatprep.subr.mxu0 %v242
      %593 = vmatpush2.msra.mxu0 %v241
      %594 = vmatprep.subr.mxu0 %v240
      %595 = vmatpush2.msra.mxu0 %v239
      %596 = vmatprep.subr.mxu0 %v238
      %597 = vmatpush2.msra.mxu0 %v237
      %598 = vmatprep.subr.mxu0 %v236
      %599 = vmatpush2.msra.mxu0 %v235
      %600 = vmatprep.subr.mxu0 %v234
      %601 = vmatpush2.msra.mxu0 %v233
      %602 = vmatprep.subr.mxu0 %v232
      %603 = vmatpush2.msra.mxu0 %v231
      %604 = vmatprep.subr.mxu0 %v230
      %605 = vmatpush2.msra.mxu0 %v229
      %606 = vmatprep.subr.mxu0 %v228
      %607 = vmatpush2.msra.mxu0 %v227
      %608 = vmatprep.subr.mxu0 %v226
      %609 = vmatpush2.msra.mxu0 %v225
      %610 = vmatprep.subr.mxu0 %v224
      %611 = vmatpush2.msra.mxu0 %v223
      %612 = vmatprep.subr.mxu0 %v222
      %613 = vmatpush2.msra.mxu0 %v221
      %614 = vmatprep.subr.mxu0 %v220
      %615 = vmatpush2.msra.mxu0 %v219
      %616 = vmatprep.subr.mxu0 %v218
      %617 = vmatpush2.msra.mxu0 %v217
      %618 = vmatprep.subr.mxu0 %v216
      %619 = vmatpush2.msra.mxu0 %v215
      %620 = vmatprep.mubr.f32.mxu0 %v554
      %621 = vmatmul.mubr.f32.gmra.mxu0 %v550
      %v622 = vpop.f32.mrf.mxu0
      %v623 = vadd.f32 0.0, %v622
      %v624 = vpop.f32.mrf.mxu0
      %v625 = vadd.f32 0.0, %v624
      %626 = vdwg.mxu0
      %v629 = vunpack.c.l.s4 1983009808
      %v630 = vunpack.c.0.s8 %v629
      %v631 = vlaneseq
      %v632 = vshrl.u32 %v631, 7
      %v633 = vsub.s32 %v630, %v632
      %v634 = vrot.slane %v178, %v633
      %v635 = vcombine.high %v634, %v634
      %v637 = vsel %vm553, %v635, 0
      %639 = vmatprep.subr.mxu0 %v274
      %640 = vmatpush1.msra.mxu0 %v273
      %641 = vmatprep.subr.mxu0 %v272
      %642 = vmatpush1.msra.mxu0 %v271
      %643 = vmatprep.subr.mxu0 %v270
      %644 = vmatpush1.msra.mxu0 %v269
      %645 = vmatprep.subr.mxu0 %v268
      %646 = vmatpush1.msra.mxu0 %v267
      %647 = vmatprep.subr.mxu0 %v266
      %648 = vmatpush1.msra.mxu0 %v265
      %649 = vmatprep.subr.mxu0 %v264
      %650 = vmatpush1.msra.mxu0 %v263
      %651 = vmatprep.subr.mxu0 %v262
      %652 = vmatpush1.msra.mxu0 %v261
      %653 = vmatprep.subr.mxu0 %v260
      %654 = vmatpush1.msra.mxu0 %v259
      %655 = vmatprep.subr.mxu0 %v258
      %656 = vmatpush1.msra.mxu0 %v257
      %657 = vmatprep.subr.mxu0 %v256
      %658 = vmatpush1.msra.mxu0 %v255
      %659 = vmatprep.subr.mxu0 %v254
      %660 = vmatpush1.msra.mxu0 %v253
      %661 = vmatprep.subr.mxu0 %v252
      %662 = vmatpush1.msra.mxu0 %v251
      %663 = vmatprep.subr.mxu0 %v250
      %664 = vmatpush1.msra.mxu0 %v249
      %665 = vmatprep.subr.mxu0 %v248
      %666 = vmatpush1.msra.mxu0 %v247
      %667 = vmatprep.subr.mxu0 %v246
      %668 = vmatpush1.msra.mxu0 %v245
      %669 = vmatprep.subr.mxu0 %v244
      %670 = vmatpush1.msra.mxu0 %v243
      %671 = vmatprep.subr.mxu0 0.0
      %672 = vmatpush2.msra.mxu0 0.0
      %673 = vmatprep.subr.mxu0 0.0
      %674 = vmatpush2.msra.mxu0 0.0
      %675 = vmatprep.subr.mxu0 %v302
      %676 = vmatpush2.msra.mxu0 %v301
      %677 = vmatprep.subr.mxu0 %v300
      %678 = vmatpush2.msra.mxu0 %v299
      %679 = vmatprep.subr.mxu0 %v298
      %680 = vmatpush2.msra.mxu0 %v297
      %681 = vmatprep.subr.mxu0 %v296
      %682 = vmatpush2.msra.mxu0 %v295
      %683 = vmatprep.subr.mxu0 %v294
      %684 = vmatpush2.msra.mxu0 %v293
      %685 = vmatprep.subr.mxu0 %v292
      %686 = vmatpush2.msra.mxu0 %v291
      %687 = vmatprep.subr.mxu0 %v290
      %688 = vmatpush2.msra.mxu0 %v289
      %689 = vmatprep.subr.mxu0 %v288
      %690 = vmatpush2.msra.mxu0 %v287
      %691 = vmatprep.subr.mxu0 %v286
      %692 = vmatpush2.msra.mxu0 %v285
      %693 = vmatprep.subr.mxu0 %v284
      %694 = vmatpush2.msra.mxu0 %v283
      %695 = vmatprep.subr.mxu0 %v282
      %696 = vmatpush2.msra.mxu0 %v281
      %697 = vmatprep.subr.mxu0 %v280
      %698 = vmatpush2.msra.mxu0 %v279
      %699 = vmatprep.subr.mxu0 %v278
      %700 = vmatpush2.msra.mxu0 %v277
      %701 = vmatprep.subr.mxu0 %v276
      %702 = vmatpush2.msra.mxu0 %v275
      %703 = vmatprep.mubr.f32.mxu0 %v637
      %704 = vmatmul.mubr.f32.gmra.mxu0 %v634
      %v705 = vpop.f32.mrf.mxu0
      %v706 = vadd.f32 0.0, %v705
      %v707 = vpop.f32.mrf.mxu0
      %v708 = vadd.f32 0.0, %v707
      %709 = vdwg.mxu0
      %v712 = vunpack.c.l.s4 1983009808
      %v713 = vunpack.c.0.s8 %v712
      %v714 = vlaneseq
      %v715 = vshrl.u32 %v714, 7
      %v716 = vsub.s32 %v713, %v715
      %v717 = vrot.slane %v179, %v716
      %v718 = vcombine.high %v717, %v717
      %v720 = vsel %vm553, %v718, 0
      %722 = vmatprep.subr.mxu0 %v334
      %723 = vmatpush1.msra.mxu0 %v333
      %724 = vmatprep.subr.mxu0 %v332
      %725 = vmatpush1.msra.mxu0 %v331
      %726 = vmatprep.subr.mxu0 %v330
      %727 = vmatpush1.msra.mxu0 %v329
      %728 = vmatprep.subr.mxu0 %v328
      %729 = vmatpush1.msra.mxu0 %v327
      %730 = vmatprep.subr.mxu0 %v326
      %731 = vmatpush1.msra.mxu0 %v325
      %732 = vmatprep.subr.mxu0 %v324
      %733 = vmatpush1.msra.mxu0 %v323
      %734 = vmatprep.subr.mxu0 %v322
      %735 = vmatpush1.msra.mxu0 %v321
      %736 = vmatprep.subr.mxu0 %v320
      %737 = vmatpush1.msra.mxu0 %v319
      %738 = vmatprep.subr.mxu0 %v318
      %739 = vmatpush1.msra.mxu0 %v317
      %740 = vmatprep.subr.mxu0 %v316
      %741 = vmatpush1.msra.mxu0 %v315
      %742 = vmatprep.subr.mxu0 %v314
      %743 = vmatpush1.msra.mxu0 %v313
      %744 = vmatprep.subr.mxu0 %v312
      %745 = vmatpush1.msra.mxu0 %v311
      %746 = vmatprep.subr.mxu0 %v310
      %747 = vmatpush1.msra.mxu0 %v309
      %748 = vmatprep.subr.mxu0 %v308
      %749 = vmatpush1.msra.mxu0 %v307
      %750 = vmatprep.subr.mxu0 %v306
      %751 = vmatpush1.msra.mxu0 %v305
      %752 = vmatprep.subr.mxu0 %v304
      %753 = vmatpush1.msra.mxu0 %v303
      %754 = vmatprep.subr.mxu0 0.0
      %755 = vmatpush2.msra.mxu0 0.0
      %756 = vmatprep.subr.mxu0 0.0
      %757 = vmatpush2.msra.mxu0 0.0
      %758 = vmatprep.subr.mxu0 %v362
      %759 = vmatpush2.msra.mxu0 %v361
      %760 = vmatprep.subr.mxu0 %v360
      %761 = vmatpush2.msra.mxu0 %v359
      %762 = vmatprep.subr.mxu0 %v358
      %763 = vmatpush2.msra.mxu0 %v357
      %764 = vmatprep.subr.mxu0 %v356
      %765 = vmatpush2.msra.mxu0 %v355
      %766 = vmatprep.subr.mxu0 %v354
      %767 = vmatpush2.msra.mxu0 %v353
      %768 = vmatprep.subr.mxu0 %v352
      %769 = vmatpush2.msra.mxu0 %v351
      %770 = vmatprep.subr.mxu0 %v350
      %771 = vmatpush2.msra.mxu0 %v349
      %772 = vmatprep.subr.mxu0 %v348
      %773 = vmatpush2.msra.mxu0 %v347
      %774 = vmatprep.subr.mxu0 %v346
      %775 = vmatpush2.msra.mxu0 %v345
      %776 = vmatprep.subr.mxu0 %v344
      %777 = vmatpush2.msra.mxu0 %v343
      %778 = vmatprep.subr.mxu0 %v342
      %779 = vmatpush2.msra.mxu0 %v341
      %780 = vmatprep.subr.mxu0 %v340
      %781 = vmatpush2.msra.mxu0 %v339
      %782 = vmatprep.subr.mxu0 %v338
      %783 = vmatpush2.msra.mxu0 %v337
      %784 = vmatprep.subr.mxu0 %v336
      %785 = vmatpush2.msra.mxu0 %v335
      %786 = vmatprep.mubr.f32.mxu0 %v720
      %787 = vmatmul.mubr.f32.gmra.mxu0 %v717
      %v788 = vpop.f32.mrf.mxu0
      %v789 = vadd.f32 0.0, %v788
      %v790 = vpop.f32.mrf.mxu0
      %v791 = vadd.f32 0.0, %v790
      %792 = vdwg.mxu0
      %v795 = vunpack.c.l.s4 1983009808
      %v796 = vunpack.c.0.s8 %v795
      %v797 = vlaneseq
      %v798 = vshrl.u32 %v797, 7
      %v799 = vsub.s32 %v796, %v798
      %v800 = vrot.slane %v180, %v799
      %v801 = vcombine.high %v800, %v800
      %v803 = vsel %vm553, %v801, 0
      %805 = vmatprep.subr.mxu0 %v394
      %806 = vmatpush1.msra.mxu0 %v393
      %807 = vmatprep.subr.mxu0 %v392
      %808 = vmatpush1.msra.mxu0 %v391
      %809 = vmatprep.subr.mxu0 %v390
      %810 = vmatpush1.msra.mxu0 %v389
      %811 = vmatprep.subr.mxu0 %v388
      %812 = vmatpush1.msra.mxu0 %v387
      %813 = vmatprep.subr.mxu0 %v386
      %814 = vmatpush1.msra.mxu0 %v385
      %815 = vmatprep.subr.mxu0 %v384
      %816 = vmatpush1.msra.mxu0 %v383
      %817 = vmatprep.subr.mxu0 %v382
      %818 = vmatpush1.msra.mxu0 %v381
      %819 = vmatprep.subr.mxu0 %v380
      %820 = vmatpush1.msra.mxu0 %v379
      %821 = vmatprep.subr.mxu0 %v378
      %822 = vmatpush1.msra.mxu0 %v377
      %823 = vmatprep.subr.mxu0 %v376
      %824 = vmatpush1.msra.mxu0 %v375
      %825 = vmatprep.subr.mxu0 %v374
      %826 = vmatpush1.msra.mxu0 %v373
      %827 = vmatprep.subr.mxu0 %v372
      %828 = vmatpush1.msra.mxu0 %v371
      %829 = vmatprep.subr.mxu0 %v370
      %830 = vmatpush1.msra.mxu0 %v369
      %831 = vmatprep.subr.mxu0 %v368
      %832 = vmatpush1.msra.mxu0 %v367
      %833 = vmatprep.subr.mxu0 %v366
      %834 = vmatpush1.msra.mxu0 %v365
      %835 = vmatprep.subr.mxu0 %v364
      %836 = vmatpush1.msra.mxu0 %v363
      %837 = vmatprep.subr.mxu0 0.0
      %838 = vmatpush2.msra.mxu0 0.0
      %839 = vmatprep.subr.mxu0 0.0
      %840 = vmatpush2.msra.mxu0 0.0
      %841 = vmatprep.subr.mxu0 %v422
      %842 = vmatpush2.msra.mxu0 %v421
      %843 = vmatprep.subr.mxu0 %v420
      %844 = vmatpush2.msra.mxu0 %v419
      %845 = vmatprep.subr.mxu0 %v418
      %846 = vmatpush2.msra.mxu0 %v417
      %847 = vmatprep.subr.mxu0 %v416
      %848 = vmatpush2.msra.mxu0 %v415
      %849 = vmatprep.subr.mxu0 %v414
      %850 = vmatpush2.msra.mxu0 %v413
      %851 = vmatprep.subr.mxu0 %v412
      %852 = vmatpush2.msra.mxu0 %v411
      %853 = vmatprep.subr.mxu0 %v410
      %854 = vmatpush2.msra.mxu0 %v409
      %855 = vmatprep.subr.mxu0 %v408
      %856 = vmatpush2.msra.mxu0 %v407
      %857 = vmatprep.subr.mxu0 %v406
      %858 = vmatpush2.msra.mxu0 %v405
      %859 = vmatprep.subr.mxu0 %v404
      %860 = vmatpush2.msra.mxu0 %v403
      %861 = vmatprep.subr.mxu0 %v402
      %862 = vmatpush2.msra.mxu0 %v401
      %863 = vmatprep.subr.mxu0 %v400
      %864 = vmatpush2.msra.mxu0 %v399
      %865 = vmatprep.subr.mxu0 %v398
      %866 = vmatpush2.msra.mxu0 %v397
      %867 = vmatprep.subr.mxu0 %v396
      %868 = vmatpush2.msra.mxu0 %v395
      %869 = vmatprep.mubr.f32.mxu0 %v803
      %870 = vmatmul.mubr.f32.gmra.mxu0 %v800
      %v871 = vpop.f32.mrf.mxu0
      %v872 = vadd.f32 0.0, %v871
      %v873 = vpop.f32.mrf.mxu0
      %v874 = vadd.f32 0.0, %v873
      %875 = vdwg.mxu0
      %v878 = vunpack.c.l.s4 1983009808
      %v879 = vunpack.c.0.s8 %v878
      %v880 = vlaneseq
      %v881 = vshrl.u32 %v880, 7
      %v882 = vsub.s32 %v879, %v881
      %v883 = vrot.slane %v181, %v882
      %v884 = vcombine.high %v883, %v883
      %v886 = vsel %vm553, %v884, 0
      %888 = vmatprep.subr.mxu0 %v454
      %889 = vmatpush1.msra.mxu0 %v453
      %890 = vmatprep.subr.mxu0 %v452
      %891 = vmatpush1.msra.mxu0 %v451
      %892 = vmatprep.subr.mxu0 %v450
      %893 = vmatpush1.msra.mxu0 %v449
      %894 = vmatprep.subr.mxu0 %v448
      %895 = vmatpush1.msra.mxu0 %v447
      %896 = vmatprep.subr.mxu0 %v446
      %897 = vmatpush1.msra.mxu0 %v445
      %898 = vmatprep.subr.mxu0 %v444
      %899 = vmatpush1.msra.mxu0 %v443
      %900 = vmatprep.subr.mxu0 %v442
      %901 = vmatpush1.msra.mxu0 %v441
      %902 = vmatprep.subr.mxu0 %v440
      %903 = vmatpush1.msra.mxu0 %v439
      %904 = vmatprep.subr.mxu0 %v438
      %905 = vmatpush1.msra.mxu0 %v437
      %906 = vmatprep.subr.mxu0 %v436
      %907 = vmatpush1.msra.mxu0 %v435
      %908 = vmatprep.subr.mxu0 %v434
      %909 = vmatpush1.msra.mxu0 %v433
      %910 = vmatprep.subr.mxu0 %v432
      %911 = vmatpush1.msra.mxu0 %v431
      %912 = vmatprep.subr.mxu0 %v430
      %913 = vmatpush1.msra.mxu0 %v429
      %914 = vmatprep.subr.mxu0 %v428
      %915 = vmatpush1.msra.mxu0 %v427
      %916 = vmatprep.subr.mxu0 %v426
      %917 = vmatpush1.msra.mxu0 %v425
      %918 = vmatprep.subr.mxu0 %v424
      %919 = vmatpush1.msra.mxu0 %v423
      %920 = vmatprep.subr.mxu0 0.0
      %921 = vmatpush2.msra.mxu0 0.0
      %922 = vmatprep.subr.mxu0 0.0
      %923 = vmatpush2.msra.mxu0 0.0
      %924 = vmatprep.subr.mxu0 %v482
      %925 = vmatpush2.msra.mxu0 %v481
      %926 = vmatprep.subr.mxu0 %v480
      %927 = vmatpush2.msra.mxu0 %v479
      %928 = vmatprep.subr.mxu0 %v478
      %929 = vmatpush2.msra.mxu0 %v477
      %930 = vmatprep.subr.mxu0 %v476
      %931 = vmatpush2.msra.mxu0 %v475
      %932 = vmatprep.subr.mxu0 %v474
      %933 = vmatpush2.msra.mxu0 %v473
      %934 = vmatprep.subr.mxu0 %v472
      %935 = vmatpush2.msra.mxu0 %v471
      %936 = vmatprep.subr.mxu0 %v470
      %937 = vmatpush2.msra.mxu0 %v469
      %938 = vmatprep.subr.mxu0 %v468
      %939 = vmatpush2.msra.mxu0 %v467
      %940 = vmatprep.subr.mxu0 %v466
      %941 = vmatpush2.msra.mxu0 %v465
      %942 = vmatprep.subr.mxu0 %v464
      %943 = vmatpush2.msra.mxu0 %v463
      %944 = vmatprep.subr.mxu0 %v462
      %945 = vmatpush2.msra.mxu0 %v461
      %946 = vmatprep.subr.mxu0 %v460
      %947 = vmatpush2.msra.mxu0 %v459
      %948 = vmatprep.subr.mxu0 %v458
      %949 = vmatpush2.msra.mxu0 %v457
      %950 = vmatprep.subr.mxu0 %v456
      %951 = vmatpush2.msra.mxu0 %v455
      %952 = vmatprep.mubr.f32.mxu0 %v886
      %953 = vmatmul.mubr.f32.gmra.mxu0 %v883
      %v954 = vpop.f32.mrf.mxu0
      %v955 = vadd.f32 0.0, %v954
      %v956 = vpop.f32.mrf.mxu0
      %v957 = vadd.f32 0.0, %v956
      %958 = vdwg.mxu0
      %v961 = vunpack.c.l.s4 1983009808
      %v962 = vunpack.c.0.s8 %v961
      %v963 = vlaneseq
      %v964 = vshrl.u32 %v963, 7
      %v965 = vsub.s32 %v962, %v964
      %v966 = vrot.slane %v182, %v965
      %v967 = vcombine.high %v966, %v966
      %v969 = vsel %vm553, %v967, 0
      %971 = vmatprep.subr.mxu0 %v514
      %972 = vmatpush1.msra.mxu0 %v513
      %973 = vmatprep.subr.mxu0 %v512
      %974 = vmatpush1.msra.mxu0 %v511
      %975 = vmatprep.subr.mxu0 %v510
      %976 = vmatpush1.msra.mxu0 %v509
      %977 = vmatprep.subr.mxu0 %v508
      %978 = vmatpush1.msra.mxu0 %v507
      %979 = vmatprep.subr.mxu0 %v506
      %980 = vmatpush1.msra.mxu0 %v505
      %981 = vmatprep.subr.mxu0 %v504
      %982 = vmatpush1.msra.mxu0 %v503
      %983 = vmatprep.subr.mxu0 %v502
      %984 = vmatpush1.msra.mxu0 %v501
      %985 = vmatprep.subr.mxu0 %v500
      %986 = vmatpush1.msra.mxu0 %v499
      %987 = vmatprep.subr.mxu0 %v498
      %988 = vmatpush1.msra.mxu0 %v497
      %989 = vmatprep.subr.mxu0 %v496
      %990 = vmatpush1.msra.mxu0 %v495
      %991 = vmatprep.subr.mxu0 %v494
      %992 = vmatpush1.msra.mxu0 %v493
      %993 = vmatprep.subr.mxu0 %v492
      %994 = vmatpush1.msra.mxu0 %v491
      %995 = vmatprep.subr.mxu0 %v490
      %996 = vmatpush1.msra.mxu0 %v489
      %997 = vmatprep.subr.mxu0 %v488
      %998 = vmatpush1.msra.mxu0 %v487
      %999 = vmatprep.subr.mxu0 %v486
      %1000 = vmatpush1.msra.mxu0 %v485
      %1001 = vmatprep.subr.mxu0 %v484
      %1002 = vmatpush1.msra.mxu0 %v483
      %1003 = vmatprep.subr.mxu0 0.0
      %1004 = vmatpush2.msra.mxu0 0.0
      %1005 = vmatprep.subr.mxu0 0.0
      %1006 = vmatpush2.msra.mxu0 0.0
      %1007 = vmatprep.subr.mxu0 %v542
      %1008 = vmatpush2.msra.mxu0 %v541
      %1009 = vmatprep.subr.mxu0 %v540
      %1010 = vmatpush2.msra.mxu0 %v539
      %1011 = vmatprep.subr.mxu0 %v538
      %1012 = vmatpush2.msra.mxu0 %v537
      %1013 = vmatprep.subr.mxu0 %v536
      %1014 = vmatpush2.msra.mxu0 %v535
      %1015 = vmatprep.subr.mxu0 %v534
      %1016 = vmatpush2.msra.mxu0 %v533
      %1017 = vmatprep.subr.mxu0 %v532
      %1018 = vmatpush2.msra.mxu0 %v531
      %1019 = vmatprep.subr.mxu0 %v530
      %1020 = vmatpush2.msra.mxu0 %v529
      %1021 = vmatprep.subr.mxu0 %v528
      %1022 = vmatpush2.msra.mxu0 %v527
      %1023 = vmatprep.subr.mxu0 %v526
      %1024 = vmatpush2.msra.mxu0 %v525
      %1025 = vmatprep.subr.mxu0 %v524
      %1026 = vmatpush2.msra.mxu0 %v523
      %1027 = vmatprep.subr.mxu0 %v522
      %1028 = vmatpush2.msra.mxu0 %v521
      %1029 = vmatprep.subr.mxu0 %v520
      %1030 = vmatpush2.msra.mxu0 %v519
      %1031 = vmatprep.subr.mxu0 %v518
      %1032 = vmatpush2.msra.mxu0 %v517
      %1033 = vmatprep.subr.mxu0 %v516
      %1034 = vmatpush2.msra.mxu0 %v515
      %1035 = vmatprep.mubr.f32.mxu0 %v969
      %1036 = vmatmul.mubr.f32.gmra.mxu0 %v966
      %v1037 = vpop.f32.mrf.mxu0
      %v1038 = vadd.f32 0.0, %v1037
      %v1039 = vpop.f32.mrf.mxu0
      %v1040 = vadd.f32 0.0, %v1039
      %1041 = vdwg.mxu0
      %v1054 = vcombine.low %v623, %v625
      %v1056 = vunpack.c.l.s4 1983009808
      %v1057 = vunpack.c.0.s8 %v1056
      %v1058 = vlaneseq
      %v1059 = vshrl.u32 %v1058, 7
      %v1060 = vsub.s32 %v1057, %v1059
      %v1061 = vrot.slane %v1054, %v1060
      %v1062 = vcombine.low %v706, %v708
      %v1064 = vunpack.c.l.s4 1983009808
      %v1065 = vunpack.c.0.s8 %v1064
      %v1066 = vlaneseq
      %v1067 = vshrl.u32 %v1066, 7
      %v1068 = vsub.s32 %v1065, %v1067
      %v1069 = vrot.slane %v1062, %v1068
      %v1070 = vcombine.low %v789, %v791
      %v1072 = vunpack.c.l.s4 1983009808
      %v1073 = vunpack.c.0.s8 %v1072
      %v1074 = vlaneseq
      %v1075 = vshrl.u32 %v1074, 7
      %v1076 = vsub.s32 %v1073, %v1075
      %v1077 = vrot.slane %v1070, %v1076
      %v1078 = vcombine.low %v872, %v874
      %v1080 = vunpack.c.l.s4 1983009808
      %v1081 = vunpack.c.0.s8 %v1080
      %v1082 = vlaneseq
      %v1083 = vshrl.u32 %v1082, 7
      %v1084 = vsub.s32 %v1081, %v1083
      %v1085 = vrot.slane %v1078, %v1084
      %v1086 = vcombine.low %v955, %v957
      %v1088 = vunpack.c.l.s4 1983009808
      %v1089 = vunpack.c.0.s8 %v1088
      %v1090 = vlaneseq
      %v1091 = vshrl.u32 %v1090, 7
      %v1092 = vsub.s32 %v1089, %v1091
      %v1093 = vrot.slane %v1086, %v1092
      %v1094 = vcombine.low %v1038, %v1040
      %v1096 = vunpack.c.l.s4 1983009808
      %v1097 = vunpack.c.0.s8 %v1096
      %v1098 = vlaneseq
      %v1099 = vshrl.u32 %v1098, 7
      %v1100 = vsub.s32 %v1097, %v1099
      %v1101 = vrot.slane %v1094, %v1100
      %vm1108 = vcmask 1041408
      %vm1109 = vcmask 912386
      %vm1110 = vmor %vm1109, %vm1108
      %1111 = vst.msk [vmem:[%s175] sm:$0xf] %vm1110, %v1061
      %1112 = vst.msk [vmem:[%s175 + $0x4] sm:$0xf] %vm1110, %v1069
      %1113 = vst.msk [vmem:[%s175 + $0x8] sm:$0xf] %vm1110, %v1077
      %1114 = vst.msk [vmem:[%s175 + $0xc] sm:$0xf] %vm1110, %v1085
      %1115 = vst.msk [vmem:[%s175 + $0x10] sm:$0xf] %vm1110, %v1093
      %1116 = vst.msk [vmem:[%s175 + $0x14] sm:$0xf] %vm1110, %v1101
      %s1117 = smul.u32 6, %s13
      %p1118 = scmp.lt.s32.totalorder %s1117, 11
      %s1119 = scalar_select %p1118, %s1117, 11
      %s1120 = smul.addr %s1119, 2
      %s1121 = smul.addr %s1120, 2
      %s1122 = scalar_lea.vmem %s2, %s1121
      // Predicated region
      $region29: #{fno2d_forward.11} parent=27 // pred_check
        %p1123 = pneg %p83
      $region30: #{fno2d_forward.11} parent=27 // pred_check_branch
        %1125 = sbr.rel (%p1123) target = $region32
      $region31: #{fno2d_forward.11} parent=27 // pred_region
        %s1126 = smul.u32 6, %s13
      $region32: #{fno2d_forward.11} parent=27 // pred_fallthru
        _
    $region28: #{fno2d_forward.11} parent=5 // pred_fallthru
      _
    %p1127 = scmp.le.s32.totalorder 2, %s8
    // Predicated region
    $region33: #{fno2d_forward.11} parent=5 // pred_check
      %p1128 = pneg %p1127
    $region34: #{fno2d_forward.11} parent=5 // pred_check_branch
      %1130 = sbr.rel (%p1128) target = $region36
    $region35: #{fno2d_forward.11} parent=5 // pred_region
      %s1131 = ssub.s32 %s8, 2
      // Predicated region
      $region37: #{fno2d_forward.11} parent=35 // pred_check
        %p1132 = pneg %p89
      $region38: #{fno2d_forward.11} parent=35 // pred_check_branch
        %1134 = sbr.rel (%p1132) target = $region40
      $region39: #{fno2d_forward.11} parent=35 // pred_region
        %s1135 = smul.u32 6, %s14
        %p1136 = scmp.lt.s32.totalorder %s1135, 11
        %s1137 = scalar_select %p1136, %s1135, 11
        %s1138 = smul.addr %s1137, 2
        %s1139 = smul.addr %s1138, 2
        %s1140 = scalar_lea.vmem %s2, %s1139
      $region40: #{fno2d_forward.11} parent=35 // pred_fallthru
        _
    $region36: #{fno2d_forward.11} parent=5 // pred_fallthru
      _
  $region6: #{fno2d_forward.11} parent=0 // loop_footer
    %s12 = sadd.s32 1, %s8
  $region7: #{fno2d_forward.11} parent=0 // loop_footer_branch
    %7 = sbr.rel target = $region3
  $region8: #{fno2d_forward.11} parent=0 // loop_exit
    _

// kernel: reverse.8
$region0: #{reverse.8}
  #allocation0 [shape = 's32[1]{0}', space=sflag, size = 0x4, scoped, tag = 'scoped memory for reverse.8']
  %s0 = inlined_call_operand.vmem [shape: f32[2,20,16,7], index: 0, kind: input, shape index: {}]
  %s1 = inlined_call_operand.vmem [shape: f32[2,20,16,7], index: 1, kind: output, shape index: {}]
  %s2 = scalar_lea.vmem %s0, 96
  %v3 = vld [vmem:[%s2] sm:$0xff]
  %4 = vst [vmem:[%s1] sm:$0xff] %v3
  %s5 = scalar_lea.vmem %s0, 208
  %v6 = vld [vmem:[%s5] sm:$0xff]
  %s7 = scalar_lea.vmem %s1, 112
  %8 = vst [vmem:[%s7] sm:$0xff] %v6
  %s9 = scalar_lea.vmem %s0, 80
  %v10 = vld [vmem:[%s9] sm:$0xff]
  %s11 = scalar_lea.vmem %s1, 16
  %12 = vst [vmem:[%s11] sm:$0xff] %v10
  %s13 = scalar_lea.vmem %s0, 192
  %v14 = vld [vmem:[%s13] sm:$0xff]
  %s15 = scalar_lea.vmem %s1, 128
  %16 = vst [vmem:[%s15] sm:$0xff] %v14
  %s17 = scalar_lea.vmem %s0, 64
  %v18 = vld [vmem:[%s17] sm:$0xff]
  %s19 = scalar_lea.vmem %s1, 32
  %20 = vst [vmem:[%s19] sm:$0xff] %v18
  %s21 = scalar_lea.vmem %s0, 176
  %v22 = vld [vmem:[%s21] sm:$0xff]
  %s23 = scalar_lea.vmem %s1, 144
  %24 = vst [vmem:[%s23] sm:$0xff] %v22
  %s25 = scalar_lea.vmem %s0, 48
  %v26 = vld [vmem:[%s25] sm:$0xff]
  %s27 = scalar_lea.vmem %s1, 48
  %28 = vst [vmem:[%s27] sm:$0xff] %v26
  %s29 = scalar_lea.vmem %s0, 160
  %v30 = vld [vmem:[%s29] sm:$0xff]
  %s31 = scalar_lea.vmem %s1, 160
  %32 = vst [vmem:[%s31] sm:$0xff] %v30
  %s33 = scalar_lea.vmem %s0, 32
  %v34 = vld [vmem:[%s33] sm:$0xff]
  %s35 = scalar_lea.vmem %s1, 64
  %36 = vst [vmem:[%s35] sm:$0xff] %v34
  %s37 = scalar_lea.vmem %s0, 144
  %v38 = vld [vmem:[%s37] sm:$0xff]
  %s39 = scalar_lea.vmem %s1, 176
  %40 = vst [vmem:[%s39] sm:$0xff] %v38
  %s41 = scalar_lea.vmem %s0, 16
  %v42 = vld [vmem:[%s41] sm:$0xff]
  %s43 = scalar_lea.vmem %s1, 80
  %44 = vst [vmem:[%s43] sm:$0xff] %v42
  %s45 = scalar_lea.vmem %s0, 128
  %v46 = vld [vmem:[%s45] sm:$0xff]
  %s47 = scalar_lea.vmem %s1, 192
  %48 = vst [vmem:[%s47] sm:$0xff] %v46
  %v49 = vld [vmem:[%s0] sm:$0xff]
  %s50 = scalar_lea.vmem %s1, 96
  %51 = vst [vmem:[%s50] sm:$0xff] %v49
  %s52 = scalar_lea.vmem %s0, 112
  %v53 = vld [vmem:[%s52] sm:$0xff]
  %s54 = scalar_lea.vmem %s1, 208
  %55 = vst [vmem:[%s54] sm:$0xff] %v53
  %s56 = scalar_lea.vmem %s0, 104
  %v57 = vld [vmem:[%s56] sm:$0xff]
  %s58 = scalar_lea.vmem %s1, 8
  %59 = vst [vmem:[%s58] sm:$0xff] %v57
  %s60 = scalar_lea.vmem %s0, 216
  %v61 = vld [vmem:[%s60] sm:$0xff]
  %s62 = scalar_lea.vmem %s1, 120
  %63 = vst [vmem:[%s62] sm:$0xff] %v61
  %s64 = scalar_lea.vmem %s0, 88
  %v65 = vld [vmem:[%s64] sm:$0xff]
  %s66 = scalar_lea.vmem %s1, 24
  %67 = vst [vmem:[%s66] sm:$0xff] %v65
  %s68 = scalar_lea.vmem %s0, 200
  %v69 = vld [vmem:[%s68] sm:$0xff]
  %s70 = scalar_lea.vmem %s1, 136
  %71 = vst [vmem:[%s70] sm:$0xff] %v69
  %s72 = scalar_lea.vmem %s0, 72
  %v73 = vld [vmem:[%s72] sm:$0xff]
  %s74 = scalar_lea.vmem %s1, 40
  %75 = vst [vmem:[%s74] sm:$0xff] %v73
  %s76 = scalar_lea.vmem %s0, 184
  %v77 = vld [vmem:[%s76] sm:$0xff]
  %s78 = scalar_lea.vmem %s1, 152
  %79 = vst [vmem:[%s78] sm:$0xff] %v77
  %s80 = scalar_lea.vmem %s0, 56
  %v81 = vld [vmem:[%s80] sm:$0xff]
  %s82 = scalar_lea.vmem %s1, 56
  %83 = vst [vmem:[%s82] sm:$0xff] %v81
  %s84 = scalar_lea.vmem %s0, 168
  %v85 = vld [vmem:[%s84] sm:$0xff]
  %s86 = scalar_lea.vmem %s1, 168
  %87 = vst [vmem:[%s86] sm:$0xff] %v85
  %s88 = scalar_lea.vmem %s0, 40
  %v89 = vld [vmem:[%s88] sm:$0xff]
  %s90 = scalar_lea.vmem %s1, 72
  %91 = vst [vmem:[%s90] sm:$0xff] %v89
  %s92 = scalar_lea.vmem %s0, 152
  %v93 = vld [vmem:[%s92] sm:$0xff]
  %s94 = scalar_lea.vmem %s1, 184
  %95 = vst [vmem:[%s94] sm:$0xff] %v93
  %s96 = scalar_lea.vmem %s0, 24
  %v97 = vld [vmem:[%s96] sm:$0xff]
  %s98 = scalar_lea.vmem %s1, 88
  %99 = vst [vmem:[%s98] sm:$0xff] %v97
  %s100 = scalar_lea.vmem %s0, 136
  %v101 = vld [vmem:[%s100] sm:$0xff]
  %s102 = scalar_lea.vmem %s1, 200
  %103 = vst [vmem:[%s102] sm:$0xff] %v101
  %s104 = scalar_lea.vmem %s0, 8
  %v105 = vld [vmem:[%s104] sm:$0xff]
  %s106 = scalar_lea.vmem %s1, 104
  %107 = vst [vmem:[%s106] sm:$0xff] %v105
  %s108 = scalar_lea.vmem %s0, 120
  %v109 = vld [vmem:[%s108] sm:$0xff]
  %s110 = scalar_lea.vmem %s1, 216
  %111 = vst [vmem:[%s110] sm:$0xff] %v109

// kernel: fno2d_forward.12
$region0: #{fno2d_forward.12}
  #allocation0 [shape = 'u32[]', space=smem, size = 0x4, offset = 0x4, fixed_abs, tag = 'smem constant byte address 0x4 - core index']
  #allocation1 [shape = 'u32[144,128]{1,0:T(1,128)}', space=vmem, size = 0x12000, scoped, tag = 'internal scratch']
  %s0 = inlined_call_operand.vmem [shape: bf16[512,20], index: 0, kind: input, shape index: {}]
  %s1 = inlined_call_operand.vmem [shape: bf16[512,20], index: 1, kind: input, shape index: {}]
  %s2 = inlined_call_operand.vmem [shape: bf16[20,20], index: 2, kind: input, shape index: {}]
  %s3 = inlined_call_operand.vmem [shape: f32[1,20], index: 3, kind: input, shape index: {}]
  %s4 = inlined_call_operand.vmem [shape: bf16[512,20], index: 4, kind: output, shape index: {}]
  %s5 = sld [smem:[#allocation0]]
  $region26: #{fno2d_forward.12} parent=0
    _
  %s7 = ssub.s32 1, %s5
  %s8 = scalar_select 0, %s7, %s5
  // Predicated region
  $region2: #{fno2d_forward.12} parent=0 // pred_check
    _
  $region3: #{fno2d_forward.12} parent=0 // pred_check_branch
    %10 = sbr.rel (0) target = $region5
  $region4: #{fno2d_forward.12} parent=0 // pred_region
    _
  $region5: #{fno2d_forward.12} parent=0 // pred_fallthru
    _
  // Predicated region
  $region6: #{fno2d_forward.12} parent=0 // pred_check
    _
  $region7: #{fno2d_forward.12} parent=0 // pred_check_branch
    %12 = sbr.rel (0) target = $region9
  $region8: #{fno2d_forward.12} parent=0 // pred_region
    _
  $region9: #{fno2d_forward.12} parent=0 // pred_fallthru
    _
  // Predicated region
  $region10: #{fno2d_forward.12} parent=0 // pred_check
    _
  $region11: #{fno2d_forward.12} parent=0 // pred_check_branch
    %14 = sbr.rel (0) target = $region13
  $region12: #{fno2d_forward.12} parent=0 // pred_region
    _
  $region13: #{fno2d_forward.12} parent=0 // pred_fallthru
    _
  // Predicated region
  $region14: #{fno2d_forward.12} parent=0 // pred_check
    _
  $region15: #{fno2d_forward.12} parent=0 // pred_check_branch
    %16 = sbr.rel (0) target = $region17
  $region16: #{fno2d_forward.12} parent=0 // pred_region
    _
  $region17: #{fno2d_forward.12} parent=0 // pred_fallthru
    _
  %v18 = vld [vmem:[%s0] sm:$0xf]
  %v19 = vld [vmem:[%s0 + $0x4] sm:$0xf]
  %v20 = vld [vmem:[%s0 + $0x8] sm:$0xf]
  %v21 = vld [vmem:[%s0 + $0xc] sm:$0xf]
  %v22 = vld [vmem:[%s0 + $0x10] sm:$0xf]
  %v23 = vld [vmem:[%s0 + $0x14] sm:$0xf]
  %v24 = vld [vmem:[%s0 + $0x18] sm:$0xf]
  %v25 = vld [vmem:[%s0 + $0x1c] sm:$0xf]
  %v26 = vld [vmem:[%s0 + $0x20] sm:$0xf]
  %v27 = vld [vmem:[%s0 + $0x24] sm:$0xf]
  %v28 = vld [vmem:[%s0 + $0x28] sm:$0xf]
  %v29 = vld [vmem:[%s0 + $0x2c] sm:$0xf]
  %v30 = vld [vmem:[%s0 + $0x30] sm:$0xf]
  %v31 = vld [vmem:[%s0 + $0x34] sm:$0xf]
  %v32 = vld [vmem:[%s0 + $0x38] sm:$0xf]
  %v33 = vld [vmem:[%s0 + $0x3c] sm:$0xf]
  %v34 = vld [vmem:[%s0 + $0x40] sm:$0xf]
  %v35 = vld [vmem:[%s0 + $0x44] sm:$0xf]
  %v36 = vld [vmem:[%s0 + $0x48] sm:$0xf]
  %v37 = vld [vmem:[%s0 + $0x4c] sm:$0xf]
  %v38 = vld [vmem:[%s0 + $0x50] sm:$0xf]
  %v39 = vld [vmem:[%s0 + $0x54] sm:$0xf]
  %v40 = vld [vmem:[%s0 + $0x58] sm:$0xf]
  %v41 = vld [vmem:[%s0 + $0x5c] sm:$0xf]
  %v42 = vld [vmem:[%s0 + $0x60] sm:$0xf]
  %v43 = vld [vmem:[%s0 + $0x64] sm:$0xf]
  %v44 = vld [vmem:[%s0 + $0x68] sm:$0xf]
  %v45 = vld [vmem:[%s0 + $0x6c] sm:$0xf]
  %v46 = vld [vmem:[%s0 + $0x70] sm:$0xf]
  %v47 = vld [vmem:[%s0 + $0x74] sm:$0xf]
  %v48 = vld [vmem:[%s0 + $0x78] sm:$0xf]
  %v49 = vld [vmem:[%s0 + $0x7c] sm:$0xf]
  %v50 = vld [vmem:[%s0 + $0x80] sm:$0xf]
  %v51 = vld [vmem:[%s0 + $0x84] sm:$0xf]
  %v52 = vld [vmem:[%s0 + $0x88] sm:$0xf]
  %v53 = vld [vmem:[%s0 + $0x8c] sm:$0xf]
  %v54 = vld [vmem:[%s0 + $0x90] sm:$0xf]
  %v55 = vld [vmem:[%s0 + $0x94] sm:$0xf]
  %v56 = vld [vmem:[%s0 + $0x98] sm:$0xf]
  %v57 = vld [vmem:[%s0 + $0x9c] sm:$0xf]
  %v58 = vld [vmem:[%s0 + $0xa0] sm:$0xf]
  %v59 = vld [vmem:[%s0 + $0xa4] sm:$0xf]
  %v60 = vld [vmem:[%s0 + $0xa8] sm:$0xf]
  %v61 = vld [vmem:[%s0 + $0xac] sm:$0xf]
  %v62 = vld [vmem:[%s0 + $0xb0] sm:$0xf]
  %v63 = vld [vmem:[%s0 + $0xb4] sm:$0xf]
  %v64 = vld [vmem:[%s0 + $0xb8] sm:$0xf]
  %v65 = vld [vmem:[%s0 + $0xbc] sm:$0xf]
  %v66 = vld [vmem:[%s0 + $0xc0] sm:$0xf]
  %v67 = vld [vmem:[%s0 + $0xc4] sm:$0xf]
  %v68 = vld [vmem:[%s0 + $0xc8] sm:$0xf]
  %v69 = vld [vmem:[%s0 + $0xcc] sm:$0xf]
  %v70 = vld [vmem:[%s0 + $0xd0] sm:$0xf]
  %v71 = vld [vmem:[%s0 + $0xd4] sm:$0xf]
  %v72 = vld [vmem:[%s0 + $0xd8] sm:$0xf]
  %v73 = vld [vmem:[%s0 + $0xdc] sm:$0xf]
  %v74 = vld [vmem:[%s0 + $0xe0] sm:$0xf]
  %v75 = vld [vmem:[%s0 + $0xe4] sm:$0xf]
  %v76 = vld [vmem:[%s0 + $0xe8] sm:$0xf]
  %v77 = vld [vmem:[%s0 + $0xec] sm:$0xf]
  %v78 = vld [vmem:[%s0 + $0xf0] sm:$0xf]
  %v79 = vld [vmem:[%s0 + $0xf4] sm:$0xf]
  %v80 = vld [vmem:[%s0 + $0xf8] sm:$0xf]
  %v81 = vld [vmem:[%s0 + $0xfc] sm:$0xf]
  %v82 = vld [vmem:[%s2] sm:$0xf]
  %v83 = vld [vmem:[%s2 + $0x4] sm:$0xf]
  %v84 = vld [vmem:[%s2 + $0x8] sm:$0x3]
  %v85 = vld [vmem:[%s3] sm:$0x1]
  %v87 = vlaneseq
  %v88 = vshrl.u32 %v87, 7
  %v89 = vsub.s32 0, %v88
  %v90 = vrot.slane %v85, %v89
  %v156 = vunpack.c.l.b16 %v18
  %v157 = vunpack.c.l.b16 %v19
  %v158 = vunpack.c.l.b16 %v20
  %v159 = vunpack.c.l.b16 %v21
  %v160 = vunpack.c.l.b16 %v22
  %v161 = vunpack.c.l.b16 %v23
  %v162 = vunpack.c.l.b16 %v24
  %v163 = vunpack.c.l.b16 %v25
  %v164 = vunpack.c.l.b16 %v26
  %v165 = vunpack.c.l.b16 %v27
  %v166 = vunpack.c.l.b16 %v28
  %v167 = vunpack.c.l.b16 %v29
  %v168 = vunpack.c.l.b16 %v30
  %v169 = vunpack.c.l.b16 %v31
  %v170 = vunpack.c.l.b16 %v32
  %v171 = vunpack.c.l.b16 %v33
  %v172 = vunpack.c.l.b16 %v34
  %v173 = vunpack.c.l.b16 %v35
  %v174 = vunpack.c.l.b16 %v36
  %v175 = vunpack.c.l.b16 %v37
  %v176 = vunpack.c.l.b16 %v38
  %v177 = vunpack.c.l.b16 %v39
  %v178 = vunpack.c.l.b16 %v40
  %v179 = vunpack.c.l.b16 %v41
  %v180 = vunpack.c.l.b16 %v42
  %v181 = vunpack.c.l.b16 %v43
  %v182 = vunpack.c.l.b16 %v44
  %v183 = vunpack.c.l.b16 %v45
  %v184 = vunpack.c.l.b16 %v46
  %v185 = vunpack.c.l.b16 %v47
  %v186 = vunpack.c.l.b16 %v48
  %v187 = vunpack.c.l.b16 %v49
  %v188 = vunpack.c.l.b16 %v50
  %v189 = vunpack.c.l.b16 %v51
  %v190 = vunpack.c.l.b16 %v52
  %v191 = vunpack.c.l.b16 %v53
  %v192 = vunpack.c.l.b16 %v54
  %v193 = vunpack.c.l.b16 %v55
  %v194 = vunpack.c.l.b16 %v56
  %v195 = vunpack.c.l.b16 %v57
  %v196 = vunpack.c.l.b16 %v58
  %v197 = vunpack.c.l.b16 %v59
  %v198 = vunpack.c.l.b16 %v60
  %v199 = vunpack.c.l.b16 %v61
  %v200 = vunpack.c.l.b16 %v62
  %v201 = vunpack.c.l.b16 %v63
  %v202 = vunpack.c.l.b16 %v64
  %v203 = vunpack.c.l.b16 %v65
  %v204 = vunpack.c.l.b16 %v66
  %v205 = vunpack.c.l.b16 %v67
  %v206 = vunpack.c.l.b16 %v68
  %v207 = vunpack.c.l.b16 %v69
  %v208 = vunpack.c.l.b16 %v70
  %v209 = vunpack.c.l.b16 %v71
  %v210 = vunpack.c.l.b16 %v72
  %v211 = vunpack.c.l.b16 %v73
  %v212 = vunpack.c.l.b16 %v74
  %v213 = vunpack.c.l.b16 %v75
  %v214 = vunpack.c.l.b16 %v76
  %v215 = vunpack.c.l.b16 %v77
  %v216 = vunpack.c.l.b16 %v78
  %v217 = vunpack.c.l.b16 %v79
  %v218 = vunpack.c.l.b16 %v80
  %v219 = vunpack.c.l.b16 %v81
  %v220 = vpack.c.b16 %v157, %v156
  %v221 = vpack.c.b16 %v159, %v158
  %v222 = vpack.c.b16 %v161, %v160
  %v223 = vpack.c.b16 %v163, %v162
  %v224 = vpack.c.b16 %v165, %v164
  %v225 = vpack.c.b16 %v167, %v166
  %v226 = vpack.c.b16 %v169, %v168
  %v227 = vpack.c.b16 %v171, %v170
  %v228 = vpack.c.b16 %v173, %v172
  %v229 = vpack.c.b16 %v175, %v174
  %v230 = vpack.c.b16 %v177, %v176
  %v231 = vpack.c.b16 %v179, %v178
  %v232 = vpack.c.b16 %v181, %v180
  %v233 = vpack.c.b16 %v183, %v182
  %v234 = vpack.c.b16 %v185, %v184
  %v235 = vpack.c.b16 %v187, %v186
  %v236 = vpack.c.b16 %v189, %v188
  %v237 = vpack.c.b16 %v191, %v190
  %v238 = vpack.c.b16 %v193, %v192
  %v239 = vpack.c.b16 %v195, %v194
  %v240 = vpack.c.b16 %v197, %v196
  %v241 = vpack.c.b16 %v199, %v198
  %v242 = vpack.c.b16 %v201, %v200
  %v243 = vpack.c.b16 %v203, %v202
  %v244 = vpack.c.b16 %v205, %v204
  %v245 = vpack.c.b16 %v207, %v206
  %v246 = vpack.c.b16 %v209, %v208
  %v247 = vpack.c.b16 %v211, %v210
  %v248 = vpack.c.b16 %v213, %v212
  %v249 = vpack.c.b16 %v215, %v214
  %v250 = vpack.c.b16 %v217, %v216
  %v251 = vpack.c.b16 %v219, %v218
  %v255 = vunpack.c.l.b16 %v82
  %v256 = vunpack.c.l.b16 %v83
  %v257 = vunpack.c.l.b16 %v84
  %v258 = vpack.c.b16 %v256, %v255
  %v259 = vpack.c.b16 %v257, %v257
  %vm261 = vcmask 162816
  %v263 = vsel %vm261, %v220, 0
  %v266 = vsel %vm261, %v221, 0
  %v269 = vsel %vm261, %v222, 0
  %v272 = vsel %vm261, %v223, 0
  %v275 = vsel %vm261, %v224, 0
  %v278 = vsel %vm261, %v225, 0
  %v281 = vsel %vm261, %v226, 0
  %v284 = vsel %vm261, %v227, 0
  %v287 = vsel %vm261, %v228, 0
  %v290 = vsel %vm261, %v229, 0
  %v293 = vsel %vm261, %v230, 0
  %v296 = vsel %vm261, %v231, 0
  %v299 = vsel %vm261, %v232, 0
  %v302 = vsel %vm261, %v233, 0
  %v305 = vsel %vm261, %v234, 0
  %v308 = vsel %vm261, %v235, 0
  %v311 = vsel %vm261, %v236, 0
  %v314 = vsel %vm261, %v237, 0
  %v317 = vsel %vm261, %v238, 0
  %v320 = vsel %vm261, %v239, 0
  %v323 = vsel %vm261, %v240, 0
  %v326 = vsel %vm261, %v241, 0
  %v329 = vsel %vm261, %v242, 0
  %v332 = vsel %vm261, %v243, 0
  %v335 = vsel %vm261, %v244, 0
  %v338 = vsel %vm261, %v245, 0
  %v341 = vsel %vm261, %v246, 0
  %v344 = vsel %vm261, %v247, 0
  %v347 = vsel %vm261, %v248, 0
  %v350 = vsel %vm261, %v249, 0
  %v353 = vsel %vm261, %v250, 0
  %v356 = vsel %vm261, %v251, 0
  %vm358 = vcmask 1041408
  %v360 = vsel %vm358, %v259, 0
  %362 = vmatprep.subr.bf16.mxu0 0
  %363 = vmatpush1.bf16.msra.mxu0 0
  %364 = vmatprep.subr.bf16.mxu0 0
  %365 = vmatpush1.bf16.msra.mxu0 0
  %366 = vmatprep.subr.bf16.mxu0 0
  %367 = vmatpush1.bf16.msra.mxu0 0
  %368 = vmatprep.subr.bf16.mxu0 0
  %369 = vmatpush1.bf16.msra.mxu0 0
  %370 = vmatprep.subr.bf16.mxu0 0
  %371 = vmatpush1.bf16.msra.mxu0 0
  %372 = vmatprep.subr.bf16.mxu0 0
  %373 = vmatpush1.bf16.msra.mxu0 0
  %374 = vmatprep.subr.bf16.mxu0 0
  %375 = vmatpush1.bf16.msra.mxu0 %v360
  %376 = vmatprep.subr.bf16.mxu0 0
  %377 = vmatpush1.bf16.msra.mxu0 %v258
  %378 = vmatprep.subr.bf16.mxu0 0
  %379 = vmatpush2.bf16.msra.mxu0 0
  %380 = vmatprep.subr.bf16.mxu0 0
  %381 = vmatpush2.bf16.msra.mxu0 0
  %382 = vmatprep.subr.bf16.mxu0 0
  %383 = vmatpush2.bf16.msra.mxu0 0
  %384 = vmatprep.subr.bf16.mxu0 0
  %385 = vmatpush2.bf16.msra.mxu0 0
  %386 = vmatprep.subr.bf16.mxu0 0
  %387 = vmatpush2.bf16.msra.mxu0 0
  %388 = vmatprep.subr.bf16.mxu0 0
  %389 = vmatpush2.bf16.msra.mxu0 0
  %390 = vmatprep.subr.bf16.mxu0 0
  %391 = vmatpush2.bf16.msra.mxu0 0
  %392 = vmatprep.subr.bf16.mxu0 0
  %393 = vmatpush2.bf16.msra.mxu0 0
  %394 = vmatprep.mubr.bf16.mxu0 0
  %395 = vmatmul.mubr.bf16.gmra.mxu0 %v263
  %v396 = vpop.f32.mrf.mxu0
  %v397 = vadd.f32 %v90, %v396
  %v398 = vpop.f32.mrf.mxu0
  %v399 = vpop.f32.mrf.mxu0
  %v400 = vadd.f32 %v90, %v399
  %v401 = vpop.f32.mrf.mxu0
  %402 = vmatprep.mubr.bf16.mxu0 0
  %403 = vmatmul.mubr.bf16.gmra.mxu0 %v266
  %v404 = vpop.f32.mrf.mxu0
  %v405 = vadd.f32 %v90, %v404
  %v406 = vpop.f32.mrf.mxu0
  %v407 = vpop.f32.mrf.mxu0
  %v408 = vadd.f32 %v90, %v407
  %v409 = vpop.f32.mrf.mxu0
  %410 = vmatprep.mubr.bf16.mxu0 0
  %411 = vmatmul.mubr.bf16.gmra.mxu0 %v269
  %v412 = vpop.f32.mrf.mxu0
  %v413 = vadd.f32 %v90, %v412
  %v414 = vpop.f32.mrf.mxu0
  %v415 = vpop.f32.mrf.mxu0
  %v416 = vadd.f32 %v90, %v415
  %v417 = vpop.f32.mrf.mxu0
  %418 = vmatprep.mubr.bf16.mxu0 0
  %419 = vmatmul.mubr.bf16.gmra.mxu0 %v272
  %v420 = vpop.f32.mrf.mxu0
  %v421 = vadd.f32 %v90, %v420
  %v422 = vpop.f32.mrf.mxu0
  %v423 = vpop.f32.mrf.mxu0
  %v424 = vadd.f32 %v90, %v423
  %v425 = vpop.f32.mrf.mxu0
  %426 = vmatprep.mubr.bf16.mxu0 0
  %427 = vmatmul.mubr.bf16.gmra.mxu0 %v275
  %v428 = vpop.f32.mrf.mxu0
  %v429 = vadd.f32 %v90, %v428
  %v430 = vpop.f32.mrf.mxu0
  %v431 = vpop.f32.mrf.mxu0
  %v432 = vadd.f32 %v90, %v431
  %v433 = vpop.f32.mrf.mxu0
  %434 = vmatprep.mubr.bf16.mxu0 0
  %435 = vmatmul.mubr.bf16.gmra.mxu0 %v278
  %v436 = vpop.f32.mrf.mxu0
  %v437 = vadd.f32 %v90, %v436
  %v438 = vpop.f32.mrf.mxu0
  %v439 = vpop.f32.mrf.mxu0
  %v440 = vadd.f32 %v90, %v439
  %v441 = vpop.f32.mrf.mxu0
  %442 = vmatprep.mubr.bf16.mxu0 0
  %443 = vmatmul.mubr.bf16.gmra.mxu0 %v281
  %v444 = vpop.f32.mrf.mxu0
  %v445 = vadd.f32 %v90, %v444
  %v446 = vpop.f32.mrf.mxu0
  %v447 = vpop.f32.mrf.mxu0
  %v448 = vadd.f32 %v90, %v447
  %v449 = vpop.f32.mrf.mxu0
  %450 = vmatprep.mubr.bf16.mxu0 0
  %451 = vmatmul.mubr.bf16.gmra.mxu0 %v284
  %v452 = vpop.f32.mrf.mxu0
  %v453 = vadd.f32 %v90, %v452
  %v454 = vpop.f32.mrf.mxu0
  %v455 = vpop.f32.mrf.mxu0
  %v456 = vadd.f32 %v90, %v455
  %v457 = vpop.f32.mrf.mxu0
  %458 = vmatprep.mubr.bf16.mxu0 0
  %459 = vmatmul.mubr.bf16.gmra.mxu0 %v287
  %v460 = vpop.f32.mrf.mxu0
  %v461 = vadd.f32 %v90, %v460
  %v462 = vpop.f32.mrf.mxu0
  %v463 = vpop.f32.mrf.mxu0
  %v464 = vadd.f32 %v90, %v463
  %v465 = vpop.f32.mrf.mxu0
  %466 = vmatprep.mubr.bf16.mxu0 0
  %467 = vmatmul.mubr.bf16.gmra.mxu0 %v290
  %v468 = vpop.f32.mrf.mxu0
  %v469 = vadd.f32 %v90, %v468
  %v470 = vpop.f32.mrf.mxu0
  %v471 = vpop.f32.mrf.mxu0
  %v472 = vadd.f32 %v90, %v471
  %v473 = vpop.f32.mrf.mxu0
  %474 = vmatprep.mubr.bf16.mxu0 0
  %475 = vmatmul.mubr.bf16.gmra.mxu0 %v293
  %v476 = vpop.f32.mrf.mxu0
  %v477 = vadd.f32 %v90, %v476
  %v478 = vpop.f32.mrf.mxu0
  %v479 = vpop.f32.mrf.mxu0
  %v480 = vadd.f32 %v90, %v479
  %v481 = vpop.f32.mrf.mxu0
  %482 = vmatprep.mubr.bf16.mxu0 0
  %483 = vmatmul.mubr.bf16.gmra.mxu0 %v296
  %v484 = vpop.f32.mrf.mxu0
  %v485 = vadd.f32 %v90, %v484
  %v486 = vpop.f32.mrf.mxu0
  %v487 = vpop.f32.mrf.mxu0
  %v488 = vadd.f32 %v90, %v487
  %v489 = vpop.f32.mrf.mxu0
  %490 = vmatprep.mubr.bf16.mxu0 0
  %491 = vmatmul.mubr.bf16.gmra.mxu0 %v299
  %v492 = vpop.f32.mrf.mxu0
  %v493 = vadd.f32 %v90, %v492
  %v494 = vpop.f32.mrf.mxu0
  %v495 = vpop.f32.mrf.mxu0
  %v496 = vadd.f32 %v90, %v495
  %v497 = vpop.f32.mrf.mxu0
  %498 = vmatprep.mubr.bf16.mxu0 0
  %499 = vmatmul.mubr.bf16.gmra.mxu0 %v302
  %v500 = vpop.f32.mrf.mxu0
  %v501 = vadd.f32 %v90, %v500
  %v502 = vpop.f32.mrf.mxu0
  %v503 = vpop.f32.mrf.mxu0
  %v504 = vadd.f32 %v90, %v503
  %v505 = vpop.f32.mrf.mxu0
  %506 = vmatprep.mubr.bf16.mxu0 0
  %507 = vmatmul.mubr.bf16.gmra.mxu0 %v305
  %v508 = vpop.f32.mrf.mxu0
  %v509 = vadd.f32 %v90, %v508
  %v510 = vpop.f32.mrf.mxu0
  %v511 = vpop.f32.mrf.mxu0
  %v512 = vadd.f32 %v90, %v511
  %v513 = vpop.f32.mrf.mxu0
  %514 = vmatprep.mubr.bf16.mxu0 0
  %515 = vmatmul.mubr.bf16.gmra.mxu0 %v308
  %v516 = vpop.f32.mrf.mxu0
  %v517 = vadd.f32 %v90, %v516
  %v518 = vpop.f32.mrf.mxu0
  %v519 = vpop.f32.mrf.mxu0
  %v520 = vadd.f32 %v90, %v519
  %v521 = vpop.f32.mrf.mxu0
  %522 = vmatprep.mubr.bf16.mxu0 0
  %523 = vmatmul.mubr.bf16.gmra.mxu0 %v311
  %v524 = vpop.f32.mrf.mxu0
  %v525 = vadd.f32 %v90, %v524
  %v526 = vpop.f32.mrf.mxu0
  %v527 = vpop.f32.mrf.mxu0
  %v528 = vadd.f32 %v90, %v527
  %v529 = vpop.f32.mrf.mxu0
  %530 = vmatprep.mubr.bf16.mxu0 0
  %531 = vmatmul.mubr.bf16.gmra.mxu0 %v314
  %v532 = vpop.f32.mrf.mxu0
  %v533 = vadd.f32 %v90, %v532
  %v534 = vpop.f32.mrf.mxu0
  %v535 = vpop.f32.mrf.mxu0
  %v536 = vadd.f32 %v90, %v535
  %v537 = vpop.f32.mrf.mxu0
  %538 = vmatprep.mubr.bf16.mxu0 0
  %539 = vmatmul.mubr.bf16.gmra.mxu0 %v317
  %v540 = vpop.f32.mrf.mxu0
  %v541 = vadd.f32 %v90, %v540
  %v542 = vpop.f32.mrf.mxu0
  %v543 = vpop.f32.mrf.mxu0
  %v544 = vadd.f32 %v90, %v543
  %v545 = vpop.f32.mrf.mxu0
  %546 = vmatprep.mubr.bf16.mxu0 0
  %547 = vmatmul.mubr.bf16.gmra.mxu0 %v320
  %v548 = vpop.f32.mrf.mxu0
  %v549 = vadd.f32 %v90, %v548
  %v550 = vpop.f32.mrf.mxu0
  %v551 = vpop.f32.mrf.mxu0
  %v552 = vadd.f32 %v90, %v551
  %v553 = vpop.f32.mrf.mxu0
  %554 = vmatprep.mubr.bf16.mxu0 0
  %555 = vmatmul.mubr.bf16.gmra.mxu0 %v323
  %v556 = vpop.f32.mrf.mxu0
  %v557 = vadd.f32 %v90, %v556
  %v558 = vpop.f32.mrf.mxu0
  %v559 = vpop.f32.mrf.mxu0
  %v560 = vadd.f32 %v90, %v559
  %v561 = vpop.f32.mrf.mxu0
  %562 = vmatprep.mubr.bf16.mxu0 0
  %563 = vmatmul.mubr.bf16.gmra.mxu0 %v326
  %v564 = vpop.f32.mrf.mxu0
  %v565 = vadd.f32 %v90, %v564
  %v566 = vpop.f32.mrf.mxu0
  %v567 = vpop.f32.mrf.mxu0
  %v568 = vadd.f32 %v90, %v567
  %v569 = vpop.f32.mrf.mxu0
  %570 = vmatprep.mubr.bf16.mxu0 0
  %571 = vmatmul.mubr.bf16.gmra.mxu0 %v329
  %v572 = vpop.f32.mrf.mxu0
  %v573 = vadd.f32 %v90, %v572
  %v574 = vpop.f32.mrf.mxu0
  %v575 = vpop.f32.mrf.mxu0
  %v576 = vadd.f32 %v90, %v575
  %v577 = vpop.f32.mrf.mxu0
  %578 = vmatprep.mubr.bf16.mxu0 0
  %579 = vmatmul.mubr.bf16.gmra.mxu0 %v332
  %v580 = vpop.f32.mrf.mxu0
  %v581 = vadd.f32 %v90, %v580
  %v582 = vpop.f32.mrf.mxu0
  %v583 = vpop.f32.mrf.mxu0
  %v584 = vadd.f32 %v90, %v583
  %v585 = vpop.f32.mrf.mxu0
  %586 = vmatprep.mubr.bf16.mxu0 0
  %587 = vmatmul.mubr.bf16.gmra.mxu0 %v335
  %v588 = vpop.f32.mrf.mxu0
  %v589 = vadd.f32 %v90, %v588
  %v590 = vpop.f32.mrf.mxu0
  %v591 = vpop.f32.mrf.mxu0
  %v592 = vadd.f32 %v90, %v591
  %v593 = vpop.f32.mrf.mxu0
  %594 = vmatprep.mubr.bf16.mxu0 0
  %595 = vmatmul.mubr.bf16.gmra.mxu0 %v338
  %v596 = vpop.f32.mrf.mxu0
  %v597 = vadd.f32 %v90, %v596
  %v598 = vpop.f32.mrf.mxu0
  %v599 = vpop.f32.mrf.mxu0
  %v600 = vadd.f32 %v90, %v599
  %v601 = vpop.f32.mrf.mxu0
  %602 = vmatprep.mubr.bf16.mxu0 0
  %603 = vmatmul.mubr.bf16.gmra.mxu0 %v341
  %v604 = vpop.f32.mrf.mxu0
  %v605 = vadd.f32 %v90, %v604
  %v606 = vpop.f32.mrf.mxu0
  %v607 = vpop.f32.mrf.mxu0
  %v608 = vadd.f32 %v90, %v607
  %v609 = vpop.f32.mrf.mxu0
  %610 = vmatprep.mubr.bf16.mxu0 0
  %611 = vmatmul.mubr.bf16.gmra.mxu0 %v344
  %v612 = vpop.f32.mrf.mxu0
  %v613 = vadd.f32 %v90, %v612
  %v614 = vpop.f32.mrf.mxu0
  %v615 = vpop.f32.mrf.mxu0
  %v616 = vadd.f32 %v90, %v615
  %v617 = vpop.f32.mrf.mxu0
  %618 = vmatprep.mubr.bf16.mxu0 0
  %619 = vmatmul.mubr.bf16.gmra.mxu0 %v347
  %v620 = vpop.f32.mrf.mxu0
  %v621 = vadd.f32 %v90, %v620
  %v622 = vpop.f32.mrf.mxu0
  %v623 = vpop.f32.mrf.mxu0
  %v624 = vadd.f32 %v90, %v623
  %v625 = vpop.f32.mrf.mxu0
  %626 = vmatprep.mubr.bf16.mxu0 0
  %627 = vmatmul.mubr.bf16.gmra.mxu0 %v350
  %v628 = vpop.f32.mrf.mxu0
  %v629 = vadd.f32 %v90, %v628
  %v630 = vpop.f32.mrf.mxu0
  %v631 = vpop.f32.mrf.mxu0
  %v632 = vadd.f32 %v90, %v631
  %v633 = vpop.f32.mrf.mxu0
  %634 = vmatprep.mubr.bf16.mxu0 0
  %635 = vmatmul.mubr.bf16.gmra.mxu0 %v353
  %v636 = vpop.f32.mrf.mxu0
  %v637 = vadd.f32 %v90, %v636
  %v638 = vpop.f32.mrf.mxu0
  %v639 = vpop.f32.mrf.mxu0
  %v640 = vadd.f32 %v90, %v639
  %v641 = vpop.f32.mrf.mxu0
  %642 = vmatprep.mubr.bf16.mxu0 0
  %643 = vmatmul.mubr.bf16.gmra.mxu0 %v356
  %v644 = vpop.f32.mrf.mxu0
  %v645 = vadd.f32 %v90, %v644
  %v646 = vpop.f32.mrf.mxu0
  %v647 = vpop.f32.mrf.mxu0
  %v648 = vadd.f32 %v90, %v647
  %v649 = vpop.f32.mrf.mxu0
  %650 = vdwg.mxu0
  %v651 = vld [vmem:[%s1] sm:$0xf]
  %v652 = vld [vmem:[%s1 + $0x4] sm:$0xf]
  %v653 = vld [vmem:[%s1 + $0x8] sm:$0xf]
  %v654 = vld [vmem:[%s1 + $0xc] sm:$0xf]
  %v655 = vld [vmem:[%s1 + $0x10] sm:$0xf]
  %v656 = vld [vmem:[%s1 + $0x14] sm:$0xf]
  %v657 = vld [vmem:[%s1 + $0x18] sm:$0xf]
  %v658 = vld [vmem:[%s1 + $0x1c] sm:$0xf]
  %v659 = vld [vmem:[%s1 + $0x20] sm:$0xf]
  %v660 = vld [vmem:[%s1 + $0x24] sm:$0xf]
  %v661 = vld [vmem:[%s1 + $0x28] sm:$0xf]
  %v662 = vld [vmem:[%s1 + $0x2c] sm:$0xf]
  %v663 = vld [vmem:[%s1 + $0x30] sm:$0xf]
  %v664 = vld [vmem:[%s1 + $0x34] sm:$0xf]
  %v665 = vld [vmem:[%s1 + $0x38] sm:$0xf]
  %v666 = vld [vmem:[%s1 + $0x3c] sm:$0xf]
  %v667 = vld [vmem:[%s1 + $0x40] sm:$0xf]
  %v668 = vld [vmem:[%s1 + $0x44] sm:$0xf]
  %v669 = vld [vmem:[%s1 + $0x48] sm:$0xf]
  %v670 = vld [vmem:[%s1 + $0x4c] sm:$0xf]
  %v671 = vld [vmem:[%s1 + $0x50] sm:$0xf]
  %v672 = vld [vmem:[%s1 + $0x54] sm:$0xf]
  %v673 = vld [vmem:[%s1 + $0x58] sm:$0xf]
  %v674 = vld [vmem:[%s1 + $0x5c] sm:$0xf]
  %v675 = vld [vmem:[%s1 + $0x60] sm:$0xf]
  %v676 = vld [vmem:[%s1 + $0x64] sm:$0xf]
  %v677 = vld [vmem:[%s1 + $0x68] sm:$0xf]
  %v678 = vld [vmem:[%s1 + $0x6c] sm:$0xf]
  %v679 = vld [vmem:[%s1 + $0x70] sm:$0xf]
  %v680 = vld [vmem:[%s1 + $0x74] sm:$0xf]
  %v681 = vld [vmem:[%s1 + $0x78] sm:$0xf]
  %v682 = vld [vmem:[%s1 + $0x7c] sm:$0xf]
  %v683 = vld [vmem:[%s1 + $0x80] sm:$0xf]
  %v684 = vld [vmem:[%s1 + $0x84] sm:$0xf]
  %v685 = vld [vmem:[%s1 + $0x88] sm:$0xf]
  %v686 = vld [vmem:[%s1 + $0x8c] sm:$0xf]
  %v687 = vld [vmem:[%s1 + $0x90] sm:$0xf]
  %v688 = vld [vmem:[%s1 + $0x94] sm:$0xf]
  %v689 = vld [vmem:[%s1 + $0x98] sm:$0xf]
  %v690 = vld [vmem:[%s1 + $0x9c] sm:$0xf]
  %v691 = vld [vmem:[%s1 + $0xa0] sm:$0xf]
  %v692 = vld [vmem:[%s1 + $0xa4] sm:$0xf]
  %v693 = vld [vmem:[%s1 + $0xa8] sm:$0xf]
  %v694 = vld [vmem:[%s1 + $0xac] sm:$0xf]
  %v695 = vld [vmem:[%s1 + $0xb0] sm:$0xf]
  %v696 = vld [vmem:[%s1 + $0xb4] sm:$0xf]
  %v697 = vld [vmem:[%s1 + $0xb8] sm:$0xf]
  %v698 = vld [vmem:[%s1 + $0xbc] sm:$0xf]
  %v699 = vld [vmem:[%s1 + $0xc0] sm:$0xf]
  %v700 = vld [vmem:[%s1 + $0xc4] sm:$0xf]
  %v701 = vld [vmem:[%s1 + $0xc8] sm:$0xf]
  %v702 = vld [vmem:[%s1 + $0xcc] sm:$0xf]
  %v703 = vld [vmem:[%s1 + $0xd0] sm:$0xf]
  %v704 = vld [vmem:[%s1 + $0xd4] sm:$0xf]
  %v705 = vld [vmem:[%s1 + $0xd8] sm:$0xf]
  %v706 = vld [vmem:[%s1 + $0xdc] sm:$0xf]
  %v707 = vld [vmem:[%s1 + $0xe0] sm:$0xf]
  %v708 = vld [vmem:[%s1 + $0xe4] sm:$0xf]
  %v709 = vld [vmem:[%s1 + $0xe8] sm:$0xf]
  %v710 = vld [vmem:[%s1 + $0xec] sm:$0xf]
  %v711 = vld [vmem:[%s1 + $0xf0] sm:$0xf]
  %v712 = vld [vmem:[%s1 + $0xf4] sm:$0xf]
  %v713 = vld [vmem:[%s1 + $0xf8] sm:$0xf]
  %v714 = vld [vmem:[%s1 + $0xfc] sm:$0xf]
  %v715 = vunpack.c.l.bf16 %v651
  %v716 = vunpack.c.l.bf16 %v652
  %v717 = vunpack.c.l.bf16 %v653
  %v718 = vunpack.c.l.bf16 %v654
  %v719 = vunpack.c.l.bf16 %v655
  %v720 = vunpack.c.l.bf16 %v656
  %v721 = vunpack.c.l.bf16 %v657
  %v722 = vunpack.c.l.bf16 %v658
  %v723 = vunpack.c.l.bf16 %v659
  %v724 = vunpack.c.l.bf16 %v660
  %v725 = vunpack.c.l.bf16 %v661
  %v726 = vunpack.c.l.bf16 %v662
  %v727 = vunpack.c.l.bf16 %v663
  %v728 = vunpack.c.l.bf16 %v664
  %v729 = vunpack.c.l.bf16 %v665
  %v730 = vunpack.c.l.bf16 %v666
  %v731 = vunpack.c.l.bf16 %v667
  %v732 = vunpack.c.l.bf16 %v668
  %v733 = vunpack.c.l.bf16 %v669
  %v734 = vunpack.c.l.bf16 %v670
  %v735 = vunpack.c.l.bf16 %v671
  %v736 = vunpack.c.l.bf16 %v672
  %v737 = vunpack.c.l.bf16 %v673
  %v738 = vunpack.c.l.bf16 %v674
  %v739 = vunpack.c.l.bf16 %v675
  %v740 = vunpack.c.l.bf16 %v676
  %v741 = vunpack.c.l.bf16 %v677
  %v742 = vunpack.c.l.bf16 %v678
  %v743 = vunpack.c.l.bf16 %v679
  %v744 = vunpack.c.l.bf16 %v680
  %v745 = vunpack.c.l.bf16 %v681
  %v746 = vunpack.c.l.bf16 %v682
  %v747 = vunpack.c.l.bf16 %v683
  %v748 = vunpack.c.l.bf16 %v684
  %v749 = vunpack.c.l.bf16 %v685
  %v750 = vunpack.c.l.bf16 %v686
  %v751 = vunpack.c.l.bf16 %v687
  %v752 = vunpack.c.l.bf16 %v688
  %v753 = vunpack.c.l.bf16 %v689
  %v754 = vunpack.c.l.bf16 %v690
  %v755 = vunpack.c.l.bf16 %v691
  %v756 = vunpack.c.l.bf16 %v692
  %v757 = vunpack.c.l.bf16 %v693
  %v758 = vunpack.c.l.bf16 %v694
  %v759 = vunpack.c.l.bf16 %v695
  %v760 = vunpack.c.l.bf16 %v696
  %v761 = vunpack.c.l.bf16 %v697
  %v762 = vunpack.c.l.bf16 %v698
  %v763 = vunpack.c.l.bf16 %v699
  %v764 = vunpack.c.l.bf16 %v700
  %v765 = vunpack.c.l.bf16 %v701
  %v766 = vunpack.c.l.bf16 %v702
  %v767 = vunpack.c.l.bf16 %v703
  %v768 = vunpack.c.l.bf16 %v704
  %v769 = vunpack.c.l.bf16 %v705
  %v770 = vunpack.c.l.bf16 %v706
  %v771 = vunpack.c.l.bf16 %v707
  %v772 = vunpack.c.l.bf16 %v708
  %v773 = vunpack.c.l.bf16 %v709
  %v774 = vunpack.c.l.bf16 %v710
  %v775 = vunpack.c.l.bf16 %v711
  %v776 = vunpack.c.l.bf16 %v712
  %v777 = vunpack.c.l.bf16 %v713
  %v778 = vunpack.c.l.bf16 %v714
  %v779 = vadd.f32 %v397, %v715
  %v780 = vadd.f32 %v400, %v716
  %v781 = vadd.f32 %v405, %v717
  %v782 = vadd.f32 %v408, %v718
  %v783 = vadd.f32 %v413, %v719
  %v784 = vadd.f32 %v416, %v720
  %v785 = vadd.f32 %v421, %v721
  %v786 = vadd.f32 %v424, %v722
  %v787 = vadd.f32 %v429, %v723
  %v788 = vadd.f32 %v432, %v724
  %v789 = vadd.f32 %v437, %v725
  %v790 = vadd.f32 %v440, %v726
  %v791 = vadd.f32 %v445, %v727
  %v792 = vadd.f32 %v448, %v728
  %v793 = vadd.f32 %v453, %v729
  %v794 = vadd.f32 %v456, %v730
  %v795 = vadd.f32 %v461, %v731
  %v796 = vadd.f32 %v464, %v732
  %v797 = vadd.f32 %v469, %v733
  %v798 = vadd.f32 %v472, %v734
  %v799 = vadd.f32 %v477, %v735
  %v800 = vadd.f32 %v480, %v736
  %v801 = vadd.f32 %v485, %v737
  %v802 = vadd.f32 %v488, %v738
  %v803 = vadd.f32 %v493, %v739
  %v804 = vadd.f32 %v496, %v740
  %v805 = vadd.f32 %v501, %v741
  %v806 = vadd.f32 %v504, %v742
  %v807 = vadd.f32 %v509, %v743
  %v808 = vadd.f32 %v512, %v744
  %v809 = vadd.f32 %v517, %v745
  %v810 = vadd.f32 %v520, %v746
  %v811 = vadd.f32 %v525, %v747
  %v812 = vadd.f32 %v528, %v748
  %v813 = vadd.f32 %v533, %v749
  %v814 = vadd.f32 %v536, %v750
  %v815 = vadd.f32 %v541, %v751
  %v816 = vadd.f32 %v544, %v752
  %v817 = vadd.f32 %v549, %v753
  %v818 = vadd.f32 %v552, %v754
  %v819 = vadd.f32 %v557, %v755
  %v820 = vadd.f32 %v560, %v756
  %v821 = vadd.f32 %v565, %v757
  %v822 = vadd.f32 %v568, %v758
  %v823 = vadd.f32 %v573, %v759
  %v824 = vadd.f32 %v576, %v760
  %v825 = vadd.f32 %v581, %v761
  %v826 = vadd.f32 %v584, %v762
  %v827 = vadd.f32 %v589, %v763
  %v828 = vadd.f32 %v592, %v764
  %v829 = vadd.f32 %v597, %v765
  %v830 = vadd.f32 %v600, %v766
  %v831 = vadd.f32 %v605, %v767
  %v832 = vadd.f32 %v608, %v768
  %v833 = vadd.f32 %v613, %v769
  %v834 = vadd.f32 %v616, %v770
  %v835 = vadd.f32 %v621, %v771
  %v836 = vadd.f32 %v624, %v772
  %v837 = vadd.f32 %v629, %v773
  %v838 = vadd.f32 %v632, %v774
  %v839 = vadd.f32 %v637, %v775
  %v840 = vadd.f32 %v640, %v776
  %v841 = vadd.f32 %v645, %v777
  %v842 = vadd.f32 %v648, %v778
  %v843 = vmax.f32 %v779, 0.0
  %v844 = vmax.f32 %v780, 0.0
  %v845 = vmax.f32 %v781, 0.0
  %v846 = vmax.f32 %v782, 0.0
  %v847 = vmax.f32 %v783, 0.0
  %v848 = vmax.f32 %v784, 0.0
  %v849 = vmax.f32 %v785, 0.0
  %v850 = vmax.f32 %v786, 0.0
  %v851 = vmax.f32 %v787, 0.0
  %v852 = vmax.f32 %v788, 0.0
  %v853 = vmax.f32 %v789, 0.0
  %v854 = vmax.f32 %v790, 0.0
  %v855 = vmax.f32 %v791, 0.0
  %v856 = vmax.f32 %v792, 0.0
  %v857 = vmax.f32 %v793, 0.0
  %v858 = vmax.f32 %v794, 0.0
  %v859 = vmax.f32 %v795, 0.0
  %v860 = vmax.f32 %v796, 0.0
  %v861 = vmax.f32 %v797, 0.0
  %v862 = vmax.f32 %v798, 0.0
  %v863 = vmax.f32 %v799, 0.0
  %v864 = vmax.f32 %v800, 0.0
  %v865 = vmax.f32 %v801, 0.0
  %v866 = vmax.f32 %v802, 0.0
  %v867 = vmax.f32 %v803, 0.0
  %v868 = vmax.f32 %v804, 0.0
  %v869 = vmax.f32 %v805, 0.0
  %v870 = vmax.f32 %v806, 0.0
  %v871 = vmax.f32 %v807, 0.0
  %v872 = vmax.f32 %v808, 0.0
  %v873 = vmax.f32 %v809, 0.0
  %v874 = vmax.f32 %v810, 0.0
  %v875 = vmax.f32 %v811, 0.0
  %v876 = vmax.f32 %v812, 0.0
  %v877 = vmax.f32 %v813, 0.0
  %v878 = vmax.f32 %v814, 0.0
  %v879 = vmax.f32 %v815, 0.0
  %v880 = vmax.f32 %v816, 0.0
  %v881 = vmax.f32 %v817, 0.0
  %v882 = vmax.f32 %v818, 0.0
  %v883 = vmax.f32 %v819, 0.0
  %v884 = vmax.f32 %v820, 0.0
  %v885 = vmax.f32 %v821, 0.0
  %v886 = vmax.f32 %v822, 0.0
  %v887 = vmax.f32 %v823, 0.0
  %v888 = vmax.f32 %v824, 0.0
  %v889 = vmax.f32 %v825, 0.0
  %v890 = vmax.f32 %v826, 0.0
  %v891 = vmax.f32 %v827, 0.0
  %v892 = vmax.f32 %v828, 0.0
  %v893 = vmax.f32 %v829, 0.0
  %v894 = vmax.f32 %v830, 0.0
  %v895 = vmax.f32 %v831, 0.0
  %v896 = vmax.f32 %v832, 0.0
  %v897 = vmax.f32 %v833, 0.0
  %v898 = vmax.f32 %v834, 0.0
  %v899 = vmax.f32 %v835, 0.0
  %v900 = vmax.f32 %v836, 0.0
  %v901 = vmax.f32 %v837, 0.0
  %v902 = vmax.f32 %v838, 0.0
  %v903 = vmax.f32 %v839, 0.0
  %v904 = vmax.f32 %v840, 0.0
  %v905 = vmax.f32 %v841, 0.0
  %v906 = vmax.f32 %v842, 0.0
  %v907 = vpack.c.bf16 %v844, %v843
  %v908 = vpack.c.bf16 %v846, %v845
  %v909 = vpack.c.bf16 %v848, %v847
  %v910 = vpack.c.bf16 %v850, %v849
  %v911 = vpack.c.bf16 %v852, %v851
  %v912 = vpack.c.bf16 %v854, %v853
  %v913 = vpack.c.bf16 %v856, %v855
  %v914 = vpack.c.bf16 %v858, %v857
  %v915 = vpack.c.bf16 %v860, %v859
  %v916 = vpack.c.bf16 %v862, %v861
  %v917 = vpack.c.bf16 %v864, %v863
  %v918 = vpack.c.bf16 %v866, %v865
  %v919 = vpack.c.bf16 %v868, %v867
  %v920 = vpack.c.bf16 %v870, %v869
  %v921 = vpack.c.bf16 %v872, %v871
  %v922 = vpack.c.bf16 %v874, %v873
  %v923 = vpack.c.bf16 %v876, %v875
  %v924 = vpack.c.bf16 %v878, %v877
  %v925 = vpack.c.bf16 %v880, %v879
  %v926 = vpack.c.bf16 %v882, %v881
  %v927 = vpack.c.bf16 %v884, %v883
  %v928 = vpack.c.bf16 %v886, %v885
  %v929 = vpack.c.bf16 %v888, %v887
  %v930 = vpack.c.bf16 %v890, %v889
  %v931 = vpack.c.bf16 %v892, %v891
  %v932 = vpack.c.bf16 %v894, %v893
  %v933 = vpack.c.bf16 %v896, %v895
  %v934 = vpack.c.bf16 %v898, %v897
  %v935 = vpack.c.bf16 %v900, %v899
  %v936 = vpack.c.bf16 %v902, %v901
  %v937 = vpack.c.bf16 %v904, %v903
  %v938 = vpack.c.bf16 %v906, %v905
  %v971 = vunpack.c.l.b16 %v907
  %v972 = vunpack.c.h.b16 %v907
  %v973 = vunpack.c.l.b16 %v908
  %v974 = vunpack.c.h.b16 %v908
  %v975 = vunpack.c.l.b16 %v909
  %v976 = vunpack.c.h.b16 %v909
  %v977 = vunpack.c.l.b16 %v910
  %v978 = vunpack.c.h.b16 %v910
  %v979 = vunpack.c.l.b16 %v911
  %v980 = vunpack.c.h.b16 %v911
  %v981 = vunpack.c.l.b16 %v912
  %v982 = vunpack.c.h.b16 %v912
  %v983 = vunpack.c.l.b16 %v913
  %v984 = vunpack.c.h.b16 %v913
  %v985 = vunpack.c.l.b16 %v914
  %v986 = vunpack.c.h.b16 %v914
  %v987 = vunpack.c.l.b16 %v915
  %v988 = vunpack.c.h.b16 %v915
  %v989 = vunpack.c.l.b16 %v916
  %v990 = vunpack.c.h.b16 %v916
  %v991 = vunpack.c.l.b16 %v917
  %v992 = vunpack.c.h.b16 %v917
  %v993 = vunpack.c.l.b16 %v918
  %v994 = vunpack.c.h.b16 %v918
  %v995 = vunpack.c.l.b16 %v919
  %v996 = vunpack.c.h.b16 %v919
  %v997 = vunpack.c.l.b16 %v920
  %v998 = vunpack.c.h.b16 %v920
  %v999 = vunpack.c.l.b16 %v921
  %v1000 = vunpack.c.h.b16 %v921
  %v1001 = vunpack.c.l.b16 %v922
  %v1002 = vunpack.c.h.b16 %v922
  %v1003 = vunpack.c.l.b16 %v923
  %v1004 = vunpack.c.h.b16 %v923
  %v1005 = vunpack.c.l.b16 %v924
  %v1006 = vunpack.c.h.b16 %v924
  %v1007 = vunpack.c.l.b16 %v925
  %v1008 = vunpack.c.h.b16 %v925
  %v1009 = vunpack.c.l.b16 %v926
  %v1010 = vunpack.c.h.b16 %v926
  %v1011 = vunpack.c.l.b16 %v927
  %v1012 = vunpack.c.h.b16 %v927
  %v1013 = vunpack.c.l.b16 %v928
  %v1014 = vunpack.c.h.b16 %v928
  %v1015 = vunpack.c.l.b16 %v929
  %v1016 = vunpack.c.h.b16 %v929
  %v1017 = vunpack.c.l.b16 %v930
  %v1018 = vunpack.c.h.b16 %v930
  %v1019 = vunpack.c.l.b16 %v931
  %v1020 = vunpack.c.h.b16 %v931
  %v1021 = vunpack.c.l.b16 %v932
  %v1022 = vunpack.c.h.b16 %v932
  %v1023 = vunpack.c.l.b16 %v933
  %v1024 = vunpack.c.h.b16 %v933
  %v1025 = vunpack.c.l.b16 %v934
  %v1026 = vunpack.c.h.b16 %v934
  %v1027 = vunpack.c.l.b16 %v935
  %v1028 = vunpack.c.h.b16 %v935
  %v1029 = vunpack.c.l.b16 %v936
  %v1030 = vunpack.c.h.b16 %v936
  %v1031 = vunpack.c.l.b16 %v937
  %v1032 = vunpack.c.h.b16 %v937
  %v1033 = vunpack.c.l.b16 %v938
  %v1034 = vunpack.c.h.b16 %v938
  %v1035 = vpack.c.b16 %v971, %v971
  %v1036 = vpack.c.b16 %v972, %v972
  %v1037 = vpack.c.b16 %v973, %v973
  %v1038 = vpack.c.b16 %v974, %v974
  %v1039 = vpack.c.b16 %v975, %v975
  %v1040 = vpack.c.b16 %v976, %v976
  %v1041 = vpack.c.b16 %v977, %v977
  %v1042 = vpack.c.b16 %v978, %v978
  %v1043 = vpack.c.b16 %v979, %v979
  %v1044 = vpack.c.b16 %v980, %v980
  %v1045 = vpack.c.b16 %v981, %v981
  %v1046 = vpack.c.b16 %v982, %v982
  %v1047 = vpack.c.b16 %v983, %v983
  %v1048 = vpack.c.b16 %v984, %v984
  %v1049 = vpack.c.b16 %v985, %v985
  %v1050 = vpack.c.b16 %v986, %v986
  %v1051 = vpack.c.b16 %v987, %v987
  %v1052 = vpack.c.b16 %v988, %v988
  %v1053 = vpack.c.b16 %v989, %v989
  %v1054 = vpack.c.b16 %v990, %v990
  %v1055 = vpack.c.b16 %v991, %v991
  %v1056 = vpack.c.b16 %v992, %v992
  %v1057 = vpack.c.b16 %v993, %v993
  %v1058 = vpack.c.b16 %v994, %v994
  %v1059 = vpack.c.b16 %v995, %v995
  %v1060 = vpack.c.b16 %v996, %v996
  %v1061 = vpack.c.b16 %v997, %v997
  %v1062 = vpack.c.b16 %v998, %v998
  %v1063 = vpack.c.b16 %v999, %v999
  %v1064 = vpack.c.b16 %v1000, %v1000
  %v1065 = vpack.c.b16 %v1001, %v1001
  %v1066 = vpack.c.b16 %v1002, %v1002
  %v1067 = vpack.c.b16 %v1003, %v1003
  %v1068 = vpack.c.b16 %v1004, %v1004
  %v1069 = vpack.c.b16 %v1005, %v1005
  %v1070 = vpack.c.b16 %v1006, %v1006
  %v1071 = vpack.c.b16 %v1007, %v1007
  %v1072 = vpack.c.b16 %v1008, %v1008
  %v1073 = vpack.c.b16 %v1009, %v1009
  %v1074 = vpack.c.b16 %v1010, %v1010
  %v1075 = vpack.c.b16 %v1011, %v1011
  %v1076 = vpack.c.b16 %v1012, %v1012
  %v1077 = vpack.c.b16 %v1013, %v1013
  %v1078 = vpack.c.b16 %v1014, %v1014
  %v1079 = vpack.c.b16 %v1015, %v1015
  %v1080 = vpack.c.b16 %v1016, %v1016
  %v1081 = vpack.c.b16 %v1017, %v1017
  %v1082 = vpack.c.b16 %v1018, %v1018
  %v1083 = vpack.c.b16 %v1019, %v1019
  %v1084 = vpack.c.b16 %v1020, %v1020
  %v1085 = vpack.c.b16 %v1021, %v1021
  %v1086 = vpack.c.b16 %v1022, %v1022
  %v1087 = vpack.c.b16 %v1023, %v1023
  %v1088 = vpack.c.b16 %v1024, %v1024
  %v1089 = vpack.c.b16 %v1025, %v1025
  %v1090 = vpack.c.b16 %v1026, %v1026
  %v1091 = vpack.c.b16 %v1027, %v1027
  %v1092 = vpack.c.b16 %v1028, %v1028
  %v1093 = vpack.c.b16 %v1029, %v1029
  %v1094 = vpack.c.b16 %v1030, %v1030
  %v1095 = vpack.c.b16 %v1031, %v1031
  %v1096 = vpack.c.b16 %v1032, %v1032
  %v1097 = vpack.c.b16 %v1033, %v1033
  %v1098 = vpack.c.b16 %v1034, %v1034
  %vm1163 = vcmask 158720
  %1164 = vst.msk [vmem:[%s4] sm:$0xf] %vm1163, %v1035
  %1165 = vst.msk [vmem:[%s4 + $0x4] sm:$0xf] %vm1163, %v1036
  %1166 = vst.msk [vmem:[%s4 + $0x8] sm:$0xf] %vm1163, %v1037
  %1167 = vst.msk [vmem:[%s4 + $0xc] sm:$0xf] %vm1163, %v1038
  %1168 = vst.msk [vmem:[%s4 + $0x10] sm:$0xf] %vm1163, %v1039
  %1169 = vst.msk [vmem:[%s4 + $0x14] sm:$0xf] %vm1163, %v1040
  %1170 = vst.msk [vmem:[%s4 + $0x18] sm:$0xf] %vm1163, %v1041
  %1171 = vst.msk [vmem:[%s4 + $0x1c] sm:$0xf] %vm1163, %v1042
  %1172 = vst.msk [vmem:[%s4 + $0x20] sm:$0xf] %vm1163, %v1043
  %1173 = vst.msk [vmem:[%s4 + $0x24] sm:$0xf] %vm1163, %v1044
  %1174 = vst.msk [vmem:[%s4 + $0x28] sm:$0xf] %vm1163, %v1045
  %1175 = vst.msk [vmem:[%s4 + $0x2c] sm:$0xf] %vm1163, %v1046
  %1176 = vst.msk [vmem:[%s4 + $0x30] sm:$0xf] %vm1163, %v1047
  %1177 = vst.msk [vmem:[%s4 + $0x34] sm:$0xf] %vm1163, %v1048
  %1178 = vst.msk [vmem:[%s4 + $0x38] sm:$0xf] %vm1163, %v1049
  %1179 = vst.msk [vmem:[%s4 + $0x3c] sm:$0xf] %vm1163, %v1050
  %1180 = vst.msk [vmem:[%s4 + $0x40] sm:$0xf] %vm1163, %v1051
  %1181 = vst.msk [vmem:[%s4 + $0x44] sm:$0xf] %vm1163, %v1052
  %1182 = vst.msk [vmem:[%s4 + $0x48] sm:$0xf] %vm1163, %v1053
  %1183 = vst.msk [vmem:[%s4 + $0x4c] sm:$0xf] %vm1163, %v1054
  %1184 = vst.msk [vmem:[%s4 + $0x50] sm:$0xf] %vm1163, %v1055
  %1185 = vst.msk [vmem:[%s4 + $0x54] sm:$0xf] %vm1163, %v1056
  %1186 = vst.msk [vmem:[%s4 + $0x58] sm:$0xf] %vm1163, %v1057
  %1187 = vst.msk [vmem:[%s4 + $0x5c] sm:$0xf] %vm1163, %v1058
  %1188 = vst.msk [vmem:[%s4 + $0x60] sm:$0xf] %vm1163, %v1059
  %1189 = vst.msk [vmem:[%s4 + $0x64] sm:$0xf] %vm1163, %v1060
  %1190 = vst.msk [vmem:[%s4 + $0x68] sm:$0xf] %vm1163, %v1061
  %1191 = vst.msk [vmem:[%s4 + $0x6c] sm:$0xf] %vm1163, %v1062
  %1192 = vst.msk [vmem:[%s4 + $0x70] sm:$0xf] %vm1163, %v1063
  %1193 = vst.msk [vmem:[%s4 + $0x74] sm:$0xf] %vm1163, %v1064
  %1194 = vst.msk [vmem:[%s4 + $0x78] sm:$0xf] %vm1163, %v1065
  %1195 = vst.msk [vmem:[%s4 + $0x7c] sm:$0xf] %vm1163, %v1066
  %1196 = vst.msk [vmem:[%s4 + $0x80] sm:$0xf] %vm1163, %v1067
  %1197 = vst.msk [vmem:[%s4 + $0x84] sm:$0xf] %vm1163, %v1068
  %1198 = vst.msk [vmem:[%s4 + $0x88] sm:$0xf] %vm1163, %v1069
  %1199 = vst.msk [vmem:[%s4 + $0x8c] sm:$0xf] %vm1163, %v1070
  %1200 = vst.msk [vmem:[%s4 + $0x90] sm:$0xf] %vm1163, %v1071
  %1201 = vst.msk [vmem:[%s4 + $0x94] sm:$0xf] %vm1163, %v1072
  %1202 = vst.msk [vmem:[%s4 + $0x98] sm:$0xf] %vm1163, %v1073
  %1203 = vst.msk [vmem:[%s4 + $0x9c] sm:$0xf] %vm1163, %v1074
  %1204 = vst.msk [vmem:[%s4 + $0xa0] sm:$0xf] %vm1163, %v1075
  %1205 = vst.msk [vmem:[%s4 + $0xa4] sm:$0xf] %vm1163, %v1076
  %1206 = vst.msk [vmem:[%s4 + $0xa8] sm:$0xf] %vm1163, %v1077
  %1207 = vst.msk [vmem:[%s4 + $0xac] sm:$0xf] %vm1163, %v1078
  %1208 = vst.msk [vmem:[%s4 + $0xb0] sm:$0xf] %vm1163, %v1079
  %1209 = vst.msk [vmem:[%s4 + $0xb4] sm:$0xf] %vm1163, %v1080
  %1210 = vst.msk [vmem:[%s4 + $0xb8] sm:$0xf] %vm1163, %v1081
  %1211 = vst.msk [vmem:[%s4 + $0xbc] sm:$0xf] %vm1163, %v1082
  %1212 = vst.msk [vmem:[%s4 + $0xc0] sm:$0xf] %vm1163, %v1083
  %1213 = vst.msk [vmem:[%s4 + $0xc4] sm:$0xf] %vm1163, %v1084
  %1214 = vst.msk [vmem:[%s4 + $0xc8] sm:$0xf] %vm1163, %v1085
  %1215 = vst.msk [vmem:[%s4 + $0xcc] sm:$0xf] %vm1163, %v1086
  %1216 = vst.msk [vmem:[%s4 + $0xd0] sm:$0xf] %vm1163, %v1087
  %1217 = vst.msk [vmem:[%s4 + $0xd4] sm:$0xf] %vm1163, %v1088
  %1218 = vst.msk [vmem:[%s4 + $0xd8] sm:$0xf] %vm1163, %v1089
  %1219 = vst.msk [vmem:[%s4 + $0xdc] sm:$0xf] %vm1163, %v1090
  %1220 = vst.msk [vmem:[%s4 + $0xe0] sm:$0xf] %vm1163, %v1091
  %1221 = vst.msk [vmem:[%s4 + $0xe4] sm:$0xf] %vm1163, %v1092
  %1222 = vst.msk [vmem:[%s4 + $0xe8] sm:$0xf] %vm1163, %v1093
  %1223 = vst.msk [vmem:[%s4 + $0xec] sm:$0xf] %vm1163, %v1094
  %1224 = vst.msk [vmem:[%s4 + $0xf0] sm:$0xf] %vm1163, %v1095
  %1225 = vst.msk [vmem:[%s4 + $0xf4] sm:$0xf] %vm1163, %v1096
  %1226 = vst.msk [vmem:[%s4 + $0xf8] sm:$0xf] %vm1163, %v1097
  %1227 = vst.msk [vmem:[%s4 + $0xfc] sm:$0xf] %vm1163, %v1098
  // Predicated region
  $region18: #{fno2d_forward.12} parent=0 // pred_check
    _
  $region19: #{fno2d_forward.12} parent=0 // pred_check_branch
    %1229 = sbr.rel (0) target = $region21
  $region20: #{fno2d_forward.12} parent=0 // pred_region
    _
  $region21: #{fno2d_forward.12} parent=0 // pred_fallthru
    _
  // Predicated region
  $region22: #{fno2d_forward.12} parent=0 // pred_check
    _
  $region23: #{fno2d_forward.12} parent=0 // pred_check_branch
    %1231 = sbr.rel (0) target = $region25
  $region24: #{fno2d_forward.12} parent=0 // pred_region
    _
  $region25: #{fno2d_forward.12} parent=0 // pred_fallthru
    _

// kernel: fno2d_forward.19
$region0: #{fno2d_forward.19}
  #allocation0 [shape = 'u32[]', space=smem, size = 0x4, offset = 0x4, fixed_abs, tag = 'smem constant byte address 0x4 - core index']
  #allocation1 [shape = 'u32[144,128]{1,0:T(1,128)}', space=vmem, size = 0x12000, scoped, tag = 'internal scratch']
  #allocation2 [shape = 'f32[1,1]{1,0:T(1,128)S(1)}', space=vmem, size = 0x200, scoped, tag = 'scoped memory for fno2d_forward.19']
  %s0 = inlined_call_operand.vmem [shape: bf16[512,20], index: 0, kind: input, shape index: {}]
  %s1 = inlined_call_operand.vmem [shape: bf16[20,64], index: 1, kind: input, shape index: {}]
  %s2 = inlined_call_operand.vmem [shape: f32[1,64], index: 2, kind: input, shape index: {}]
  %s3 = inlined_call_operand.vmem [shape: f32[64,1], index: 3, kind: input, shape index: {}]
  %s4 = inlined_call_operand.<no memory space> [shape: f32[1,1], index: 4, kind: input, shape index: {}]
  %s5 = inlined_call_operand.vmem [shape: f32[512,1], index: 5, kind: output, shape index: {}]
  %s6 = sld [smem:[#allocation0]]
  $region30: #{fno2d_forward.19} parent=0
    _
  %s8 = ssub.s32 1, %s6
  %s9 = scalar_select 0, %s8, %s6
  %v10 = vstv %s4
  %11 = vst [vmem:[#allocation2] sm:$0x1] %v10
  // Predicated region
  $region2: #{fno2d_forward.19} parent=0 // pred_check
    _
  $region3: #{fno2d_forward.19} parent=0 // pred_check_branch
    %13 = sbr.rel (0) target = $region5
  $region4: #{fno2d_forward.19} parent=0 // pred_region
    _
  $region5: #{fno2d_forward.19} parent=0 // pred_fallthru
    _
  // Predicated region
  $region6: #{fno2d_forward.19} parent=0 // pred_check
    _
  $region7: #{fno2d_forward.19} parent=0 // pred_check_branch
    %15 = sbr.rel (0) target = $region9
  $region8: #{fno2d_forward.19} parent=0 // pred_region
    _
  $region9: #{fno2d_forward.19} parent=0 // pred_fallthru
    _
  // Predicated region
  $region10: #{fno2d_forward.19} parent=0 // pred_check
    _
  $region11: #{fno2d_forward.19} parent=0 // pred_check_branch
    %17 = sbr.rel (0) target = $region13
  $region12: #{fno2d_forward.19} parent=0 // pred_region
    _
  $region13: #{fno2d_forward.19} parent=0 // pred_fallthru
    _
  // Predicated region
  $region14: #{fno2d_forward.19} parent=0 // pred_check
    _
  $region15: #{fno2d_forward.19} parent=0 // pred_check_branch
    %19 = sbr.rel (0) target = $region17
  $region16: #{fno2d_forward.19} parent=0 // pred_region
    _
  $region17: #{fno2d_forward.19} parent=0 // pred_fallthru
    _
  // Predicated region
  $region18: #{fno2d_forward.19} parent=0 // pred_check
    _
  $region19: #{fno2d_forward.19} parent=0 // pred_check_branch
    %21 = sbr.rel (0) target = $region21
  $region20: #{fno2d_forward.19} parent=0 // pred_region
    _
  $region21: #{fno2d_forward.19} parent=0 // pred_fallthru
    _
  %v23 = vld [vmem:[%s0] sm:$0xf]
  %v24 = vld [vmem:[%s0 + $0x4] sm:$0xf]
  %v25 = vld [vmem:[%s0 + $0x8] sm:$0xf]
  %v26 = vld [vmem:[%s0 + $0xc] sm:$0xf]
  %v27 = vld [vmem:[%s0 + $0x10] sm:$0xf]
  %v28 = vld [vmem:[%s0 + $0x14] sm:$0xf]
  %v29 = vld [vmem:[%s0 + $0x18] sm:$0xf]
  %v30 = vld [vmem:[%s0 + $0x1c] sm:$0xf]
  %v31 = vld [vmem:[%s0 + $0x20] sm:$0xf]
  %v32 = vld [vmem:[%s0 + $0x24] sm:$0xf]
  %v33 = vld [vmem:[%s0 + $0x28] sm:$0xf]
  %v34 = vld [vmem:[%s0 + $0x2c] sm:$0xf]
  %v35 = vld [vmem:[%s0 + $0x30] sm:$0xf]
  %v36 = vld [vmem:[%s0 + $0x34] sm:$0xf]
  %v37 = vld [vmem:[%s0 + $0x38] sm:$0xf]
  %v38 = vld [vmem:[%s0 + $0x3c] sm:$0xf]
  %v39 = vld [vmem:[%s0 + $0x40] sm:$0xf]
  %v40 = vld [vmem:[%s0 + $0x44] sm:$0xf]
  %v41 = vld [vmem:[%s0 + $0x48] sm:$0xf]
  %v42 = vld [vmem:[%s0 + $0x4c] sm:$0xf]
  %v43 = vld [vmem:[%s0 + $0x50] sm:$0xf]
  %v44 = vld [vmem:[%s0 + $0x54] sm:$0xf]
  %v45 = vld [vmem:[%s0 + $0x58] sm:$0xf]
  %v46 = vld [vmem:[%s0 + $0x5c] sm:$0xf]
  %v47 = vld [vmem:[%s0 + $0x60] sm:$0xf]
  %v48 = vld [vmem:[%s0 + $0x64] sm:$0xf]
  %v49 = vld [vmem:[%s0 + $0x68] sm:$0xf]
  %v50 = vld [vmem:[%s0 + $0x6c] sm:$0xf]
  %v51 = vld [vmem:[%s0 + $0x70] sm:$0xf]
  %v52 = vld [vmem:[%s0 + $0x74] sm:$0xf]
  %v53 = vld [vmem:[%s0 + $0x78] sm:$0xf]
  %v54 = vld [vmem:[%s0 + $0x7c] sm:$0xf]
  %v55 = vld [vmem:[%s0 + $0x80] sm:$0xf]
  %v56 = vld [vmem:[%s0 + $0x84] sm:$0xf]
  %v57 = vld [vmem:[%s0 + $0x88] sm:$0xf]
  %v58 = vld [vmem:[%s0 + $0x8c] sm:$0xf]
  %v59 = vld [vmem:[%s0 + $0x90] sm:$0xf]
  %v60 = vld [vmem:[%s0 + $0x94] sm:$0xf]
  %v61 = vld [vmem:[%s0 + $0x98] sm:$0xf]
  %v62 = vld [vmem:[%s0 + $0x9c] sm:$0xf]
  %v63 = vld [vmem:[%s0 + $0xa0] sm:$0xf]
  %v64 = vld [vmem:[%s0 + $0xa4] sm:$0xf]
  %v65 = vld [vmem:[%s0 + $0xa8] sm:$0xf]
  %v66 = vld [vmem:[%s0 + $0xac] sm:$0xf]
  %v67 = vld [vmem:[%s0 + $0xb0] sm:$0xf]
  %v68 = vld [vmem:[%s0 + $0xb4] sm:$0xf]
  %v69 = vld [vmem:[%s0 + $0xb8] sm:$0xf]
  %v70 = vld [vmem:[%s0 + $0xbc] sm:$0xf]
  %v71 = vld [vmem:[%s0 + $0xc0] sm:$0xf]
  %v72 = vld [vmem:[%s0 + $0xc4] sm:$0xf]
  %v73 = vld [vmem:[%s0 + $0xc8] sm:$0xf]
  %v74 = vld [vmem:[%s0 + $0xcc] sm:$0xf]
  %v75 = vld [vmem:[%s0 + $0xd0] sm:$0xf]
  %v76 = vld [vmem:[%s0 + $0xd4] sm:$0xf]
  %v77 = vld [vmem:[%s0 + $0xd8] sm:$0xf]
  %v78 = vld [vmem:[%s0 + $0xdc] sm:$0xf]
  %v79 = vld [vmem:[%s0 + $0xe0] sm:$0xf]
  %v80 = vld [vmem:[%s0 + $0xe4] sm:$0xf]
  %v81 = vld [vmem:[%s0 + $0xe8] sm:$0xf]
  %v82 = vld [vmem:[%s0 + $0xec] sm:$0xf]
  %v83 = vld [vmem:[%s0 + $0xf0] sm:$0xf]
  %v84 = vld [vmem:[%s0 + $0xf4] sm:$0xf]
  %v85 = vld [vmem:[%s0 + $0xf8] sm:$0xf]
  %v86 = vld [vmem:[%s0 + $0xfc] sm:$0xf]
  %v87 = vld [vmem:[%s1] sm:$0xf]
  %v88 = vld [vmem:[%s1 + $0x4] sm:$0xf]
  %v89 = vld [vmem:[%s1 + $0x8] sm:$0x3]
  %v90 = vld [vmem:[%s2] sm:$0x1]
  %v92 = vlaneseq
  %v93 = vshrl.u32 %v92, 7
  %v94 = vsub.s32 0, %v93
  %v95 = vrot.slane %v90, %v94
  %v161 = vunpack.c.l.b16 %v23
  %v162 = vunpack.c.l.b16 %v24
  %v163 = vunpack.c.l.b16 %v25
  %v164 = vunpack.c.l.b16 %v26
  %v165 = vunpack.c.l.b16 %v27
  %v166 = vunpack.c.l.b16 %v28
  %v167 = vunpack.c.l.b16 %v29
  %v168 = vunpack.c.l.b16 %v30
  %v169 = vunpack.c.l.b16 %v31
  %v170 = vunpack.c.l.b16 %v32
  %v171 = vunpack.c.l.b16 %v33
  %v172 = vunpack.c.l.b16 %v34
  %v173 = vunpack.c.l.b16 %v35
  %v174 = vunpack.c.l.b16 %v36
  %v175 = vunpack.c.l.b16 %v37
  %v176 = vunpack.c.l.b16 %v38
  %v177 = vunpack.c.l.b16 %v39
  %v178 = vunpack.c.l.b16 %v40
  %v179 = vunpack.c.l.b16 %v41
  %v180 = vunpack.c.l.b16 %v42
  %v181 = vunpack.c.l.b16 %v43
  %v182 = vunpack.c.l.b16 %v44
  %v183 = vunpack.c.l.b16 %v45
  %v184 = vunpack.c.l.b16 %v46
  %v185 = vunpack.c.l.b16 %v47
  %v186 = vunpack.c.l.b16 %v48
  %v187 = vunpack.c.l.b16 %v49
  %v188 = vunpack.c.l.b16 %v50
  %v189 = vunpack.c.l.b16 %v51
  %v190 = vunpack.c.l.b16 %v52
  %v191 = vunpack.c.l.b16 %v53
  %v192 = vunpack.c.l.b16 %v54
  %v193 = vunpack.c.l.b16 %v55
  %v194 = vunpack.c.l.b16 %v56
  %v195 = vunpack.c.l.b16 %v57
  %v196 = vunpack.c.l.b16 %v58
  %v197 = vunpack.c.l.b16 %v59
  %v198 = vunpack.c.l.b16 %v60
  %v199 = vunpack.c.l.b16 %v61
  %v200 = vunpack.c.l.b16 %v62
  %v201 = vunpack.c.l.b16 %v63
  %v202 = vunpack.c.l.b16 %v64
  %v203 = vunpack.c.l.b16 %v65
  %v204 = vunpack.c.l.b16 %v66
  %v205 = vunpack.c.l.b16 %v67
  %v206 = vunpack.c.l.b16 %v68
  %v207 = vunpack.c.l.b16 %v69
  %v208 = vunpack.c.l.b16 %v70
  %v209 = vunpack.c.l.b16 %v71
  %v210 = vunpack.c.l.b16 %v72
  %v211 = vunpack.c.l.b16 %v73
  %v212 = vunpack.c.l.b16 %v74
  %v213 = vunpack.c.l.b16 %v75
  %v214 = vunpack.c.l.b16 %v76
  %v215 = vunpack.c.l.b16 %v77
  %v216 = vunpack.c.l.b16 %v78
  %v217 = vunpack.c.l.b16 %v79
  %v218 = vunpack.c.l.b16 %v80
  %v219 = vunpack.c.l.b16 %v81
  %v220 = vunpack.c.l.b16 %v82
  %v221 = vunpack.c.l.b16 %v83
  %v222 = vunpack.c.l.b16 %v84
  %v223 = vunpack.c.l.b16 %v85
  %v224 = vunpack.c.l.b16 %v86
  %v225 = vpack.c.b16 %v162, %v161
  %v226 = vpack.c.b16 %v164, %v163
  %v227 = vpack.c.b16 %v166, %v165
  %v228 = vpack.c.b16 %v168, %v167
  %v229 = vpack.c.b16 %v170, %v169
  %v230 = vpack.c.b16 %v172, %v171
  %v231 = vpack.c.b16 %v174, %v173
  %v232 = vpack.c.b16 %v176, %v175
  %v233 = vpack.c.b16 %v178, %v177
  %v234 = vpack.c.b16 %v180, %v179
  %v235 = vpack.c.b16 %v182, %v181
  %v236 = vpack.c.b16 %v184, %v183
  %v237 = vpack.c.b16 %v186, %v185
  %v238 = vpack.c.b16 %v188, %v187
  %v239 = vpack.c.b16 %v190, %v189
  %v240 = vpack.c.b16 %v192, %v191
  %v241 = vpack.c.b16 %v194, %v193
  %v242 = vpack.c.b16 %v196, %v195
  %v243 = vpack.c.b16 %v198, %v197
  %v244 = vpack.c.b16 %v200, %v199
  %v245 = vpack.c.b16 %v202, %v201
  %v246 = vpack.c.b16 %v204, %v203
  %v247 = vpack.c.b16 %v206, %v205
  %v248 = vpack.c.b16 %v208, %v207
  %v249 = vpack.c.b16 %v210, %v209
  %v250 = vpack.c.b16 %v212, %v211
  %v251 = vpack.c.b16 %v214, %v213
  %v252 = vpack.c.b16 %v216, %v215
  %v253 = vpack.c.b16 %v218, %v217
  %v254 = vpack.c.b16 %v220, %v219
  %v255 = vpack.c.b16 %v222, %v221
  %v256 = vpack.c.b16 %v224, %v223
  %v260 = vunpack.c.l.b16 %v87
  %v261 = vunpack.c.l.b16 %v88
  %v262 = vunpack.c.l.b16 %v89
  %v263 = vpack.c.b16 %v261, %v260
  %v264 = vpack.c.b16 %v262, %v262
  %vm266 = vcmask 162816
  %v268 = vsel %vm266, %v225, 0
  %v271 = vsel %vm266, %v226, 0
  %v274 = vsel %vm266, %v227, 0
  %v277 = vsel %vm266, %v228, 0
  %v280 = vsel %vm266, %v229, 0
  %v283 = vsel %vm266, %v230, 0
  %v286 = vsel %vm266, %v231, 0
  %v289 = vsel %vm266, %v232, 0
  %v292 = vsel %vm266, %v233, 0
  %v295 = vsel %vm266, %v234, 0
  %v298 = vsel %vm266, %v235, 0
  %v301 = vsel %vm266, %v236, 0
  %v304 = vsel %vm266, %v237, 0
  %v307 = vsel %vm266, %v238, 0
  %v310 = vsel %vm266, %v239, 0
  %v313 = vsel %vm266, %v240, 0
  %v316 = vsel %vm266, %v241, 0
  %v319 = vsel %vm266, %v242, 0
  %v322 = vsel %vm266, %v243, 0
  %v325 = vsel %vm266, %v244, 0
  %v328 = vsel %vm266, %v245, 0
  %v331 = vsel %vm266, %v246, 0
  %v334 = vsel %vm266, %v247, 0
  %v337 = vsel %vm266, %v248, 0
  %v340 = vsel %vm266, %v249, 0
  %v343 = vsel %vm266, %v250, 0
  %v346 = vsel %vm266, %v251, 0
  %v349 = vsel %vm266, %v252, 0
  %v352 = vsel %vm266, %v253, 0
  %v355 = vsel %vm266, %v254, 0
  %v358 = vsel %vm266, %v255, 0
  %v361 = vsel %vm266, %v256, 0
  %vm363 = vcmask 1041408
  %v365 = vsel %vm363, %v264, 0
  %367 = vmatprep.subr.bf16.mxu0 0
  %368 = vmatpush1.bf16.msra.mxu0 0
  %369 = vmatprep.subr.bf16.mxu0 0
  %370 = vmatpush1.bf16.msra.mxu0 0
  %371 = vmatprep.subr.bf16.mxu0 0
  %372 = vmatpush1.bf16.msra.mxu0 0
  %373 = vmatprep.subr.bf16.mxu0 0
  %374 = vmatpush1.bf16.msra.mxu0 0
  %375 = vmatprep.subr.bf16.mxu0 0
  %376 = vmatpush1.bf16.msra.mxu0 0
  %377 = vmatprep.subr.bf16.mxu0 0
  %378 = vmatpush1.bf16.msra.mxu0 0
  %379 = vmatprep.subr.bf16.mxu0 0
  %380 = vmatpush1.bf16.msra.mxu0 %v365
  %381 = vmatprep.subr.bf16.mxu0 0
  %382 = vmatpush1.bf16.msra.mxu0 %v263
  %383 = vmatprep.subr.bf16.mxu0 0
  %384 = vmatpush2.bf16.msra.mxu0 0
  %385 = vmatprep.subr.bf16.mxu0 0
  %386 = vmatpush2.bf16.msra.mxu0 0
  %387 = vmatprep.subr.bf16.mxu0 0
  %388 = vmatpush2.bf16.msra.mxu0 0
  %389 = vmatprep.subr.bf16.mxu0 0
  %390 = vmatpush2.bf16.msra.mxu0 0
  %391 = vmatprep.subr.bf16.mxu0 0
  %392 = vmatpush2.bf16.msra.mxu0 0
  %393 = vmatprep.subr.bf16.mxu0 0
  %394 = vmatpush2.bf16.msra.mxu0 0
  %395 = vmatprep.subr.bf16.mxu0 0
  %396 = vmatpush2.bf16.msra.mxu0 0
  %397 = vmatprep.subr.bf16.mxu0 0
  %398 = vmatpush2.bf16.msra.mxu0 0
  %399 = vmatprep.mubr.bf16.mxu0 0
  %400 = vmatmul.mubr.bf16.gmra.mxu0 %v268
  %v401 = vpop.f32.mrf.mxu0
  %v402 = vadd.f32 %v95, %v401
  %v403 = vpop.f32.mrf.mxu0
  %v404 = vpop.f32.mrf.mxu0
  %v405 = vadd.f32 %v95, %v404
  %v406 = vpop.f32.mrf.mxu0
  %407 = vmatprep.mubr.bf16.mxu0 0
  %408 = vmatmul.mubr.bf16.gmra.mxu0 %v271
  %v409 = vpop.f32.mrf.mxu0
  %v410 = vadd.f32 %v95, %v409
  %v411 = vpop.f32.mrf.mxu0
  %v412 = vpop.f32.mrf.mxu0
  %v413 = vadd.f32 %v95, %v412
  %v414 = vpop.f32.mrf.mxu0
  %415 = vmatprep.mubr.bf16.mxu0 0
  %416 = vmatmul.mubr.bf16.gmra.mxu0 %v274
  %v417 = vpop.f32.mrf.mxu0
  %v418 = vadd.f32 %v95, %v417
  %v419 = vpop.f32.mrf.mxu0
  %v420 = vpop.f32.mrf.mxu0
  %v421 = vadd.f32 %v95, %v420
  %v422 = vpop.f32.mrf.mxu0
  %423 = vmatprep.mubr.bf16.mxu0 0
  %424 = vmatmul.mubr.bf16.gmra.mxu0 %v277
  %v425 = vpop.f32.mrf.mxu0
  %v426 = vadd.f32 %v95, %v425
  %v427 = vpop.f32.mrf.mxu0
  %v428 = vpop.f32.mrf.mxu0
  %v429 = vadd.f32 %v95, %v428
  %v430 = vpop.f32.mrf.mxu0
  %431 = vmatprep.mubr.bf16.mxu0 0
  %432 = vmatmul.mubr.bf16.gmra.mxu0 %v280
  %v433 = vpop.f32.mrf.mxu0
  %v434 = vadd.f32 %v95, %v433
  %v435 = vpop.f32.mrf.mxu0
  %v436 = vpop.f32.mrf.mxu0
  %v437 = vadd.f32 %v95, %v436
  %v438 = vpop.f32.mrf.mxu0
  %439 = vmatprep.mubr.bf16.mxu0 0
  %440 = vmatmul.mubr.bf16.gmra.mxu0 %v283
  %v441 = vpop.f32.mrf.mxu0
  %v442 = vadd.f32 %v95, %v441
  %v443 = vpop.f32.mrf.mxu0
  %v444 = vpop.f32.mrf.mxu0
  %v445 = vadd.f32 %v95, %v444
  %v446 = vpop.f32.mrf.mxu0
  %447 = vmatprep.mubr.bf16.mxu0 0
  %448 = vmatmul.mubr.bf16.gmra.mxu0 %v286
  %v449 = vpop.f32.mrf.mxu0
  %v450 = vadd.f32 %v95, %v449
  %v451 = vpop.f32.mrf.mxu0
  %v452 = vpop.f32.mrf.mxu0
  %v453 = vadd.f32 %v95, %v452
  %v454 = vpop.f32.mrf.mxu0
  %455 = vmatprep.mubr.bf16.mxu0 0
  %456 = vmatmul.mubr.bf16.gmra.mxu0 %v289
  %v457 = vpop.f32.mrf.mxu0
  %v458 = vadd.f32 %v95, %v457
  %v459 = vpop.f32.mrf.mxu0
  %v460 = vpop.f32.mrf.mxu0
  %v461 = vadd.f32 %v95, %v460
  %v462 = vpop.f32.mrf.mxu0
  %463 = vmatprep.mubr.bf16.mxu0 0
  %464 = vmatmul.mubr.bf16.gmra.mxu0 %v292
  %v465 = vpop.f32.mrf.mxu0
  %v466 = vadd.f32 %v95, %v465
  %v467 = vpop.f32.mrf.mxu0
  %v468 = vpop.f32.mrf.mxu0
  %v469 = vadd.f32 %v95, %v468
  %v470 = vpop.f32.mrf.mxu0
  %471 = vmatprep.mubr.bf16.mxu0 0
  %472 = vmatmul.mubr.bf16.gmra.mxu0 %v295
  %v473 = vpop.f32.mrf.mxu0
  %v474 = vadd.f32 %v95, %v473
  %v475 = vpop.f32.mrf.mxu0
  %v476 = vpop.f32.mrf.mxu0
  %v477 = vadd.f32 %v95, %v476
  %v478 = vpop.f32.mrf.mxu0
  %479 = vmatprep.mubr.bf16.mxu0 0
  %480 = vmatmul.mubr.bf16.gmra.mxu0 %v298
  %v481 = vpop.f32.mrf.mxu0
  %v482 = vadd.f32 %v95, %v481
  %v483 = vpop.f32.mrf.mxu0
  %v484 = vpop.f32.mrf.mxu0
  %v485 = vadd.f32 %v95, %v484
  %v486 = vpop.f32.mrf.mxu0
  %487 = vmatprep.mubr.bf16.mxu0 0
  %488 = vmatmul.mubr.bf16.gmra.mxu0 %v301
  %v489 = vpop.f32.mrf.mxu0
  %v490 = vadd.f32 %v95, %v489
  %v491 = vpop.f32.mrf.mxu0
  %v492 = vpop.f32.mrf.mxu0
  %v493 = vadd.f32 %v95, %v492
  %v494 = vpop.f32.mrf.mxu0
  %495 = vmatprep.mubr.bf16.mxu0 0
  %496 = vmatmul.mubr.bf16.gmra.mxu0 %v304
  %v497 = vpop.f32.mrf.mxu0
  %v498 = vadd.f32 %v95, %v497
  %v499 = vpop.f32.mrf.mxu0
  %v500 = vpop.f32.mrf.mxu0
  %v501 = vadd.f32 %v95, %v500
  %v502 = vpop.f32.mrf.mxu0
  %503 = vmatprep.mubr.bf16.mxu0 0
  %504 = vmatmul.mubr.bf16.gmra.mxu0 %v307
  %v505 = vpop.f32.mrf.mxu0
  %v506 = vadd.f32 %v95, %v505
  %v507 = vpop.f32.mrf.mxu0
  %v508 = vpop.f32.mrf.mxu0
  %v509 = vadd.f32 %v95, %v508
  %v510 = vpop.f32.mrf.mxu0
  %511 = vmatprep.mubr.bf16.mxu0 0
  %512 = vmatmul.mubr.bf16.gmra.mxu0 %v310
  %v513 = vpop.f32.mrf.mxu0
  %v514 = vadd.f32 %v95, %v513
  %v515 = vpop.f32.mrf.mxu0
  %v516 = vpop.f32.mrf.mxu0
  %v517 = vadd.f32 %v95, %v516
  %v518 = vpop.f32.mrf.mxu0
  %519 = vmatprep.mubr.bf16.mxu0 0
  %520 = vmatmul.mubr.bf16.gmra.mxu0 %v313
  %v521 = vpop.f32.mrf.mxu0
  %v522 = vadd.f32 %v95, %v521
  %v523 = vpop.f32.mrf.mxu0
  %v524 = vpop.f32.mrf.mxu0
  %v525 = vadd.f32 %v95, %v524
  %v526 = vpop.f32.mrf.mxu0
  %527 = vmatprep.mubr.bf16.mxu0 0
  %528 = vmatmul.mubr.bf16.gmra.mxu0 %v316
  %v529 = vpop.f32.mrf.mxu0
  %v530 = vadd.f32 %v95, %v529
  %v531 = vpop.f32.mrf.mxu0
  %v532 = vpop.f32.mrf.mxu0
  %v533 = vadd.f32 %v95, %v532
  %v534 = vpop.f32.mrf.mxu0
  %535 = vmatprep.mubr.bf16.mxu0 0
  %536 = vmatmul.mubr.bf16.gmra.mxu0 %v319
  %v537 = vpop.f32.mrf.mxu0
  %v538 = vadd.f32 %v95, %v537
  %v539 = vpop.f32.mrf.mxu0
  %v540 = vpop.f32.mrf.mxu0
  %v541 = vadd.f32 %v95, %v540
  %v542 = vpop.f32.mrf.mxu0
  %543 = vmatprep.mubr.bf16.mxu0 0
  %544 = vmatmul.mubr.bf16.gmra.mxu0 %v322
  %v545 = vpop.f32.mrf.mxu0
  %v546 = vadd.f32 %v95, %v545
  %v547 = vpop.f32.mrf.mxu0
  %v548 = vpop.f32.mrf.mxu0
  %v549 = vadd.f32 %v95, %v548
  %v550 = vpop.f32.mrf.mxu0
  %551 = vmatprep.mubr.bf16.mxu0 0
  %552 = vmatmul.mubr.bf16.gmra.mxu0 %v325
  %v553 = vpop.f32.mrf.mxu0
  %v554 = vadd.f32 %v95, %v553
  %v555 = vpop.f32.mrf.mxu0
  %v556 = vpop.f32.mrf.mxu0
  %v557 = vadd.f32 %v95, %v556
  %v558 = vpop.f32.mrf.mxu0
  %559 = vmatprep.mubr.bf16.mxu0 0
  %560 = vmatmul.mubr.bf16.gmra.mxu0 %v328
  %v561 = vpop.f32.mrf.mxu0
  %v562 = vadd.f32 %v95, %v561
  %v563 = vpop.f32.mrf.mxu0
  %v564 = vpop.f32.mrf.mxu0
  %v565 = vadd.f32 %v95, %v564
  %v566 = vpop.f32.mrf.mxu0
  %567 = vmatprep.mubr.bf16.mxu0 0
  %568 = vmatmul.mubr.bf16.gmra.mxu0 %v331
  %v569 = vpop.f32.mrf.mxu0
  %v570 = vadd.f32 %v95, %v569
  %v571 = vpop.f32.mrf.mxu0
  %v572 = vpop.f32.mrf.mxu0
  %v573 = vadd.f32 %v95, %v572
  %v574 = vpop.f32.mrf.mxu0
  %575 = vmatprep.mubr.bf16.mxu0 0
  %576 = vmatmul.mubr.bf16.gmra.mxu0 %v334
  %v577 = vpop.f32.mrf.mxu0
  %v578 = vadd.f32 %v95, %v577
  %v579 = vpop.f32.mrf.mxu0
  %v580 = vpop.f32.mrf.mxu0
  %v581 = vadd.f32 %v95, %v580
  %v582 = vpop.f32.mrf.mxu0
  %583 = vmatprep.mubr.bf16.mxu0 0
  %584 = vmatmul.mubr.bf16.gmra.mxu0 %v337
  %v585 = vpop.f32.mrf.mxu0
  %v586 = vadd.f32 %v95, %v585
  %v587 = vpop.f32.mrf.mxu0
  %v588 = vpop.f32.mrf.mxu0
  %v589 = vadd.f32 %v95, %v588
  %v590 = vpop.f32.mrf.mxu0
  %591 = vmatprep.mubr.bf16.mxu0 0
  %592 = vmatmul.mubr.bf16.gmra.mxu0 %v340
  %v593 = vpop.f32.mrf.mxu0
  %v594 = vadd.f32 %v95, %v593
  %v595 = vpop.f32.mrf.mxu0
  %v596 = vpop.f32.mrf.mxu0
  %v597 = vadd.f32 %v95, %v596
  %v598 = vpop.f32.mrf.mxu0
  %599 = vmatprep.mubr.bf16.mxu0 0
  %600 = vmatmul.mubr.bf16.gmra.mxu0 %v343
  %v601 = vpop.f32.mrf.mxu0
  %v602 = vadd.f32 %v95, %v601
  %v603 = vpop.f32.mrf.mxu0
  %v604 = vpop.f32.mrf.mxu0
  %v605 = vadd.f32 %v95, %v604
  %v606 = vpop.f32.mrf.mxu0
  %607 = vmatprep.mubr.bf16.mxu0 0
  %608 = vmatmul.mubr.bf16.gmra.mxu0 %v346
  %v609 = vpop.f32.mrf.mxu0
  %v610 = vadd.f32 %v95, %v609
  %v611 = vpop.f32.mrf.mxu0
  %v612 = vpop.f32.mrf.mxu0
  %v613 = vadd.f32 %v95, %v612
  %v614 = vpop.f32.mrf.mxu0
  %615 = vmatprep.mubr.bf16.mxu0 0
  %616 = vmatmul.mubr.bf16.gmra.mxu0 %v349
  %v617 = vpop.f32.mrf.mxu0
  %v618 = vadd.f32 %v95, %v617
  %v619 = vpop.f32.mrf.mxu0
  %v620 = vpop.f32.mrf.mxu0
  %v621 = vadd.f32 %v95, %v620
  %v622 = vpop.f32.mrf.mxu0
  %623 = vmatprep.mubr.bf16.mxu0 0
  %624 = vmatmul.mubr.bf16.gmra.mxu0 %v352
  %v625 = vpop.f32.mrf.mxu0
  %v626 = vadd.f32 %v95, %v625
  %v627 = vpop.f32.mrf.mxu0
  %v628 = vpop.f32.mrf.mxu0
  %v629 = vadd.f32 %v95, %v628
  %v630 = vpop.f32.mrf.mxu0
  %631 = vmatprep.mubr.bf16.mxu0 0
  %632 = vmatmul.mubr.bf16.gmra.mxu0 %v355
  %v633 = vpop.f32.mrf.mxu0
  %v634 = vadd.f32 %v95, %v633
  %v635 = vpop.f32.mrf.mxu0
  %v636 = vpop.f32.mrf.mxu0
  %v637 = vadd.f32 %v95, %v636
  %v638 = vpop.f32.mrf.mxu0
  %639 = vmatprep.mubr.bf16.mxu0 0
  %640 = vmatmul.mubr.bf16.gmra.mxu0 %v358
  %v641 = vpop.f32.mrf.mxu0
  %v642 = vadd.f32 %v95, %v641
  %v643 = vpop.f32.mrf.mxu0
  %v644 = vpop.f32.mrf.mxu0
  %v645 = vadd.f32 %v95, %v644
  %v646 = vpop.f32.mrf.mxu0
  %647 = vmatprep.mubr.bf16.mxu0 0
  %648 = vmatmul.mubr.bf16.gmra.mxu0 %v361
  %v649 = vpop.f32.mrf.mxu0
  %v650 = vadd.f32 %v95, %v649
  %v651 = vpop.f32.mrf.mxu0
  %v652 = vpop.f32.mrf.mxu0
  %v653 = vadd.f32 %v95, %v652
  %v654 = vpop.f32.mrf.mxu0
  %655 = vdwg.mxu0
  %v656 = vmax.f32 %v402, 0.0
  %v657 = vmax.f32 %v405, 0.0
  %v658 = vmax.f32 %v410, 0.0
  %v659 = vmax.f32 %v413, 0.0
  %v660 = vmax.f32 %v418, 0.0
  %v661 = vmax.f32 %v421, 0.0
  %v662 = vmax.f32 %v426, 0.0
  %v663 = vmax.f32 %v429, 0.0
  %v664 = vmax.f32 %v434, 0.0
  %v665 = vmax.f32 %v437, 0.0
  %v666 = vmax.f32 %v442, 0.0
  %v667 = vmax.f32 %v445, 0.0
  %v668 = vmax.f32 %v450, 0.0
  %v669 = vmax.f32 %v453, 0.0
  %v670 = vmax.f32 %v458, 0.0
  %v671 = vmax.f32 %v461, 0.0
  %v672 = vmax.f32 %v466, 0.0
  %v673 = vmax.f32 %v469, 0.0
  %v674 = vmax.f32 %v474, 0.0
  %v675 = vmax.f32 %v477, 0.0
  %v676 = vmax.f32 %v482, 0.0
  %v677 = vmax.f32 %v485, 0.0
  %v678 = vmax.f32 %v490, 0.0
  %v679 = vmax.f32 %v493, 0.0
  %v680 = vmax.f32 %v498, 0.0
  %v681 = vmax.f32 %v501, 0.0
  %v682 = vmax.f32 %v506, 0.0
  %v683 = vmax.f32 %v509, 0.0
  %v684 = vmax.f32 %v514, 0.0
  %v685 = vmax.f32 %v517, 0.0
  %v686 = vmax.f32 %v522, 0.0
  %v687 = vmax.f32 %v525, 0.0
  %v688 = vmax.f32 %v530, 0.0
  %v689 = vmax.f32 %v533, 0.0
  %v690 = vmax.f32 %v538, 0.0
  %v691 = vmax.f32 %v541, 0.0
  %v692 = vmax.f32 %v546, 0.0
  %v693 = vmax.f32 %v549, 0.0
  %v694 = vmax.f32 %v554, 0.0
  %v695 = vmax.f32 %v557, 0.0
  %v696 = vmax.f32 %v562, 0.0
  %v697 = vmax.f32 %v565, 0.0
  %v698 = vmax.f32 %v570, 0.0
  %v699 = vmax.f32 %v573, 0.0
  %v700 = vmax.f32 %v578, 0.0
  %v701 = vmax.f32 %v581, 0.0
  %v702 = vmax.f32 %v586, 0.0
  %v703 = vmax.f32 %v589, 0.0
  %v704 = vmax.f32 %v594, 0.0
  %v705 = vmax.f32 %v597, 0.0
  %v706 = vmax.f32 %v602, 0.0
  %v707 = vmax.f32 %v605, 0.0
  %v708 = vmax.f32 %v610, 0.0
  %v709 = vmax.f32 %v613, 0.0
  %v710 = vmax.f32 %v618, 0.0
  %v711 = vmax.f32 %v621, 0.0
  %v712 = vmax.f32 %v626, 0.0
  %v713 = vmax.f32 %v629, 0.0
  %v714 = vmax.f32 %v634, 0.0
  %v715 = vmax.f32 %v637, 0.0
  %v716 = vmax.f32 %v642, 0.0
  %v717 = vmax.f32 %v645, 0.0
  %v718 = vmax.f32 %v650, 0.0
  %v719 = vmax.f32 %v653, 0.0
  %v720 = vld [vmem:[%s3] sm:$0xff]
  %v721 = vld [vmem:[%s3 + $0x8] sm:$0xff]
  %v722 = vld [vmem:[%s3 + $0x10] sm:$0xff]
  %v723 = vld [vmem:[%s3 + $0x18] sm:$0xff]
  %v724 = vld [vmem:[%s3 + $0x20] sm:$0xff]
  %v725 = vld [vmem:[%s3 + $0x28] sm:$0xff]
  %v726 = vld [vmem:[%s3 + $0x30] sm:$0xff]
  %v727 = vld [vmem:[%s3 + $0x38] sm:$0xff]
  %v728 = vld [vmem:[#allocation2] sm:$0x1]
  %v730 = vlaneseq
  %v731 = vshrl.u32 %v730, 7
  %v732 = vsub.s32 0, %v731
  %v733 = vrot.slane %v728, %v732
  %vm735 = vcmask 523264
  %v737 = vsel %vm735, %v656, 0
  %v740 = vsel %vm735, %v657, 0
  %v743 = vsel %vm735, %v658, 0
  %v746 = vsel %vm735, %v659, 0
  %v749 = vsel %vm735, %v660, 0
  %v752 = vsel %vm735, %v661, 0
  %v755 = vsel %vm735, %v662, 0
  %v758 = vsel %vm735, %v663, 0
  %v761 = vsel %vm735, %v664, 0
  %v764 = vsel %vm735, %v665, 0
  %v767 = vsel %vm735, %v666, 0
  %v770 = vsel %vm735, %v667, 0
  %v773 = vsel %vm735, %v668, 0
  %v776 = vsel %vm735, %v669, 0
  %v779 = vsel %vm735, %v670, 0
  %v782 = vsel %vm735, %v671, 0
  %v785 = vsel %vm735, %v672, 0
  %v788 = vsel %vm735, %v673, 0
  %v791 = vsel %vm735, %v674, 0
  %v794 = vsel %vm735, %v675, 0
  %v797 = vsel %vm735, %v676, 0
  %v800 = vsel %vm735, %v677, 0
  %v803 = vsel %vm735, %v678, 0
  %v806 = vsel %vm735, %v679, 0
  %v809 = vsel %vm735, %v680, 0
  %v812 = vsel %vm735, %v681, 0
  %v815 = vsel %vm735, %v682, 0
  %v818 = vsel %vm735, %v683, 0
  %v821 = vsel %vm735, %v684, 0
  %v824 = vsel %vm735, %v685, 0
  %v827 = vsel %vm735, %v686, 0
  %v830 = vsel %vm735, %v687, 0
  %v833 = vsel %vm735, %v688, 0
  %v836 = vsel %vm735, %v689, 0
  %v839 = vsel %vm735, %v690, 0
  %v842 = vsel %vm735, %v691, 0
  %v845 = vsel %vm735, %v692, 0
  %v848 = vsel %vm735, %v693, 0
  %v851 = vsel %vm735, %v694, 0
  %v854 = vsel %vm735, %v695, 0
  %v857 = vsel %vm735, %v696, 0
  %v860 = vsel %vm735, %v697, 0
  %v863 = vsel %vm735, %v698, 0
  %v866 = vsel %vm735, %v699, 0
  %v869 = vsel %vm735, %v700, 0
  %v872 = vsel %vm735, %v701, 0
  %v875 = vsel %vm735, %v702, 0
  %v878 = vsel %vm735, %v703, 0
  %v881 = vsel %vm735, %v704, 0
  %v884 = vsel %vm735, %v705, 0
  %v887 = vsel %vm735, %v706, 0
  %v890 = vsel %vm735, %v707, 0
  %v893 = vsel %vm735, %v708, 0
  %v896 = vsel %vm735, %v709, 0
  %v899 = vsel %vm735, %v710, 0
  %v902 = vsel %vm735, %v711, 0
  %v905 = vsel %vm735, %v712, 0
  %v908 = vsel %vm735, %v713, 0
  %v911 = vsel %vm735, %v714, 0
  %v914 = vsel %vm735, %v715, 0
  %v917 = vsel %vm735, %v716, 0
  %v920 = vsel %vm735, %v717, 0
  %v923 = vsel %vm735, %v718, 0
  %v926 = vsel %vm735, %v719, 0
  %928 = vmatprep.subr.mxu0 0.0
  %929 = vmatpush1.msra.mxu0 0.0
  %930 = vmatprep.subr.mxu0 0.0
  %931 = vmatpush1.msra.mxu0 0.0
  %932 = vmatprep.subr.mxu0 0.0
  %933 = vmatpush1.msra.mxu0 0.0
  %934 = vmatprep.subr.mxu0 0.0
  %935 = vmatpush1.msra.mxu0 0.0
  %936 = vmatprep.subr.mxu0 0.0
  %937 = vmatpush1.msra.mxu0 0.0
  %938 = vmatprep.subr.mxu0 0.0
  %939 = vmatpush1.msra.mxu0 0.0
  %940 = vmatprep.subr.mxu0 0.0
  %941 = vmatpush1.msra.mxu0 0.0
  %942 = vmatprep.subr.mxu0 0.0
  %943 = vmatpush1.msra.mxu0 0.0
  %944 = vmatprep.subr.mxu0 0.0
  %945 = vmatpush1.msra.mxu0 %v727
  %946 = vmatprep.subr.mxu0 0.0
  %947 = vmatpush1.msra.mxu0 %v726
  %948 = vmatprep.subr.mxu0 0.0
  %949 = vmatpush1.msra.mxu0 %v725
  %950 = vmatprep.subr.mxu0 0.0
  %951 = vmatpush1.msra.mxu0 %v724
  %952 = vmatprep.subr.mxu0 0.0
  %953 = vmatpush1.msra.mxu0 %v723
  %954 = vmatprep.subr.mxu0 0.0
  %955 = vmatpush1.msra.mxu0 %v722
  %956 = vmatprep.subr.mxu0 0.0
  %957 = vmatpush1.msra.mxu0 %v721
  %958 = vmatprep.subr.mxu0 0.0
  %959 = vmatpush1.msra.mxu0 %v720
  %960 = vmatprep.subr.mxu0 0.0
  %961 = vmatpush2.msra.mxu0 0.0
  %962 = vmatprep.subr.mxu0 0.0
  %963 = vmatpush2.msra.mxu0 0.0
  %964 = vmatprep.subr.mxu0 0.0
  %965 = vmatpush2.msra.mxu0 0.0
  %966 = vmatprep.subr.mxu0 0.0
  %967 = vmatpush2.msra.mxu0 0.0
  %968 = vmatprep.subr.mxu0 0.0
  %969 = vmatpush2.msra.mxu0 0.0
  %970 = vmatprep.subr.mxu0 0.0
  %971 = vmatpush2.msra.mxu0 0.0
  %972 = vmatprep.subr.mxu0 0.0
  %973 = vmatpush2.msra.mxu0 0.0
  %974 = vmatprep.subr.mxu0 0.0
  %975 = vmatpush2.msra.mxu0 0.0
  %976 = vmatprep.subr.mxu0 0.0
  %977 = vmatpush2.msra.mxu0 0.0
  %978 = vmatprep.subr.mxu0 0.0
  %979 = vmatpush2.msra.mxu0 0.0
  %980 = vmatprep.subr.mxu0 0.0
  %981 = vmatpush2.msra.mxu0 0.0
  %982 = vmatprep.subr.mxu0 0.0
  %983 = vmatpush2.msra.mxu0 0.0
  %984 = vmatprep.subr.mxu0 0.0
  %985 = vmatpush2.msra.mxu0 0.0
  %986 = vmatprep.subr.mxu0 0.0
  %987 = vmatpush2.msra.mxu0 0.0
  %988 = vmatprep.subr.mxu0 0.0
  %989 = vmatpush2.msra.mxu0 0.0
  %990 = vmatprep.subr.mxu0 0.0
  %991 = vmatpush2.msra.mxu0 0.0
  %992 = vmatprep.mubr.f32.mxu0 0.0
  %993 = vmatmul.mubr.f32.gmra.mxu0 %v737
  %v994 = vpop.f32.mrf.mxu0
  %v995 = vadd.f32 %v733, %v994
  %v996 = vpop.f32.mrf.mxu0
  %997 = vmatprep.mubr.f32.mxu0 0.0
  %998 = vmatmul.mubr.f32.gmra.mxu0 %v740
  %v999 = vpop.f32.mrf.mxu0
  %v1000 = vadd.f32 %v733, %v999
  %v1001 = vpop.f32.mrf.mxu0
  %1002 = vmatprep.mubr.f32.mxu0 0.0
  %1003 = vmatmul.mubr.f32.gmra.mxu0 %v743
  %v1004 = vpop.f32.mrf.mxu0
  %v1005 = vadd.f32 %v733, %v1004
  %v1006 = vpop.f32.mrf.mxu0
  %1007 = vmatprep.mubr.f32.mxu0 0.0
  %1008 = vmatmul.mubr.f32.gmra.mxu0 %v746
  %v1009 = vpop.f32.mrf.mxu0
  %v1010 = vadd.f32 %v733, %v1009
  %v1011 = vpop.f32.mrf.mxu0
  %1012 = vmatprep.mubr.f32.mxu0 0.0
  %1013 = vmatmul.mubr.f32.gmra.mxu0 %v749
  %v1014 = vpop.f32.mrf.mxu0
  %v1015 = vadd.f32 %v733, %v1014
  %v1016 = vpop.f32.mrf.mxu0
  %1017 = vmatprep.mubr.f32.mxu0 0.0
  %1018 = vmatmul.mubr.f32.gmra.mxu0 %v752
  %v1019 = vpop.f32.mrf.mxu0
  %v1020 = vadd.f32 %v733, %v1019
  %v1021 = vpop.f32.mrf.mxu0
  %1022 = vmatprep.mubr.f32.mxu0 0.0
  %1023 = vmatmul.mubr.f32.gmra.mxu0 %v755
  %v1024 = vpop.f32.mrf.mxu0
  %v1025 = vadd.f32 %v733, %v1024
  %v1026 = vpop.f32.mrf.mxu0
  %1027 = vmatprep.mubr.f32.mxu0 0.0
  %1028 = vmatmul.mubr.f32.gmra.mxu0 %v758
  %v1029 = vpop.f32.mrf.mxu0
  %v1030 = vadd.f32 %v733, %v1029
  %v1031 = vpop.f32.mrf.mxu0
  %1032 = vmatprep.mubr.f32.mxu0 0.0
  %1033 = vmatmul.mubr.f32.gmra.mxu0 %v761
  %v1034 = vpop.f32.mrf.mxu0
  %v1035 = vadd.f32 %v733, %v1034
  %v1036 = vpop.f32.mrf.mxu0
  %1037 = vmatprep.mubr.f32.mxu0 0.0
  %1038 = vmatmul.mubr.f32.gmra.mxu0 %v764
  %v1039 = vpop.f32.mrf.mxu0
  %v1040 = vadd.f32 %v733, %v1039
  %v1041 = vpop.f32.mrf.mxu0
  %1042 = vmatprep.mubr.f32.mxu0 0.0
  %1043 = vmatmul.mubr.f32.gmra.mxu0 %v767
  %v1044 = vpop.f32.mrf.mxu0
  %v1045 = vadd.f32 %v733, %v1044
  %v1046 = vpop.f32.mrf.mxu0
  %1047 = vmatprep.mubr.f32.mxu0 0.0
  %1048 = vmatmul.mubr.f32.gmra.mxu0 %v770
  %v1049 = vpop.f32.mrf.mxu0
  %v1050 = vadd.f32 %v733, %v1049
  %v1051 = vpop.f32.mrf.mxu0
  %1052 = vmatprep.mubr.f32.mxu0 0.0
  %1053 = vmatmul.mubr.f32.gmra.mxu0 %v773
  %v1054 = vpop.f32.mrf.mxu0
  %v1055 = vadd.f32 %v733, %v1054
  %v1056 = vpop.f32.mrf.mxu0
  %1057 = vmatprep.mubr.f32.mxu0 0.0
  %1058 = vmatmul.mubr.f32.gmra.mxu0 %v776
  %v1059 = vpop.f32.mrf.mxu0
  %v1060 = vadd.f32 %v733, %v1059
  %v1061 = vpop.f32.mrf.mxu0
  %1062 = vmatprep.mubr.f32.mxu0 0.0
  %1063 = vmatmul.mubr.f32.gmra.mxu0 %v779
  %v1064 = vpop.f32.mrf.mxu0
  %v1065 = vadd.f32 %v733, %v1064
  %v1066 = vpop.f32.mrf.mxu0
  %1067 = vmatprep.mubr.f32.mxu0 0.0
  %1068 = vmatmul.mubr.f32.gmra.mxu0 %v782
  %v1069 = vpop.f32.mrf.mxu0
  %v1070 = vadd.f32 %v733, %v1069
  %v1071 = vpop.f32.mrf.mxu0
  %1072 = vmatprep.mubr.f32.mxu0 0.0
  %1073 = vmatmul.mubr.f32.gmra.mxu0 %v785
  %v1074 = vpop.f32.mrf.mxu0
  %v1075 = vadd.f32 %v733, %v1074
  %v1076 = vpop.f32.mrf.mxu0
  %1077 = vmatprep.mubr.f32.mxu0 0.0
  %1078 = vmatmul.mubr.f32.gmra.mxu0 %v788
  %v1079 = vpop.f32.mrf.mxu0
  %v1080 = vadd.f32 %v733, %v1079
  %v1081 = vpop.f32.mrf.mxu0
  %1082 = vmatprep.mubr.f32.mxu0 0.0
  %1083 = vmatmul.mubr.f32.gmra.mxu0 %v791
  %v1084 = vpop.f32.mrf.mxu0
  %v1085 = vadd.f32 %v733, %v1084
  %v1086 = vpop.f32.mrf.mxu0
  %1087 = vmatprep.mubr.f32.mxu0 0.0
  %1088 = vmatmul.mubr.f32.gmra.mxu0 %v794
  %v1089 = vpop.f32.mrf.mxu0
  %v1090 = vadd.f32 %v733, %v1089
  %v1091 = vpop.f32.mrf.mxu0
  %1092 = vmatprep.mubr.f32.mxu0 0.0
  %1093 = vmatmul.mubr.f32.gmra.mxu0 %v797
  %v1094 = vpop.f32.mrf.mxu0
  %v1095 = vadd.f32 %v733, %v1094
  %v1096 = vpop.f32.mrf.mxu0
  %1097 = vmatprep.mubr.f32.mxu0 0.0
  %1098 = vmatmul.mubr.f32.gmra.mxu0 %v800
  %v1099 = vpop.f32.mrf.mxu0
  %v1100 = vadd.f32 %v733, %v1099
  %v1101 = vpop.f32.mrf.mxu0
  %1102 = vmatprep.mubr.f32.mxu0 0.0
  %1103 = vmatmul.mubr.f32.gmra.mxu0 %v803
  %v1104 = vpop.f32.mrf.mxu0
  %v1105 = vadd.f32 %v733, %v1104
  %v1106 = vpop.f32.mrf.mxu0
  %1107 = vmatprep.mubr.f32.mxu0 0.0
  %1108 = vmatmul.mubr.f32.gmra.mxu0 %v806
  %v1109 = vpop.f32.mrf.mxu0
  %v1110 = vadd.f32 %v733, %v1109
  %v1111 = vpop.f32.mrf.mxu0
  %1112 = vmatprep.mubr.f32.mxu0 0.0
  %1113 = vmatmul.mubr.f32.gmra.mxu0 %v809
  %v1114 = vpop.f32.mrf.mxu0
  %v1115 = vadd.f32 %v733, %v1114
  %v1116 = vpop.f32.mrf.mxu0
  %1117 = vmatprep.mubr.f32.mxu0 0.0
  %1118 = vmatmul.mubr.f32.gmra.mxu0 %v812
  %v1119 = vpop.f32.mrf.mxu0
  %v1120 = vadd.f32 %v733, %v1119
  %v1121 = vpop.f32.mrf.mxu0
  %1122 = vmatprep.mubr.f32.mxu0 0.0
  %1123 = vmatmul.mubr.f32.gmra.mxu0 %v815
  %v1124 = vpop.f32.mrf.mxu0
  %v1125 = vadd.f32 %v733, %v1124
  %v1126 = vpop.f32.mrf.mxu0
  %1127 = vmatprep.mubr.f32.mxu0 0.0
  %1128 = vmatmul.mubr.f32.gmra.mxu0 %v818
  %v1129 = vpop.f32.mrf.mxu0
  %v1130 = vadd.f32 %v733, %v1129
  %v1131 = vpop.f32.mrf.mxu0
  %1132 = vmatprep.mubr.f32.mxu0 0.0
  %1133 = vmatmul.mubr.f32.gmra.mxu0 %v821
  %v1134 = vpop.f32.mrf.mxu0
  %v1135 = vadd.f32 %v733, %v1134
  %v1136 = vpop.f32.mrf.mxu0
  %1137 = vmatprep.mubr.f32.mxu0 0.0
  %1138 = vmatmul.mubr.f32.gmra.mxu0 %v824
  %v1139 = vpop.f32.mrf.mxu0
  %v1140 = vadd.f32 %v733, %v1139
  %v1141 = vpop.f32.mrf.mxu0
  %1142 = vmatprep.mubr.f32.mxu0 0.0
  %1143 = vmatmul.mubr.f32.gmra.mxu0 %v827
  %v1144 = vpop.f32.mrf.mxu0
  %v1145 = vadd.f32 %v733, %v1144
  %v1146 = vpop.f32.mrf.mxu0
  %1147 = vmatprep.mubr.f32.mxu0 0.0
  %1148 = vmatmul.mubr.f32.gmra.mxu0 %v830
  %v1149 = vpop.f32.mrf.mxu0
  %v1150 = vadd.f32 %v733, %v1149
  %v1151 = vpop.f32.mrf.mxu0
  %1152 = vmatprep.mubr.f32.mxu0 0.0
  %1153 = vmatmul.mubr.f32.gmra.mxu0 %v833
  %v1154 = vpop.f32.mrf.mxu0
  %v1155 = vadd.f32 %v733, %v1154
  %v1156 = vpop.f32.mrf.mxu0
  %1157 = vmatprep.mubr.f32.mxu0 0.0
  %1158 = vmatmul.mubr.f32.gmra.mxu0 %v836
  %v1159 = vpop.f32.mrf.mxu0
  %v1160 = vadd.f32 %v733, %v1159
  %v1161 = vpop.f32.mrf.mxu0
  %1162 = vmatprep.mubr.f32.mxu0 0.0
  %1163 = vmatmul.mubr.f32.gmra.mxu0 %v839
  %v1164 = vpop.f32.mrf.mxu0
  %v1165 = vadd.f32 %v733, %v1164
  %v1166 = vpop.f32.mrf.mxu0
  %1167 = vmatprep.mubr.f32.mxu0 0.0
  %1168 = vmatmul.mubr.f32.gmra.mxu0 %v842
  %v1169 = vpop.f32.mrf.mxu0
  %v1170 = vadd.f32 %v733, %v1169
  %v1171 = vpop.f32.mrf.mxu0
  %1172 = vmatprep.mubr.f32.mxu0 0.0
  %1173 = vmatmul.mubr.f32.gmra.mxu0 %v845
  %v1174 = vpop.f32.mrf.mxu0
  %v1175 = vadd.f32 %v733, %v1174
  %v1176 = vpop.f32.mrf.mxu0
  %1177 = vmatprep.mubr.f32.mxu0 0.0
  %1178 = vmatmul.mubr.f32.gmra.mxu0 %v848
  %v1179 = vpop.f32.mrf.mxu0
  %v1180 = vadd.f32 %v733, %v1179
  %v1181 = vpop.f32.mrf.mxu0
  %1182 = vmatprep.mubr.f32.mxu0 0.0
  %1183 = vmatmul.mubr.f32.gmra.mxu0 %v851
  %v1184 = vpop.f32.mrf.mxu0
  %v1185 = vadd.f32 %v733, %v1184
  %v1186 = vpop.f32.mrf.mxu0
  %1187 = vmatprep.mubr.f32.mxu0 0.0
  %1188 = vmatmul.mubr.f32.gmra.mxu0 %v854
  %v1189 = vpop.f32.mrf.mxu0
  %v1190 = vadd.f32 %v733, %v1189
  %v1191 = vpop.f32.mrf.mxu0
  %1192 = vmatprep.mubr.f32.mxu0 0.0
  %1193 = vmatmul.mubr.f32.gmra.mxu0 %v857
  %v1194 = vpop.f32.mrf.mxu0
  %v1195 = vadd.f32 %v733, %v1194
  %v1196 = vpop.f32.mrf.mxu0
  %1197 = vmatprep.mubr.f32.mxu0 0.0
  %1198 = vmatmul.mubr.f32.gmra.mxu0 %v860
  %v1199 = vpop.f32.mrf.mxu0
  %v1200 = vadd.f32 %v733, %v1199
  %v1201 = vpop.f32.mrf.mxu0
  %1202 = vmatprep.mubr.f32.mxu0 0.0
  %1203 = vmatmul.mubr.f32.gmra.mxu0 %v863
  %v1204 = vpop.f32.mrf.mxu0
  %v1205 = vadd.f32 %v733, %v1204
  %v1206 = vpop.f32.mrf.mxu0
  %1207 = vmatprep.mubr.f32.mxu0 0.0
  %1208 = vmatmul.mubr.f32.gmra.mxu0 %v866
  %v1209 = vpop.f32.mrf.mxu0
  %v1210 = vadd.f32 %v733, %v1209
  %v1211 = vpop.f32.mrf.mxu0
  %1212 = vmatprep.mubr.f32.mxu0 0.0
  %1213 = vmatmul.mubr.f32.gmra.mxu0 %v869
  %v1214 = vpop.f32.mrf.mxu0
  %v1215 = vadd.f32 %v733, %v1214
  %v1216 = vpop.f32.mrf.mxu0
  %1217 = vmatprep.mubr.f32.mxu0 0.0
  %1218 = vmatmul.mubr.f32.gmra.mxu0 %v872
  %v1219 = vpop.f32.mrf.mxu0
  %v1220 = vadd.f32 %v733, %v1219
  %v1221 = vpop.f32.mrf.mxu0
  %1222 = vmatprep.mubr.f32.mxu0 0.0
  %1223 = vmatmul.mubr.f32.gmra.mxu0 %v875
  %v1224 = vpop.f32.mrf.mxu0
  %v1225 = vadd.f32 %v733, %v1224
  %v1226 = vpop.f32.mrf.mxu0
  %1227 = vmatprep.mubr.f32.mxu0 0.0
  %1228 = vmatmul.mubr.f32.gmra.mxu0 %v878
  %v1229 = vpop.f32.mrf.mxu0
  %v1230 = vadd.f32 %v733, %v1229
  %v1231 = vpop.f32.mrf.mxu0
  %1232 = vmatprep.mubr.f32.mxu0 0.0
  %1233 = vmatmul.mubr.f32.gmra.mxu0 %v881
  %v1234 = vpop.f32.mrf.mxu0
  %v1235 = vadd.f32 %v733, %v1234
  %v1236 = vpop.f32.mrf.mxu0
  %1237 = vmatprep.mubr.f32.mxu0 0.0
  %1238 = vmatmul.mubr.f32.gmra.mxu0 %v884
  %v1239 = vpop.f32.mrf.mxu0
  %v1240 = vadd.f32 %v733, %v1239
  %v1241 = vpop.f32.mrf.mxu0
  %1242 = vmatprep.mubr.f32.mxu0 0.0
  %1243 = vmatmul.mubr.f32.gmra.mxu0 %v887
  %v1244 = vpop.f32.mrf.mxu0
  %v1245 = vadd.f32 %v733, %v1244
  %v1246 = vpop.f32.mrf.mxu0
  %1247 = vmatprep.mubr.f32.mxu0 0.0
  %1248 = vmatmul.mubr.f32.gmra.mxu0 %v890
  %v1249 = vpop.f32.mrf.mxu0
  %v1250 = vadd.f32 %v733, %v1249
  %v1251 = vpop.f32.mrf.mxu0
  %1252 = vmatprep.mubr.f32.mxu0 0.0
  %1253 = vmatmul.mubr.f32.gmra.mxu0 %v893
  %v1254 = vpop.f32.mrf.mxu0
  %v1255 = vadd.f32 %v733, %v1254
  %v1256 = vpop.f32.mrf.mxu0
  %1257 = vmatprep.mubr.f32.mxu0 0.0
  %1258 = vmatmul.mubr.f32.gmra.mxu0 %v896
  %v1259 = vpop.f32.mrf.mxu0
  %v1260 = vadd.f32 %v733, %v1259
  %v1261 = vpop.f32.mrf.mxu0
  %1262 = vmatprep.mubr.f32.mxu0 0.0
  %1263 = vmatmul.mubr.f32.gmra.mxu0 %v899
  %v1264 = vpop.f32.mrf.mxu0
  %v1265 = vadd.f32 %v733, %v1264
  %v1266 = vpop.f32.mrf.mxu0
  %1267 = vmatprep.mubr.f32.mxu0 0.0
  %1268 = vmatmul.mubr.f32.gmra.mxu0 %v902
  %v1269 = vpop.f32.mrf.mxu0
  %v1270 = vadd.f32 %v733, %v1269
  %v1271 = vpop.f32.mrf.mxu0
  %1272 = vmatprep.mubr.f32.mxu0 0.0
  %1273 = vmatmul.mubr.f32.gmra.mxu0 %v905
  %v1274 = vpop.f32.mrf.mxu0
  %v1275 = vadd.f32 %v733, %v1274
  %v1276 = vpop.f32.mrf.mxu0
  %1277 = vmatprep.mubr.f32.mxu0 0.0
  %1278 = vmatmul.mubr.f32.gmra.mxu0 %v908
  %v1279 = vpop.f32.mrf.mxu0
  %v1280 = vadd.f32 %v733, %v1279
  %v1281 = vpop.f32.mrf.mxu0
  %1282 = vmatprep.mubr.f32.mxu0 0.0
  %1283 = vmatmul.mubr.f32.gmra.mxu0 %v911
  %v1284 = vpop.f32.mrf.mxu0
  %v1285 = vadd.f32 %v733, %v1284
  %v1286 = vpop.f32.mrf.mxu0
  %1287 = vmatprep.mubr.f32.mxu0 0.0
  %1288 = vmatmul.mubr.f32.gmra.mxu0 %v914
  %v1289 = vpop.f32.mrf.mxu0
  %v1290 = vadd.f32 %v733, %v1289
  %v1291 = vpop.f32.mrf.mxu0
  %1292 = vmatprep.mubr.f32.mxu0 0.0
  %1293 = vmatmul.mubr.f32.gmra.mxu0 %v917
  %v1294 = vpop.f32.mrf.mxu0
  %v1295 = vadd.f32 %v733, %v1294
  %v1296 = vpop.f32.mrf.mxu0
  %1297 = vmatprep.mubr.f32.mxu0 0.0
  %1298 = vmatmul.mubr.f32.gmra.mxu0 %v920
  %v1299 = vpop.f32.mrf.mxu0
  %v1300 = vadd.f32 %v733, %v1299
  %v1301 = vpop.f32.mrf.mxu0
  %1302 = vmatprep.mubr.f32.mxu0 0.0
  %1303 = vmatmul.mubr.f32.gmra.mxu0 %v923
  %v1304 = vpop.f32.mrf.mxu0
  %v1305 = vadd.f32 %v733, %v1304
  %v1306 = vpop.f32.mrf.mxu0
  %1307 = vmatprep.mubr.f32.mxu0 0.0
  %1308 = vmatmul.mubr.f32.gmra.mxu0 %v926
  %v1309 = vpop.f32.mrf.mxu0
  %v1310 = vadd.f32 %v733, %v1309
  %v1311 = vpop.f32.mrf.mxu0
  %1312 = vdwg.mxu0
  %vm1313 = vcmask 7168
  %1314 = vst.msk [vmem:[%s5] sm:$0xff] %vm1313, %v995
  %1315 = vst.msk [vmem:[%s5 + $0x8] sm:$0xff] %vm1313, %v1000
  %1316 = vst.msk [vmem:[%s5 + $0x10] sm:$0xff] %vm1313, %v1005
  %1317 = vst.msk [vmem:[%s5 + $0x18] sm:$0xff] %vm1313, %v1010
  %1318 = vst.msk [vmem:[%s5 + $0x20] sm:$0xff] %vm1313, %v1015
  %1319 = vst.msk [vmem:[%s5 + $0x28] sm:$0xff] %vm1313, %v1020
  %1320 = vst.msk [vmem:[%s5 + $0x30] sm:$0xff] %vm1313, %v1025
  %1321 = vst.msk [vmem:[%s5 + $0x38] sm:$0xff] %vm1313, %v1030
  %1322 = vst.msk [vmem:[%s5 + $0x40] sm:$0xff] %vm1313, %v1035
  %1323 = vst.msk [vmem:[%s5 + $0x48] sm:$0xff] %vm1313, %v1040
  %1324 = vst.msk [vmem:[%s5 + $0x50] sm:$0xff] %vm1313, %v1045
  %1325 = vst.msk [vmem:[%s5 + $0x58] sm:$0xff] %vm1313, %v1050
  %1326 = vst.msk [vmem:[%s5 + $0x60] sm:$0xff] %vm1313, %v1055
  %1327 = vst.msk [vmem:[%s5 + $0x68] sm:$0xff] %vm1313, %v1060
  %1328 = vst.msk [vmem:[%s5 + $0x70] sm:$0xff] %vm1313, %v1065
  %1329 = vst.msk [vmem:[%s5 + $0x78] sm:$0xff] %vm1313, %v1070
  %1330 = vst.msk [vmem:[%s5 + $0x80] sm:$0xff] %vm1313, %v1075
  %1331 = vst.msk [vmem:[%s5 + $0x88] sm:$0xff] %vm1313, %v1080
  %1332 = vst.msk [vmem:[%s5 + $0x90] sm:$0xff] %vm1313, %v1085
  %1333 = vst.msk [vmem:[%s5 + $0x98] sm:$0xff] %vm1313, %v1090
  %1334 = vst.msk [vmem:[%s5 + $0xa0] sm:$0xff] %vm1313, %v1095
  %1335 = vst.msk [vmem:[%s5 + $0xa8] sm:$0xff] %vm1313, %v1100
  %1336 = vst.msk [vmem:[%s5 + $0xb0] sm:$0xff] %vm1313, %v1105
  %1337 = vst.msk [vmem:[%s5 + $0xb8] sm:$0xff] %vm1313, %v1110
  %1338 = vst.msk [vmem:[%s5 + $0xc0] sm:$0xff] %vm1313, %v1115
  %1339 = vst.msk [vmem:[%s5 + $0xc8] sm:$0xff] %vm1313, %v1120
  %1340 = vst.msk [vmem:[%s5 + $0xd0] sm:$0xff] %vm1313, %v1125
  %1341 = vst.msk [vmem:[%s5 + $0xd8] sm:$0xff] %vm1313, %v1130
  %1342 = vst.msk [vmem:[%s5 + $0xe0] sm:$0xff] %vm1313, %v1135
  %1343 = vst.msk [vmem:[%s5 + $0xe8] sm:$0xff] %vm1313, %v1140
  %1344 = vst.msk [vmem:[%s5 + $0xf0] sm:$0xff] %vm1313, %v1145
  %1345 = vst.msk [vmem:[%s5 + $0xf8] sm:$0xff] %vm1313, %v1150
  %1346 = vst.msk [vmem:[%s5 + $0x100] sm:$0xff] %vm1313, %v1155
  %1347 = vst.msk [vmem:[%s5 + $0x108] sm:$0xff] %vm1313, %v1160
  %1348 = vst.msk [vmem:[%s5 + $0x110] sm:$0xff] %vm1313, %v1165
  %1349 = vst.msk [vmem:[%s5 + $0x118] sm:$0xff] %vm1313, %v1170
  %1350 = vst.msk [vmem:[%s5 + $0x120] sm:$0xff] %vm1313, %v1175
  %1351 = vst.msk [vmem:[%s5 + $0x128] sm:$0xff] %vm1313, %v1180
  %1352 = vst.msk [vmem:[%s5 + $0x130] sm:$0xff] %vm1313, %v1185
  %1353 = vst.msk [vmem:[%s5 + $0x138] sm:$0xff] %vm1313, %v1190
  %1354 = vst.msk [vmem:[%s5 + $0x140] sm:$0xff] %vm1313, %v1195
  %1355 = vst.msk [vmem:[%s5 + $0x148] sm:$0xff] %vm1313, %v1200
  %1356 = vst.msk [vmem:[%s5 + $0x150] sm:$0xff] %vm1313, %v1205
  %1357 = vst.msk [vmem:[%s5 + $0x158] sm:$0xff] %vm1313, %v1210
  %1358 = vst.msk [vmem:[%s5 + $0x160] sm:$0xff] %vm1313, %v1215
  %1359 = vst.msk [vmem:[%s5 + $0x168] sm:$0xff] %vm1313, %v1220
  %1360 = vst.msk [vmem:[%s5 + $0x170] sm:$0xff] %vm1313, %v1225
  %1361 = vst.msk [vmem:[%s5 + $0x178] sm:$0xff] %vm1313, %v1230
  %1362 = vst.msk [vmem:[%s5 + $0x180] sm:$0xff] %vm1313, %v1235
  %1363 = vst.msk [vmem:[%s5 + $0x188] sm:$0xff] %vm1313, %v1240
  %1364 = vst.msk [vmem:[%s5 + $0x190] sm:$0xff] %vm1313, %v1245
  %1365 = vst.msk [vmem:[%s5 + $0x198] sm:$0xff] %vm1313, %v1250
  %1366 = vst.msk [vmem:[%s5 + $0x1a0] sm:$0xff] %vm1313, %v1255
  %1367 = vst.msk [vmem:[%s5 + $0x1a8] sm:$0xff] %vm1313, %v1260
  %1368 = vst.msk [vmem:[%s5 + $0x1b0] sm:$0xff] %vm1313, %v1265
  %1369 = vst.msk [vmem:[%s5 + $0x1b8] sm:$0xff] %vm1313, %v1270
  %1370 = vst.msk [vmem:[%s5 + $0x1c0] sm:$0xff] %vm1313, %v1275
  %1371 = vst.msk [vmem:[%s5 + $0x1c8] sm:$0xff] %vm1313, %v1280
  %1372 = vst.msk [vmem:[%s5 + $0x1d0] sm:$0xff] %vm1313, %v1285
  %1373 = vst.msk [vmem:[%s5 + $0x1d8] sm:$0xff] %vm1313, %v1290
  %1374 = vst.msk [vmem:[%s5 + $0x1e0] sm:$0xff] %vm1313, %v1295
  %1375 = vst.msk [vmem:[%s5 + $0x1e8] sm:$0xff] %vm1313, %v1300
  %1376 = vst.msk [vmem:[%s5 + $0x1f0] sm:$0xff] %vm1313, %v1305
  %1377 = vst.msk [vmem:[%s5 + $0x1f8] sm:$0xff] %vm1313, %v1310
  // Predicated region
  $region22: #{fno2d_forward.19} parent=0 // pred_check
    _
  $region23: #{fno2d_forward.19} parent=0 // pred_check_branch
    %1379 = sbr.rel (0) target = $region25
  $region24: #{fno2d_forward.19} parent=0 // pred_region
    _
  $region25: #{fno2d_forward.19} parent=0 // pred_fallthru
    _
  // Predicated region
  $region26: #{fno2d_forward.19} parent=0 // pred_check
    _
  $region27: #{fno2d_forward.19} parent=0 // pred_check_branch
    %1381 = sbr.rel (0) target = $region29
  $region28: #{fno2d_forward.19} parent=0 // pred_region
    _
  $region29: #{fno2d_forward.19} parent=0 // pred_fallthru
    _

</llo_original>
